<compile_context>
chip_gen: v5e
topology: v5e:2x2
jax: 0.10.0
libtpu: 0.0.40
codegen_flags: <defaults>
</compile_context>

<pallas_src>
import math

import jax
import jax.numpy as jnp
from jax.experimental import pallas as pl
from jax.experimental.pallas import tpu as pltpu

# ----------------------------- configuration --------------------------------
B = 2                        # real batch
BP = 8                       # batch padded to a full sublane group
L = 8                        # instruction sequence length
E = 32                       # instruction token-embedding dim
VOCAB = 16                   # toy vocabulary (0 = pad)
DEPTH_C, DEPTH_H, DEPTH_W = 1, 16, 16
RGB_C, RGB_H, RGB_W = 4, 16, 16
HW = DEPTH_H * DEPTH_W       # 256
INSTR_DIM = 128              # instruction_encoder.output_size
DEPTH_DIM = 128              # depth_encoder.output_size
RGB_DIM = 256                # rgb_encoder.output_size
ACT_DIM = 32                 # prev_action_embedding.embedding_dim
ACT_PAD = 128                # prev-action segment padded to a full lane group
NUM_ACTIONS = 4
HIDDEN = 512                 # state_encoder hidden_size (fixed in the module)
GATE = 3 * HIDDEN            # 1536 (r|z|n)
RNN_INPUT = INSTR_DIM + DEPTH_DIM + RGB_DIM + ACT_DIM       # 544
RNN_INPUT_PAD = INSTR_DIM + DEPTH_DIM + RGB_DIM + ACT_PAD   # 640
PROG_LANES = 128             # lane-dense progress slab width (per chunk)
MAX_TCHUNK = 32              # recurrent kernel: <=32 GRU steps per grid step
MXU_M_TILE = 256             # precompute M-tile (v6e/v7x MXU height)


# ----------------- kernel 1: T-batched encoders + W_ih gates -----------------
def encode_gates_kernel(
    instr_ref, depth_ref, rgb_ref, act_ref,                 # [TM,*] bf16
    wpi_ref, bpi_ref, wpd_ref, bpd_ref, wpr_ref, bpr_ref,   # bf16 W, f32 b
    wih_ref, bih_ref,                                       # [640,1536] bf16
    gx_ref,                                                 # out [TM,1536] f32
    xcat_sc,                                                # VMEM [TM,640] bf16
):
    f32, bf16 = jnp.float32, jnp.bfloat16

    instr_feat = jnp.maximum(
        jnp.dot(instr_ref[...], wpi_ref[...], preferred_element_type=f32)
        + bpi_ref[...], 0.0)                                        # [TM,128]
    depth_feat = jnp.maximum(
        jnp.dot(depth_ref[...], wpd_ref[...], preferred_element_type=f32)
        + bpd_ref[...], 0.0)                                        # [TM,128]
    rgb_feat = jnp.maximum(
        jnp.dot(rgb_ref[...], wpr_ref[...], preferred_element_type=f32)
        + bpr_ref[...], 0.0)                                        # [TM,256]

    # x = cat([instr, depth, rgb, prev_act]) built in bf16 VMEM (128-aligned).
    o0 = INSTR_DIM
    o1 = INSTR_DIM + DEPTH_DIM
    o2 = INSTR_DIM + DEPTH_DIM + RGB_DIM
    xcat_sc[:, 0:o0] = instr_feat.astype(bf16)
    xcat_sc[:, o0:o1] = depth_feat.astype(bf16)
    xcat_sc[:, o1:o2] = rgb_feat.astype(bf16)
    xcat_sc[:, o2:RNN_INPUT_PAD] = act_ref[...]   # already bf16 (zero pad kept)

    # merged input-to-hidden gates for ALL rows of this M-tile
    gx_ref[...] = jnp.dot(xcat_sc[...], wih_ref[...],
                          preferred_element_type=f32) + bih_ref[...]


# ------------- kernel 2: recurrence (W_hh + gating + progress) ---------------
def gru_rollout_kernel(
    gx_ref,        # [TCHUNK,BP,1536] f32 (precomputed x-gates)
    masks_ref,     # [TCHUNK,BP,1]    f32
    h0_ref,        # [BP,512]         f32
    whh_ref,       # [512,1536]       bf16
    bhh_ref,       # [1,1536]         f32
    wpm_ref,       # [1,512]          f32
    bpm_ref,       # [1,1]            f32
    x_out_ref,     # out [TCHUNK,BP,512] f32
    prog_out_ref,  # out [1,BP,128]      f32 (lane-dense slab, lane i = step i)
    h_sc,          # VMEM [BP,512]  f32 — hidden carried across steps & chunks
    prog_sc,       # VMEM [BP,128]  f32 — per-chunk progress accumulator
):
    f32, bf16 = jnp.float32, jnp.bfloat16
    tchunk = gx_ref.shape[0]
    H = HIDDEN

    @pl.when(pl.program_id(0) == 0)
    def _():
        h_sc[...] = h0_ref[...]

    prog_sc[...] = jnp.zeros_like(prog_sc)
    lane = jax.lax.broadcasted_iota(jnp.int32, (BP, PROG_LANES), 1)

    def step(i, carry):
        # episode-reset mask (matches habitat RNNStateEncoder)
        h = h_sc[...] * masks_ref[i]                                # [BP,512]
        gx = gx_ref[i]                                              # [BP,1536]
        gh = jnp.dot(h.astype(bf16), whh_ref[...],
                     preferred_element_type=f32) + bhh_ref[...]     # [BP,1536]

        # PyTorch GRU gate order (r, z, n)
        r = jax.nn.sigmoid(gx[:, 0:H] + gh[:, 0:H])
        z = jax.nn.sigmoid(gx[:, H:2 * H] + gh[:, H:2 * H])
        n = jnp.tanh(gx[:, 2 * H:3 * H] + r * gh[:, 2 * H:3 * H])
        h_new = (1.0 - z) * n + z * h                               # [BP,512]

        h_sc[...] = h_new
        x_out_ref[i] = h_new

        # progress monitor on VPU/XLU (no N=1 MXU pass), accumulate into lane i
        prog = jnp.tanh(
            jnp.sum(h_new * wpm_ref[...], axis=-1, keepdims=True)
            + bpm_ref[...])                                         # [BP,1]
        prog_sc[...] = jnp.where(lane == i, prog, prog_sc[...])
        return carry

    jax.lax.fori_loop(0, tchunk, step, 0, unroll=(tchunk <= 8))

    # single lane-dense writeback per chunk
    prog_out_ref[0] = prog_sc[...]


# ------------------------------- wrappers -------------------------------------
def _pad_axis(x, axis, target):
    pad = target - x.shape[axis]
    if pad <= 0:
        return x
    widths = [(0, 0)] * x.ndim
    widths[axis] = (0, pad)
    return jnp.pad(x, widths)


def _const_spec(shape):
    zeros = (0,) * len(shape)
    return pl.BlockSpec(shape, lambda *_: zeros)


def _precompute_gates(params, instr_rows, depth_rows, rgb_rows, act_rows):
    """One batched pass over all M = T_pad*BP rows: encoders + merged W_ih."""
    M = instr_rows.shape[0]
    TM = M if M < MXU_M_TILE else MXU_M_TILE
    assert M % TM == 0 and TM % 8 == 0
    n_tiles = M // TM

    def row_spec(d):
        return pl.BlockSpec((TM, d), lambda m: (m, 0))

    grid_spec = pltpu.PrefetchScalarGridSpec(
        num_scalar_prefetch=0,
        grid=(n_tiles,),
        in_specs=[
            row_spec(E), row_spec(HW), row_spec(RGB_C), row_spec(ACT_PAD),
            _const_spec((E, INSTR_DIM)), _const_spec((1, INSTR_DIM)),
            _const_spec((HW, DEPTH_DIM)), _const_spec((1, DEPTH_DIM)),
            _const_spec((RGB_C, RGB_DIM)), _const_spec((1, RGB_DIM)),
            _const_spec((RNN_INPUT_PAD, GATE)), _const_spec((1, GATE)),
        ],
        out_specs=pl.BlockSpec((TM, GATE), lambda m: (m, 0)),
        scratch_shapes=[pltpu.VMEM((TM, RNN_INPUT_PAD), jnp.bfloat16)],
    )
    return pl.pallas_call(
        encode_gates_kernel,
        out_shape=jax.ShapeDtypeStruct((M, GATE), jnp.float32),
        grid_spec=grid_spec,
        compiler_params=pltpu.CompilerParams(
            dimension_semantics=("parallel",)),   # independent M tiles
    )(instr_rows, depth_rows, rgb_rows, act_rows,
      params["wpi"], params["bpi"], params["wpd"], params["bpd"],
      params["wpr"], params["bpr"], params["wih"], params["bih"])


def _gru_rollout(params, gates_x, masks_p, h0_p, tchunk, nchunks):
    """Serial recurrence over T-chunks; h carried in VMEM scratch."""
    t_pad = gates_x.shape[0]
    grid_spec = pltpu.PrefetchScalarGridSpec(
        num_scalar_prefetch=0,
        grid=(nchunks,),
        in_specs=[
            pl.BlockSpec((tchunk, BP, GATE), lambda c: (c, 0, 0)),
            pl.BlockSpec((tchunk, BP, 1), lambda c: (c, 0, 0)),
            _const_spec((BP, HIDDEN)),
            _const_spec((HIDDEN, GATE)),
            _const_spec((1, GATE)),
            _const_spec((1, HIDDEN)),
            _const_spec((1, 1)),
        ],
        out_specs=[
            pl.BlockSpec((tchunk, BP, HIDDEN), lambda c: (c, 0, 0)),
            pl.BlockSpec((1, BP, PROG_LANES), lambda c: (c, 0, 0)),
        ],
        scratch_shapes=[
            pltpu.VMEM((BP, HIDDEN), jnp.float32),
            pltpu.VMEM((BP, PROG_LANES), jnp.float32),
        ],
    )
    return pl.pallas_call(
        gru_rollout_kernel,
        out_shape=(
            jax.ShapeDtypeStruct((t_pad, BP, HIDDEN), jnp.float32),
            jax.ShapeDtypeStruct((nchunks, BP, PROG_LANES), jnp.float32),
        ),
        grid_spec=grid_spec,
        compiler_params=pltpu.CompilerParams(
            dimension_semantics=("arbitrary",)),   # recurrence is serial
    )(gates_x, masks_p, h0_p, params["whh"], params["bhh"],
      params["wpm"], params["bpm"])


def seq2seq_rollout(params, observations, rnn_states, prev_actions, masks):
    """T-step rollout. All per-step tensors carry leading [T, B] axes.

    Returns (x [T,B,512], rnn_states_out [1,B,512], progress_hat [T,B,1]).
    """
    tokens = observations["instruction"]                       # [T,B,L] int32
    T, B_in = tokens.shape[0], tokens.shape[1]

    # ---- glue: embedding gathers + tiny poolings (left to XLA) ----
    instr_emb = jnp.take(params["instr_tok_emb"], tokens, axis=0)   # [T,B,L,E]
    instr_mask = (tokens != 0).astype(jnp.float32)                  # [T,B,L]
    msum = jnp.maximum(jnp.sum(instr_mask, axis=2, keepdims=True), 1.0)
    instr_pooled = jnp.sum(instr_emb * instr_mask[..., None], axis=2) / msum

    depth_flat = observations["depth"].reshape(T, B_in, HW)         # [T,B,256]
    rgb_pooled = observations["rgb"].reshape(
        T, B_in, RGB_C, RGB_H * RGB_W).mean(axis=3)                 # [T,B,4]

    masks_f = masks.astype(jnp.float32)                             # [T,B,1]
    act_idx = ((prev_actions.astype(jnp.float32) + 1.0) * masks_f).astype(
        jnp.int32).reshape(T, B_in)                                 # [T,B]
    act_emb = jnp.take(params["prev_action_embedding"], act_idx, axis=0)
    act_emb = _pad_axis(act_emb, 2, ACT_PAD)      # zero-padded (wih pad rows=0)

    h0 = rnn_states[0]                                              # [B,512]

    # ---- pad batch to a full sublane group; observation streams in bf16 ----
    instr_pooled = _pad_axis(instr_pooled, 1, BP).astype(jnp.bfloat16)
    depth_flat = _pad_axis(depth_flat, 1, BP).astype(jnp.bfloat16)
    rgb_pooled = _pad_axis(rgb_pooled, 1, BP).astype(jnp.bfloat16)
    act_emb = _pad_axis(act_emb, 1, BP).astype(jnp.bfloat16)
    masks_p = _pad_axis(masks_f, 1, BP)
    h0_p = _pad_axis(h0, 0, BP)

    # ---- time chunking for the recurrent kernel ----
    tchunk = T if T < MAX_TCHUNK else MAX_TCHUNK
    nchunks = pl.cdiv(T, tchunk)
    t_pad = nchunks * tchunk
    instr_pooled = _pad_axis(instr_pooled, 0, t_pad)
    depth_flat = _pad_axis(depth_flat, 0, t_pad)
    rgb_pooled = _pad_axis(rgb_pooled, 0, t_pad)
    act_emb = _pad_axis(act_emb, 0, t_pad)
    masks_p = _pad_axis(masks_p, 0, t_pad)

    # ---- kernel 1: hoisted encoders + merged W_ih, batched over T*BP rows ---
    M = t_pad * BP
    gates_x = _precompute_gates(
        params,
        instr_pooled.reshape(M, E),
        depth_flat.reshape(M, HW),
        rgb_pooled.reshape(M, RGB_C),
        act_emb.reshape(M, ACT_PAD),
    ).reshape(t_pad, BP, GATE)

    # ---- kernel 2: recurrence (W_hh + gating + progress) ----
    x_seq, prog_chunks = _gru_rollout(params, gates_x, masks_p, h0_p,
                                      tchunk, nchunks)

    x = x_seq[:T, :B_in, :]                                         # [T,B,512]
    prog = jnp.transpose(prog_chunks[:, :, :tchunk], (0, 2, 1)).reshape(
        t_pad, BP)[:T, :B_in][..., None]                            # [T,B,1]
    rnn_states_out = x[-1][None]             # [1,B,512]  (x aliases hidden)
    return x, rnn_states_out, prog


def seq2seq_forward(params, observations, rnn_states, prev_actions, masks):
    """Single-step forward matching the PyTorch module's forward()."""
    obs_seq = {k: v[None] for k, v in observations.items()}
    x, rnn_states_out, prog = seq2seq_rollout(
        params, obs_seq, rnn_states, prev_actions[None], masks[None])
    return x[0], rnn_states_out, prog[0]


# --------------------------- deterministic params -----------------------------
def init_params(key):
    ks = jax.random.split(key, 12)
    f32, bf16 = jnp.float32, jnp.bfloat16

    def nrm(k, shape, scale, dtype=f32):
        return (scale * jax.random.normal(k, shape, dtype=f32)).astype(dtype)

    s = 1.0 / math.sqrt(HIDDEN)
    # merged W_ih, rows ordered as the concat: instr | depth | rgb | prev_action
    wih = jnp.concatenate([
        nrm(ks[5], (INSTR_DIM, GATE), s),
        nrm(ks[6], (DEPTH_DIM, GATE), s),
        nrm(ks[7], (RGB_DIM, GATE), s),
        nrm(ks[8], (ACT_DIM, GATE), s),
    ], axis=0)                                                   # [544,1536]
    # pad rows 544..639 MUST stay zero (matches the zero-padded act segment)
    wih = jnp.pad(wih, ((0, RNN_INPUT_PAD - RNN_INPUT), (0, 0))).astype(bf16)

    params = {
        "instr_tok_emb": nrm(ks[0], (VOCAB, E), 1.0),
        "prev_action_embedding": nrm(ks[1], (NUM_ACTIONS + 1, ACT_DIM), 1.0),
        # simplified encoder projections (bf16 weights, f32 biases)
        "wpi": nrm(ks[2], (E, INSTR_DIM), 1.0 / math.sqrt(E), bf16),
        "bpi": jnp.zeros((1, INSTR_DIM), f32),
        "wpd": nrm(ks[3], (HW, DEPTH_DIM), 1.0 / math.sqrt(HW), bf16),
        "bpd": jnp.zeros((1, DEPTH_DIM), f32),
        "wpr": nrm(ks[4], (RGB_C, RGB_DIM), 1.0 / math.sqrt(RGB_C), bf16),
        "bpr": jnp.zeros((1, RGB_DIM), f32),
        # GRU
        "wih": wih,                                              # [640,1536] bf16
        "whh": nrm(ks[9], (HIDDEN, GATE), s, bf16),              # [512,1536] bf16
        "bih": jnp.zeros((1, GATE), f32),
        "bhh": jnp.zeros((1, GATE), f32),
        # progress monitor: kaiming_normal_(nonlinearity='tanh'), bias = 0
        "wpm": nrm(ks[10], (1, HIDDEN), (5.0 / 3.0) / math.sqrt(HIDDEN), f32),
        "bpm": jnp.zeros((1, 1), f32),
    }
    return params


# ----------------------------------- main --------------------------------------
if __name__ == "__main__":
    key = jax.random.PRNGKey(0)
    k_par, k_tok, k_dep, k_rgb, k_act, k_h, k_seq = jax.random.split(key, 7)

    params = init_params(k_par)

    # --- single-step forward (matches the PyTorch module API) ---
    observations = {
        "instruction": jax.random.randint(k_tok, (B, L), 0, VOCAB,
                                          dtype=jnp.int32).at[:, -2:].set(0),
        "depth": jax.random.uniform(k_dep, (B, DEPTH_C, DEPTH_H, DEPTH_W),
                                    dtype=jnp.float32),
        "rgb": jax.random.uniform(k_rgb, (B, RGB_C, RGB_H, RGB_W),
                                  dtype=jnp.float32),
    }
    prev_actions = jax.random.randint(k_act, (B, 1), 0, NUM_ACTIONS,
                                      dtype=jnp.int32)
    masks = jnp.array([[0.0], [1.0]], dtype=jnp.float32)
    rnn_states = 0.1 * jax.random.normal(k_h, (1, B, HIDDEN), dtype=jnp.float32)

    x, rnn_states_out, progress_hat = seq2seq_forward(
        params, observations, rnn_states, prev_actions, masks)
    jax.block_until_ready((x, rnn_states_out, progress_hat))

    assert x.shape == (B, HIDDEN)
    assert rnn_states_out.shape == (1, B, HIDDEN)
    assert progress_hat.shape == (B, 1)
    assert bool(jnp.all(jnp.isfinite(x)))
    assert bool(jnp.all(jnp.isfinite(progress_hat)))

    # --- multi-step rollout: encoders + W_ih done in ONE batched MXU pass ---
    T = 4
    kt, kd, kr, ka = jax.random.split(k_seq, 4)
    obs_seq = {
        "instruction": jax.random.randint(kt, (T, B, L), 0, VOCAB,
                                          dtype=jnp.int32).at[:, :, -1].set(0),
        "depth": jax.random.uniform(kd, (T, B, DEPTH_C, DEPTH_H, DEPTH_W),
                                    dtype=jnp.float32),
        "rgb": jax.random.uniform(kr, (T, B, RGB_C, RGB_H, RGB_W),
                                  dtype=jnp.float32),
    }
    prev_actions_seq = jax.random.randint(ka, (T, B, 1), 0, NUM_ACTIONS,
                                          dtype=jnp.int32)
    masks_seq = jnp.ones((T, B, 1), jnp.float32).at[0, 0, 0].set(0.0)

    x_seq, rnn_out_T, prog_seq = seq2seq_rollout(
        params, obs_seq, rnn_states, prev_actions_seq, masks_seq)
    jax.block_until_ready((x_seq, rnn_out_T, prog_seq))

    assert x_seq.shape == (T, B, HIDDEN)
    assert rnn_out_T.shape == (1, B, HIDDEN)
    assert prog_seq.shape == (T, B, 1)
    assert bool(jnp.all(jnp.isfinite(x_seq)))
    assert bool(jnp.all(jnp.isfinite(prog_seq)))

    print("KERNEL_OK")
</pallas_src>

<mosaic_0001>
module attributes {stable_mosaic.version = 11 : i64} {
  func.func @encode_gates_kernel(%arg0: i32, %arg1: memref<8x32xbf16, #tpu.memory_space<vmem>>, %arg2: memref<8x256xbf16, #tpu.memory_space<vmem>>, %arg3: memref<8x4xbf16, #tpu.memory_space<vmem>>, %arg4: memref<8x128xbf16, #tpu.memory_space<vmem>>, %arg5: memref<32x128xbf16, #tpu.memory_space<vmem>>, %arg6: memref<1x128xf32, #tpu.memory_space<vmem>>, %arg7: memref<256x128xbf16, #tpu.memory_space<vmem>>, %arg8: memref<1x128xf32, #tpu.memory_space<vmem>>, %arg9: memref<4x256xbf16, #tpu.memory_space<vmem>>, %arg10: memref<1x256xf32, #tpu.memory_space<vmem>>, %arg11: memref<640x1536xbf16, #tpu.memory_space<vmem>>, %arg12: memref<1x1536xf32, #tpu.memory_space<vmem>>, %arg13: memref<8x1536xf32, #tpu.memory_space<vmem>>, %arg14: memref<8x640xbf16, #tpu.memory_space<vmem>>) attributes {dimension_semantics = [#tpu.dimension_semantics<parallel>], iteration_bounds = array<i64: 1>, scalar_prefetch = 0 : i64, scratch_operands = 1 : i64, tpu.core_type = #tpu.core_type<tc>, window_params = [{transform_indices = @transform_0, window_bounds = array<i64: 8, 32>}, {transform_indices = @transform_1, window_bounds = array<i64: 8, 256>}, {transform_indices = @transform_2, window_bounds = array<i64: 8, 4>}, {transform_indices = @transform_3, window_bounds = array<i64: 8, 128>}, {pipeline_mode = #tpu.pipeline_mode<synchronous>, transform_indices = @transform_4, window_bounds = array<i64: 32, 128>}, {pipeline_mode = #tpu.pipeline_mode<synchronous>, transform_indices = @transform_5, window_bounds = array<i64: 1, 128>}, {pipeline_mode = #tpu.pipeline_mode<synchronous>, transform_indices = @transform_6, window_bounds = array<i64: 256, 128>}, {pipeline_mode = #tpu.pipeline_mode<synchronous>, transform_indices = @transform_7, window_bounds = array<i64: 1, 128>}, {pipeline_mode = #tpu.pipeline_mode<synchronous>, transform_indices = @transform_8, window_bounds = array<i64: 4, 256>}, {pipeline_mode = #tpu.pipeline_mode<synchronous>, transform_indices = @transform_9, window_bounds = array<i64: 1, 256>}, {pipeline_mode = #tpu.pipeline_mode<synchronous>, transform_indices = @transform_10, window_bounds = array<i64: 640, 1536>}, {pipeline_mode = #tpu.pipeline_mode<synchronous>, transform_indices = @transform_11, window_bounds = array<i64: 1, 1536>}, {transform_indices = @transform_12, window_bounds = array<i64: 8, 1536>}]} {
    %c0 = arith.constant 0 : index
    %c0_0 = arith.constant 0 : index
    %0 = vector.load %arg1[%c0, %c0_0] : memref<8x32xbf16, #tpu.memory_space<vmem>>, vector<8x32xbf16>
    %c0_1 = arith.constant 0 : index
    %c0_2 = arith.constant 0 : index
    %1 = vector.load %arg5[%c0_1, %c0_2] : memref<32x128xbf16, #tpu.memory_space<vmem>>, vector<32x128xbf16>
    %cst = arith.constant dense<0.000000e+00> : vector<8x128xf32>
    %2 = tpu.matmul %0, %1, %cst {dimension_numbers = #tpu.dot_dimension_numbers<[1], [0], [0], [1], [0, 0, 1, 1], [], []>} : vector<8x32xbf16>, vector<32x128xbf16>, vector<8x128xf32> -> vector<8x128xf32>
    %c0_3 = arith.constant 0 : index
    %c0_4 = arith.constant 0 : index
    %3 = vector.load %arg6[%c0_3, %c0_4] : memref<1x128xf32, #tpu.memory_space<vmem>>, vector<1x128xf32>
    %4 = vector.broadcast %3 : vector<1x128xf32> to vector<8x128xf32>
    %5 = arith.addf %2, %4 : vector<8x128xf32>
    %cst_5 = arith.constant 0.000000e+00 : f32
    %6 = vector.broadcast %cst_5 : f32 to vector<8x128xf32>
    %7 = arith.maximumf %5, %6 : vector<8x128xf32>
    %c0_6 = arith.constant 0 : index
    %c0_7 = arith.constant 0 : index
    %8 = vector.load %arg2[%c0_6, %c0_7] : memref<8x256xbf16, #tpu.memory_space<vmem>>, vector<8x256xbf16>
    %c0_8 = arith.constant 0 : index
    %c0_9 = arith.constant 0 : index
    %9 = vector.load %arg7[%c0_8, %c0_9] : memref<256x128xbf16, #tpu.memory_space<vmem>>, vector<256x128xbf16>
    %cst_10 = arith.constant dense<0.000000e+00> : vector<8x128xf32>
    %10 = tpu.matmul %8, %9, %cst_10 {dimension_numbers = #tpu.dot_dimension_numbers<[1], [0], [0], [1], [0, 0, 1, 1], [], []>} : vector<8x256xbf16>, vector<256x128xbf16>, vector<8x128xf32> -> vector<8x128xf32>
    %c0_11 = arith.constant 0 : index
    %c0_12 = arith.constant 0 : index
    %11 = vector.load %arg8[%c0_11, %c0_12] : memref<1x128xf32, #tpu.memory_space<vmem>>, vector<1x128xf32>
    %12 = vector.broadcast %11 : vector<1x128xf32> to vector<8x128xf32>
    %13 = arith.addf %10, %12 : vector<8x128xf32>
    %cst_13 = arith.constant 0.000000e+00 : f32
    %14 = vector.broadcast %cst_13 : f32 to vector<8x128xf32>
    %15 = arith.maximumf %13, %14 : vector<8x128xf32>
    %c0_14 = arith.constant 0 : index
    %c0_15 = arith.constant 0 : index
    %16 = vector.load %arg3[%c0_14, %c0_15] : memref<8x4xbf16, #tpu.memory_space<vmem>>, vector<8x4xbf16>
    %c0_16 = arith.constant 0 : index
    %c0_17 = arith.constant 0 : index
    %17 = vector.load %arg9[%c0_16, %c0_17] : memref<4x256xbf16, #tpu.memory_space<vmem>>, vector<4x256xbf16>
    %cst_18 = arith.constant dense<0.000000e+00> : vector<8x256xf32>
    %18 = tpu.matmul %16, %17, %cst_18 {dimension_numbers = #tpu.dot_dimension_numbers<[1], [0], [0], [1], [0, 0, 1, 1], [], []>} : vector<8x4xbf16>, vector<4x256xbf16>, vector<8x256xf32> -> vector<8x256xf32>
    %c0_19 = arith.constant 0 : index
    %c0_20 = arith.constant 0 : index
    %19 = vector.load %arg10[%c0_19, %c0_20] : memref<1x256xf32, #tpu.memory_space<vmem>>, vector<1x256xf32>
    %20 = vector.broadcast %19 : vector<1x256xf32> to vector<8x256xf32>
    %21 = arith.addf %18, %20 : vector<8x256xf32>
    %cst_21 = arith.constant 0.000000e+00 : f32
    %22 = vector.broadcast %cst_21 : f32 to vector<8x256xf32>
    %23 = arith.maximumf %21, %22 : vector<8x256xf32>
    %24 = arith.truncf %7 : vector<8x128xf32> to vector<8x128xbf16>
    %c0_22 = arith.constant 0 : index
    %c0_23 = arith.constant 0 : index
    %25 = vector.load %arg14[%c0_22, %c0_23] : memref<8x640xbf16, #tpu.memory_space<vmem>>, vector<8x128xbf16>
    tpu.vector_store %arg14[%c0_22, %c0_23], %24 {strides = array<i32>} : memref<8x640xbf16, #tpu.memory_space<vmem>>, vector<8x128xbf16>,
    %26 = arith.truncf %15 : vector<8x128xf32> to vector<8x128xbf16>
    %c0_24 = arith.constant 0 : index
    %c128 = arith.constant 128 : index
    %27 = vector.load %arg14[%c0_24, %c128] : memref<8x640xbf16, #tpu.memory_space<vmem>>, vector<8x128xbf16>
    tpu.vector_store %arg14[%c0_24, %c128], %26 {strides = array<i32>} : memref<8x640xbf16, #tpu.memory_space<vmem>>, vector<8x128xbf16>,
    %28 = arith.truncf %23 : vector<8x256xf32> to vector<8x256xbf16>
    %c0_25 = arith.constant 0 : index
    %c256 = arith.constant 256 : index
    %29 = vector.load %arg14[%c0_25, %c256] : memref<8x640xbf16, #tpu.memory_space<vmem>>, vector<8x256xbf16>
    tpu.vector_store %arg14[%c0_25, %c256], %28 {strides = array<i32>} : memref<8x640xbf16, #tpu.memory_space<vmem>>, vector<8x256xbf16>,
    %c0_26 = arith.constant 0 : index
    %c0_27 = arith.constant 0 : index
    %30 = vector.load %arg4[%c0_26, %c0_27] : memref<8x128xbf16, #tpu.memory_space<vmem>>, vector<8x128xbf16>
    %c0_28 = arith.constant 0 : index
    %c512 = arith.constant 512 : index
    %31 = vector.load %arg14[%c0_28, %c512] : memref<8x640xbf16, #tpu.memory_space<vmem>>, vector<8x128xbf16>
    tpu.vector_store %arg14[%c0_28, %c512], %30 {strides = array<i32>} : memref<8x640xbf16, #tpu.memory_space<vmem>>, vector<8x128xbf16>,
    %c0_29 = arith.constant 0 : index
    %c0_30 = arith.constant 0 : index
    %32 = vector.load %arg14[%c0_29, %c0_30] : memref<8x640xbf16, #tpu.memory_space<vmem>>, vector<8x640xbf16>
    %c0_31 = arith.constant 0 : index
    %c0_32 = arith.constant 0 : index
    %33 = vector.load %arg11[%c0_31, %c0_32] : memref<640x1536xbf16, #tpu.memory_space<vmem>>, vector<640x1536xbf16>
    %cst_33 = arith.constant dense<0.000000e+00> : vector<8x1536xf32>
    %34 = tpu.matmul %32, %33, %cst_33 {dimension_numbers = #tpu.dot_dimension_numbers<[1], [0], [0], [1], [0, 0, 1, 1], [], []>} : vector<8x640xbf16>, vector<640x1536xbf16>, vector<8x1536xf32> -> vector<8x1536xf32>
    %c0_34 = arith.constant 0 : index
    %c0_35 = arith.constant 0 : index
    %35 = vector.load %arg12[%c0_34, %c0_35] : memref<1x1536xf32, #tpu.memory_space<vmem>>, vector<1x1536xf32>
    %36 = vector.broadcast %35 : vector<1x1536xf32> to vector<8x1536xf32>
    %37 = arith.addf %34, %36 : vector<8x1536xf32>
    %c0_36 = arith.constant 0 : index
    %c0_37 = arith.constant 0 : index
    %38 = vector.load %arg13[%c0_36, %c0_37] : memref<8x1536xf32, #tpu.memory_space<vmem>>, vector<8x1536xf32>
    tpu.vector_store %arg13[%c0_36, %c0_37], %37 {strides = array<i32>} : memref<8x1536xf32, #tpu.memory_space<vmem>>, vector<8x1536xf32>,
    return
  }
  func.func @transform_0(%arg0: i32) -> (i32, i32) {
    %c0_i32 = arith.constant 0 : i32
    %c0_i32_0 = arith.constant 0 : i32
    return %arg0, %c0_i32 : i32, i32
  }
  func.func @transform_1(%arg0: i32) -> (i32, i32) {
    %c0_i32 = arith.constant 0 : i32
    %c0_i32_0 = arith.constant 0 : i32
    return %arg0, %c0_i32 : i32, i32
  }
  func.func @transform_2(%arg0: i32) -> (i32, i32) {
    %c0_i32 = arith.constant 0 : i32
    %c0_i32_0 = arith.constant 0 : i32
    return %arg0, %c0_i32 : i32, i32
  }
  func.func @transform_3(%arg0: i32) -> (i32, i32) {
    %c0_i32 = arith.constant 0 : i32
    %c0_i32_0 = arith.constant 0 : i32
    return %arg0, %c0_i32 : i32, i32
  }
  func.func @transform_4(%arg0: i32) -> (i32, i32) {
    %c0_i32 = arith.constant 0 : i32
    %c0_i32_0 = arith.constant 0 : i32
    %c0_i32_1 = arith.constant 0 : i32
    return %c0_i32, %c0_i32_0 : i32, i32
  }
  func.func @transform_5(%arg0: i32) -> (i32, i32) {
    %c0_i32 = arith.constant 0 : i32
    %c0_i32_0 = arith.constant 0 : i32
    %c0_i32_1 = arith.constant 0 : i32
    return %c0_i32, %c0_i32_0 : i32, i32
  }
  func.func @transform_6(%arg0: i32) -> (i32, i32) {
    %c0_i32 = arith.constant 0 : i32
    %c0_i32_0 = arith.constant 0 : i32
    %c0_i32_1 = arith.constant 0 : i32
    return %c0_i32, %c0_i32_0 : i32, i32
  }
  func.func @transform_7(%arg0: i32) -> (i32, i32) {
    %c0_i32 = arith.constant 0 : i32
    %c0_i32_0 = arith.constant 0 : i32
    %c0_i32_1 = arith.constant 0 : i32
    return %c0_i32, %c0_i32_0 : i32, i32
  }
  func.func @transform_8(%arg0: i32) -> (i32, i32) {
    %c0_i32 = arith.constant 0 : i32
    %c0_i32_0 = arith.constant 0 : i32
    %c0_i32_1 = arith.constant 0 : i32
    return %c0_i32, %c0_i32_0 : i32, i32
  }
  func.func @transform_9(%arg0: i32) -> (i32, i32) {
    %c0_i32 = arith.constant 0 : i32
    %c0_i32_0 = arith.constant 0 : i32
    %c0_i32_1 = arith.constant 0 : i32
    return %c0_i32, %c0_i32_0 : i32, i32
  }
  func.func @transform_10(%arg0: i32) -> (i32, i32) {
    %c0_i32 = arith.constant 0 : i32
    %c0_i32_0 = arith.constant 0 : i32
    %c0_i32_1 = arith.constant 0 : i32
    return %c0_i32, %c0_i32_0 : i32, i32
  }
  func.func @transform_11(%arg0: i32) -> (i32, i32) {
    %c0_i32 = arith.constant 0 : i32
    %c0_i32_0 = arith.constant 0 : i32
    %c0_i32_1 = arith.constant 0 : i32
    return %c0_i32, %c0_i32_0 : i32, i32
  }
  func.func @transform_12(%arg0: i32) -> (i32, i32) {
    %c0_i32 = arith.constant 0 : i32
    %c0_i32_0 = arith.constant 0 : i32
    return %arg0, %c0_i32 : i32, i32
  }
}

</mosaic_0001>

<llo_original>
// kernel: tpu_custom_call.1
$region0: #{tpu_custom_call.1}
  #allocation0 [shape = 'u32[]', space=smem, size = 0x4, offset = 0x4, fixed_abs, tag = 'smem constant byte address 0x4 - core index']
  #allocation1 [shape = 'u32[72,128]{1,0:T(1,128)}', space=vmem, size = 0x9000, scoped, tag = 'internal scratch']
  #allocation2 [shape = 'bf16[8,640]{1,0:T(8,128)(2,1)}', space=vmem, size = 0x2800, scoped, tag = 'scratch operand']
  %s0 = inlined_call_operand.hbm [shape: bf16[8,32], index: 0, kind: input, shape index: {}]
  %s1 = inlined_call_operand.hbm [shape: bf16[8,256], index: 1, kind: input, shape index: {}]
  %s2 = inlined_call_operand.vmem [shape: bf16[8,4], index: 2, kind: input, shape index: {}]
  %s3 = inlined_call_operand.hbm [shape: bf16[8,128], index: 3, kind: input, shape index: {}]
  %s4 = inlined_call_operand.hbm [shape: bf16[32,128], index: 4, kind: input, shape index: {}]
  %s5 = inlined_call_operand.hbm [shape: f32[1,128], index: 5, kind: input, shape index: {}]
  %s6 = inlined_call_operand.hbm [shape: bf16[256,128], index: 6, kind: input, shape index: {}]
  %s7 = inlined_call_operand.hbm [shape: f32[1,128], index: 7, kind: input, shape index: {}]
  %s8 = inlined_call_operand.hbm [shape: bf16[4,256], index: 8, kind: input, shape index: {}]
  %s9 = inlined_call_operand.hbm [shape: f32[1,256], index: 9, kind: input, shape index: {}]
  %s10 = inlined_call_operand.hbm [shape: bf16[640,1536], index: 10, kind: input, shape index: {}]
  %s11 = inlined_call_operand.hbm [shape: f32[1,1536], index: 11, kind: input, shape index: {}]
  %s12 = inlined_call_operand.hbm [shape: f32[8,1536], index: 12, kind: output, shape index: {}]
  %s13 = sld [smem:[#allocation0]]
  $region102: #{tpu_custom_call.1} parent=0
    _
  %s15 = ssub.s32 1, %s13
  %s16 = scalar_select 0, %s15, %s13
  $region1: #{tpu_custom_call.1} parent=0
    #allocation3 [shape = 'u8[2048]{0}', space=vmem, size = 0x800, scoped, tag = 'input window, operand 0, single buffered']
    #allocation4 [shape = 's32[1]{0}', space=sflag, size = 0x4, scoped, tag = 'scoped memory for tpu_custom_call.1']
    #allocation5 [shape = 's32[1]{0}', space=sflag, size = 0x4, scoped, tag = 'scoped memory for tpu_custom_call.1']
    #allocation6 [shape = 'u8[4096]{0}', space=vmem, size = 0x1000, scoped, tag = 'input window, operand 1, single buffered']
    #allocation7 [shape = 's32[1]{0}', space=sflag, size = 0x4, scoped, tag = 'scoped memory for tpu_custom_call.1']
    #allocation8 [shape = 'u8[2048]{0}', space=vmem, size = 0x800, scoped, tag = 'input window, operand 3, single buffered']
    #allocation9 [shape = 'u8[8192]{0}', space=vmem, size = 0x2000, scoped, tag = 'input window, operand 4, single buffered']
    #allocation10 [shape = 's32[1]{0}', space=sflag, size = 0x4, scoped, tag = 'scoped memory for tpu_custom_call.1']
    #allocation11 [shape = 'u8[512]{0}', space=vmem, size = 0x400, scoped, tag = 'input window, operand 5, single buffered']
    #allocation12 [shape = 'u8[65536]{0}', space=vmem, size = 0x10000, scoped, tag = 'input window, operand 6, single buffered']
    #allocation13 [shape = 's32[1]{0}', space=sflag, size = 0x4, scoped, tag = 'scoped memory for tpu_custom_call.1']
    #allocation14 [shape = 'u8[512]{0}', space=vmem, size = 0x400, scoped, tag = 'input window, operand 7, single buffered']
    #allocation15 [shape = 'u8[2048]{0}', space=vmem, size = 0x800, scoped, tag = 'input window, operand 8, single buffered']
    #allocation16 [shape = 's32[1]{0}', space=sflag, size = 0x4, scoped, tag = 'scoped memory for tpu_custom_call.1']
    #allocation17 [shape = 'u8[1024]{0}', space=vmem, size = 0x400, scoped, tag = 'input window, operand 9, single buffered']
    #allocation18 [shape = 'u8[1966080]{0}', space=vmem, size = 0x1e0000, scoped, tag = 'input window, operand 10, single buffered']
    #allocation19 [shape = 's32[1]{0}', space=sflag, size = 0x4, scoped, tag = 'scoped memory for tpu_custom_call.1']
    #allocation20 [shape = 'u8[6144]{0}', space=vmem, size = 0x1800, scoped, tag = 'input window, operand 11, single buffered']
    #allocation21 [shape = 'u8[49152]{0}', space=vmem, size = 0xc000, scoped, tag = 'output window, operand 0, single buffered']
    %17 = vsyncpa [#allocation4], 0
    %18 = vsyncpa [#allocation7], 0
    %19 = vsyncpa [#allocation10], 0
    %20 = vsyncpa [#allocation13], 0
    %21 = vsyncpa [#allocation16], 0
    %22 = vsyncpa [#allocation19], 0
    %23 = vsyncpa [#allocation5], 0
    // Predicated region
    $region2: #{tpu_custom_call.1} parent=1 // pred_check
      _
    $region3: #{tpu_custom_call.1} parent=1 // pred_check_branch
      %25 = sbr.rel (0) target = $region5
    $region4: #{tpu_custom_call.1} parent=1 // pred_region
      %27 = vsyncadd [#allocation4], 0
      %s29 = sshll.u32 %s0, 4
      %s30 = int_to_ptr.hbm [resolvable:$true] %s29
      %s31 = sshll.u32 [#allocation3], 4
      %s32 = int_to_ptr.vmem [resolvable:$true] %s31
      %34 = dma.hbm_to_vmem [thread:$0]  %s30, 64, %s32, [#allocation4]
    $region5: #{tpu_custom_call.1} parent=1 // pred_fallthru
      _
    // Predicated region
    $region6: #{tpu_custom_call.1} parent=1 // pred_check
      _
    $region7: #{tpu_custom_call.1} parent=1 // pred_check_branch
      %36 = sbr.rel (0) target = $region9
    $region8: #{tpu_custom_call.1} parent=1 // pred_region
      %38 = vsyncadd [#allocation7], 0
      %s40 = sshll.u32 %s1, 4
      %s41 = int_to_ptr.hbm [resolvable:$true] %s40
      %s42 = sshll.u32 [#allocation6], 4
      %s43 = int_to_ptr.vmem [resolvable:$true] %s42
      %45 = dma.hbm_to_vmem [thread:$0]  %s41, 128, %s43, [#allocation7]
    $region9: #{tpu_custom_call.1} parent=1 // pred_fallthru
      _
    // Predicated region
    $region10: #{tpu_custom_call.1} parent=1 // pred_check
      _
    $region11: #{tpu_custom_call.1} parent=1 // pred_check_branch
      %47 = sbr.rel (0) target = $region13
    $region12: #{tpu_custom_call.1} parent=1 // pred_region
      _
    $region13: #{tpu_custom_call.1} parent=1 // pred_fallthru
      _
    // Predicated region
    $region14: #{tpu_custom_call.1} parent=1 // pred_check
      _
    $region15: #{tpu_custom_call.1} parent=1 // pred_check_branch
      %49 = sbr.rel (0) target = $region17
    $region16: #{tpu_custom_call.1} parent=1 // pred_region
      %51 = vsyncadd [#allocation7], 0
      %s53 = sshll.u32 %s3, 4
      %s54 = int_to_ptr.hbm [resolvable:$true] %s53
      %s55 = sshll.u32 [#allocation8], 4
      %s56 = int_to_ptr.vmem [resolvable:$true] %s55
      %58 = dma.hbm_to_vmem [thread:$0]  %s54, 64, %s56, [#allocation7]
    $region17: #{tpu_custom_call.1} parent=1 // pred_fallthru
      _
    // Predicated region
    $region18: #{tpu_custom_call.1} parent=1 // pred_check
      _
    $region19: #{tpu_custom_call.1} parent=1 // pred_check_branch
      %60 = sbr.rel (0) target = $region21
    $region20: #{tpu_custom_call.1} parent=1 // pred_region
      %62 = vsyncadd [#allocation10], 0
      %s63 = sshll.u32 %s4, 4
      %s64 = int_to_ptr.hbm [resolvable:$true] %s63
      %s65 = sshll.u32 [#allocation9], 4
      %s66 = int_to_ptr.vmem [resolvable:$true] %s65
      %71 = dma.hbm_to_vmem [thread:$0]  %s64, 256, %s66, [#allocation10], 64, 64, 4
    $region21: #{tpu_custom_call.1} parent=1 // pred_fallthru
      _
    // Predicated region
    $region22: #{tpu_custom_call.1} parent=1 // pred_check
      _
    $region23: #{tpu_custom_call.1} parent=1 // pred_check_branch
      %73 = sbr.rel (0) target = $region25
    $region24: #{tpu_custom_call.1} parent=1 // pred_region
      %75 = vsyncadd [#allocation10], 0
      %s77 = sshll.u32 %s5, 4
      %s78 = int_to_ptr.hbm [resolvable:$true] %s77
      %s79 = sshll.u32 [#allocation11], 4
      %s80 = int_to_ptr.vmem [resolvable:$true] %s79
      %82 = dma.hbm_to_vmem [thread:$0]  %s78, 16, %s80, [#allocation10]
    $region25: #{tpu_custom_call.1} parent=1 // pred_fallthru
      _
    // Predicated region
    $region26: #{tpu_custom_call.1} parent=1 // pred_check
      _
    $region27: #{tpu_custom_call.1} parent=1 // pred_check_branch
      %84 = sbr.rel (0) target = $region29
    $region28: #{tpu_custom_call.1} parent=1 // pred_region
      %86 = vsyncadd [#allocation13], 0
      %s87 = sshll.u32 %s6, 4
      %s88 = int_to_ptr.hbm [resolvable:$true] %s87
      %s89 = sshll.u32 [#allocation12], 4
      %s90 = int_to_ptr.vmem [resolvable:$true] %s89
      %95 = dma.hbm_to_vmem [thread:$0]  %s88, 2048, %s90, [#allocation13], 64, 64, 4
    $region29: #{tpu_custom_call.1} parent=1 // pred_fallthru
      _
    // Predicated region
    $region30: #{tpu_custom_call.1} parent=1 // pred_check
      _
    $region31: #{tpu_custom_call.1} parent=1 // pred_check_branch
      %97 = sbr.rel (0) target = $region33
    $region32: #{tpu_custom_call.1} parent=1 // pred_region
      %99 = vsyncadd [#allocation13], 0
      %s101 = sshll.u32 %s7, 4
      %s102 = int_to_ptr.hbm [resolvable:$true] %s101
      %s103 = sshll.u32 [#allocation14], 4
      %s104 = int_to_ptr.vmem [resolvable:$true] %s103
      %106 = dma.hbm_to_vmem [thread:$0]  %s102, 16, %s104, [#allocation13]
    $region33: #{tpu_custom_call.1} parent=1 // pred_fallthru
      _
    // Predicated region
    $region34: #{tpu_custom_call.1} parent=1 // pred_check
      _
    $region35: #{tpu_custom_call.1} parent=1 // pred_check_branch
      %108 = sbr.rel (0) target = $region37
    $region36: #{tpu_custom_call.1} parent=1 // pred_region
      %110 = vsyncadd [#allocation16], 0
      %s112 = sshll.u32 %s8, 4
      %s113 = int_to_ptr.hbm [resolvable:$true] %s112
      %s114 = sshll.u32 [#allocation15], 4
      %s115 = int_to_ptr.vmem [resolvable:$true] %s114
      %117 = dma.hbm_to_vmem [thread:$0]  %s113, 64, %s115, [#allocation16]
    $region37: #{tpu_custom_call.1} parent=1 // pred_fallthru
      _
    // Predicated region
    $region38: #{tpu_custom_call.1} parent=1 // pred_check
      _
    $region39: #{tpu_custom_call.1} parent=1 // pred_check_branch
      %119 = sbr.rel (0) target = $region41
    $region40: #{tpu_custom_call.1} parent=1 // pred_region
      %121 = vsyncadd [#allocation16], 0
      %s123 = sshll.u32 %s9, 4
      %s124 = int_to_ptr.hbm [resolvable:$true] %s123
      %s125 = sshll.u32 [#allocation17], 4
      %s126 = int_to_ptr.vmem [resolvable:$true] %s125
      %128 = dma.hbm_to_vmem [thread:$0]  %s124, 32, %s126, [#allocation16]
    $region41: #{tpu_custom_call.1} parent=1 // pred_fallthru
      _
    // Predicated region
    $region42: #{tpu_custom_call.1} parent=1 // pred_check
      _
    $region43: #{tpu_custom_call.1} parent=1 // pred_check_branch
      %130 = sbr.rel (0) target = $region45
    $region44: #{tpu_custom_call.1} parent=1 // pred_region
      %132 = vsyncadd [#allocation19], 0
      %s133 = sshll.u32 %s10, 4
      %s134 = int_to_ptr.hbm [resolvable:$true] %s133
      %s135 = sshll.u32 [#allocation18], 4
      %s136 = int_to_ptr.vmem [resolvable:$true] %s135
      %141 = dma.hbm_to_vmem [thread:$0]  %s134, 61440, %s136, [#allocation19], 768, 768, 48
    $region45: #{tpu_custom_call.1} parent=1 // pred_fallthru
      _
    // Predicated region
    $region46: #{tpu_custom_call.1} parent=1 // pred_check
      _
    $region47: #{tpu_custom_call.1} parent=1 // pred_check_branch
      %143 = sbr.rel (0) target = $region49
    $region48: #{tpu_custom_call.1} parent=1 // pred_region
      %145 = vsyncadd [#allocation19], 0
      %s147 = sshll.u32 %s11, 4
      %s148 = int_to_ptr.hbm [resolvable:$true] %s147
      %s149 = sshll.u32 [#allocation20], 4
      %s150 = int_to_ptr.vmem [resolvable:$true] %s149
      %152 = dma.hbm_to_vmem [thread:$0]  %s148, 192, %s150, [#allocation19]
    $region49: #{tpu_custom_call.1} parent=1 // pred_fallthru
      _
    // Predicated region
    $region50: #{tpu_custom_call.1} parent=1 // pred_check
      _
    $region51: #{tpu_custom_call.1} parent=1 // pred_check_branch
      %154 = sbr.rel (0) target = $region53
    $region52: #{tpu_custom_call.1} parent=1 // pred_region
      %156 = dma.done [#allocation4], 64
    $region53: #{tpu_custom_call.1} parent=1 // pred_fallthru
      _
    // Predicated region
    $region54: #{tpu_custom_call.1} parent=1 // pred_check
      _
    $region55: #{tpu_custom_call.1} parent=1 // pred_check_branch
      %158 = sbr.rel (0) target = $region57
    $region56: #{tpu_custom_call.1} parent=1 // pred_region
      %160 = dma.done [#allocation7], 128
    $region57: #{tpu_custom_call.1} parent=1 // pred_fallthru
      _
    // Predicated region
    $region58: #{tpu_custom_call.1} parent=1 // pred_check
      _
    $region59: #{tpu_custom_call.1} parent=1 // pred_check_branch
      %162 = sbr.rel (0) target = $region61
    $region60: #{tpu_custom_call.1} parent=1 // pred_region
      %164 = dma.done [#allocation7], 64
    $region61: #{tpu_custom_call.1} parent=1 // pred_fallthru
      _
    // Predicated region
    $region62: #{tpu_custom_call.1} parent=1 // pred_check
      _
    $region63: #{tpu_custom_call.1} parent=1 // pred_check_branch
      %166 = sbr.rel (0) target = $region65
    $region64: #{tpu_custom_call.1} parent=1 // pred_region
      %168 = dma.done [#allocation10], 256
    $region65: #{tpu_custom_call.1} parent=1 // pred_fallthru
      _
    // Predicated region
    $region66: #{tpu_custom_call.1} parent=1 // pred_check
      _
    $region67: #{tpu_custom_call.1} parent=1 // pred_check_branch
      %170 = sbr.rel (0) target = $region69
    $region68: #{tpu_custom_call.1} parent=1 // pred_region
      %172 = dma.done [#allocation10], 16
    $region69: #{tpu_custom_call.1} parent=1 // pred_fallthru
      _
    // Predicated region
    $region70: #{tpu_custom_call.1} parent=1 // pred_check
      _
    $region71: #{tpu_custom_call.1} parent=1 // pred_check_branch
      %174 = sbr.rel (0) target = $region73
    $region72: #{tpu_custom_call.1} parent=1 // pred_region
      %176 = dma.done [#allocation13], 2048
    $region73: #{tpu_custom_call.1} parent=1 // pred_fallthru
      _
    // Predicated region
    $region74: #{tpu_custom_call.1} parent=1 // pred_check
      _
    $region75: #{tpu_custom_call.1} parent=1 // pred_check_branch
      %178 = sbr.rel (0) target = $region77
    $region76: #{tpu_custom_call.1} parent=1 // pred_region
      %180 = dma.done [#allocation13], 16
    $region77: #{tpu_custom_call.1} parent=1 // pred_fallthru
      _
    // Predicated region
    $region78: #{tpu_custom_call.1} parent=1 // pred_check
      _
    $region79: #{tpu_custom_call.1} parent=1 // pred_check_branch
      %182 = sbr.rel (0) target = $region81
    $region80: #{tpu_custom_call.1} parent=1 // pred_region
      %184 = dma.done [#allocation16], 64
    $region81: #{tpu_custom_call.1} parent=1 // pred_fallthru
      _
    // Predicated region
    $region82: #{tpu_custom_call.1} parent=1 // pred_check
      _
    $region83: #{tpu_custom_call.1} parent=1 // pred_check_branch
      %186 = sbr.rel (0) target = $region85
    $region84: #{tpu_custom_call.1} parent=1 // pred_region
      %188 = dma.done [#allocation16], 32
    $region85: #{tpu_custom_call.1} parent=1 // pred_fallthru
      _
    // Predicated region
    $region86: #{tpu_custom_call.1} parent=1 // pred_check
      _
    $region87: #{tpu_custom_call.1} parent=1 // pred_check_branch
      %190 = sbr.rel (0) target = $region89
    $region88: #{tpu_custom_call.1} parent=1 // pred_region
      %192 = dma.done [#allocation19], 61440
    $region89: #{tpu_custom_call.1} parent=1 // pred_fallthru
      _
    // Predicated region
    $region90: #{tpu_custom_call.1} parent=1 // pred_check
      _
    $region91: #{tpu_custom_call.1} parent=1 // pred_check_branch
      %194 = sbr.rel (0) target = $region93
    $region92: #{tpu_custom_call.1} parent=1 // pred_region
      %196 = dma.done [#allocation19], 192
    $region93: #{tpu_custom_call.1} parent=1 // pred_fallthru
      _
    %v198 = vld [vmem:[#allocation3] sm:$0xf]
    %v199 = vld [vmem:[#allocation9] sm:$0xf]
    %v200 = vld [vmem:[#allocation9 + $0x4] sm:$0xf]
    %v201 = vld [vmem:[#allocation9 + $0x8] sm:$0xf]
    %v202 = vld [vmem:[#allocation9 + $0xc] sm:$0xf]
    %v203 = vld [vmem:[#allocation11] sm:$0x1]
    %v205 = vperm.slane %v203, 0
    %v211 = vunpack.c.l.b16 %v199
    %v212 = vunpack.c.l.b16 %v200
    %v213 = vunpack.c.l.b16 %v201
    %v214 = vunpack.c.l.b16 %v202
    %v215 = vpack.c.b16 %v212, %v211
    %v216 = vpack.c.b16 %v214, %v213
    %vm219 = vcmask 261120
    %v221 = vsel %vm219, %v198, 0
    %223 = vmatpush.bf16.msra.mxu0 0
    %224 = vmatpush.bf16.msra.mxu0 0
    %225 = vmatpush.bf16.msra.mxu0 0
    %226 = vmatpush.bf16.msra.mxu0 0
    %227 = vmatpush.bf16.msra.mxu0 0
    %228 = vmatpush.bf16.msra.mxu0 0
    %229 = vmatpush.bf16.msra.mxu0 %v216
    %230 = vmatpush.bf16.msra.mxu0 %v215
    %231 = vmatmul.bf16.gmra.mxu0 %v221
    %v232 = vpop.f32.mrf.mxu0
    %v233 = vadd.f32 %v205, %v232
    %v234 = vpop.f32.mrf.mxu0
    %235 = vdwg.mxu0
    %v236 = vmax.f32 %v233, 0.0
    %v237 = vld [vmem:[#allocation6] sm:$0xff]
    %v238 = vld [vmem:[#allocation12] sm:$0xf]
    %v239 = vld [vmem:[#allocation12 + $0x4] sm:$0xf]
    %v240 = vld [vmem:[#allocation12 + $0x8] sm:$0xf]
    %v241 = vld [vmem:[#allocation12 + $0xc] sm:$0xf]
    %v242 = vld [vmem:[#allocation12 + $0x10] sm:$0xf]
    %v243 = vld [vmem:[#allocation12 + $0x14] sm:$0xf]
    %v244 = vld [vmem:[#allocation12 + $0x18] sm:$0xf]
    %v245 = vld [vmem:[#allocation12 + $0x1c] sm:$0xf]
    %v246 = vld [vmem:[#allocation12 + $0x20] sm:$0xf]
    %v247 = vld [vmem:[#allocation12 + $0x24] sm:$0xf]
    %v248 = vld [vmem:[#allocation12 + $0x28] sm:$0xf]
    %v249 = vld [vmem:[#allocation12 + $0x2c] sm:$0xf]
    %v250 = vld [vmem:[#allocation12 + $0x30] sm:$0xf]
    %v251 = vld [vmem:[#allocation12 + $0x34] sm:$0xf]
    %v252 = vld [vmem:[#allocation12 + $0x38] sm:$0xf]
    %v253 = vld [vmem:[#allocation12 + $0x3c] sm:$0xf]
    %v254 = vld [vmem:[#allocation12 + $0x40] sm:$0xf]
    %v255 = vld [vmem:[#allocation12 + $0x44] sm:$0xf]
    %v256 = vld [vmem:[#allocation12 + $0x48] sm:$0xf]
    %v257 = vld [vmem:[#allocation12 + $0x4c] sm:$0xf]
    %v258 = vld [vmem:[#allocation12 + $0x50] sm:$0xf]
    %v259 = vld [vmem:[#allocation12 + $0x54] sm:$0xf]
    %v260 = vld [vmem:[#allocation12 + $0x58] sm:$0xf]
    %v261 = vld [vmem:[#allocation12 + $0x5c] sm:$0xf]
    %v262 = vld [vmem:[#allocation12 + $0x60] sm:$0xf]
    %v263 = vld [vmem:[#allocation12 + $0x64] sm:$0xf]
    %v264 = vld [vmem:[#allocation12 + $0x68] sm:$0xf]
    %v265 = vld [vmem:[#allocation12 + $0x6c] sm:$0xf]
    %v266 = vld [vmem:[#allocation12 + $0x70] sm:$0xf]
    %v267 = vld [vmem:[#allocation12 + $0x74] sm:$0xf]
    %v268 = vld [vmem:[#allocation12 + $0x78] sm:$0xf]
    %v269 = vld [vmem:[#allocation12 + $0x7c] sm:$0xf]
    %v270 = vld [vmem:[#allocation14] sm:$0x1]
    %v272 = vperm.slane %v270, 0
    %v275 = vunpack.c.l.b16 %v237
    %v276 = vunpack.c.h.b16 %v237
    %v277 = vpack.c.b16 %v275, %v275
    %v278 = vpack.c.b16 %v276, %v276
    %v313 = vunpack.c.l.b16 %v238
    %v314 = vunpack.c.l.b16 %v239
    %v315 = vunpack.c.l.b16 %v240
    %v316 = vunpack.c.l.b16 %v241
    %v317 = vunpack.c.l.b16 %v242
    %v318 = vunpack.c.l.b16 %v243
    %v319 = vunpack.c.l.b16 %v244
    %v320 = vunpack.c.l.b16 %v245
    %v321 = vunpack.c.l.b16 %v246
    %v322 = vunpack.c.l.b16 %v247
    %v323 = vunpack.c.l.b16 %v248
    %v324 = vunpack.c.l.b16 %v249
    %v325 = vunpack.c.l.b16 %v250
    %v326 = vunpack.c.l.b16 %v251
    %v327 = vunpack.c.l.b16 %v252
    %v328 = vunpack.c.l.b16 %v253
    %v329 = vunpack.c.l.b16 %v254
    %v330 = vunpack.c.l.b16 %v255
    %v331 = vunpack.c.l.b16 %v256
    %v332 = vunpack.c.l.b16 %v257
    %v333 = vunpack.c.l.b16 %v258
    %v334 = vunpack.c.l.b16 %v259
    %v335 = vunpack.c.l.b16 %v260
    %v336 = vunpack.c.l.b16 %v261
    %v337 = vunpack.c.l.b16 %v262
    %v338 = vunpack.c.l.b16 %v263
    %v339 = vunpack.c.l.b16 %v264
    %v340 = vunpack.c.l.b16 %v265
    %v341 = vunpack.c.l.b16 %v266
    %v342 = vunpack.c.l.b16 %v267
    %v343 = vunpack.c.l.b16 %v268
    %v344 = vunpack.c.l.b16 %v269
    %v345 = vpack.c.b16 %v314, %v313
    %v346 = vpack.c.b16 %v316, %v315
    %v347 = vpack.c.b16 %v318, %v317
    %v348 = vpack.c.b16 %v320, %v319
    %v349 = vpack.c.b16 %v322, %v321
    %v350 = vpack.c.b16 %v324, %v323
    %v351 = vpack.c.b16 %v326, %v325
    %v352 = vpack.c.b16 %v328, %v327
    %v353 = vpack.c.b16 %v330, %v329
    %v354 = vpack.c.b16 %v332, %v331
    %v355 = vpack.c.b16 %v334, %v333
    %v356 = vpack.c.b16 %v336, %v335
    %v357 = vpack.c.b16 %v338, %v337
    %v358 = vpack.c.b16 %v340, %v339
    %v359 = vpack.c.b16 %v342, %v341
    %v360 = vpack.c.b16 %v344, %v343
    %377 = vmatpush.bf16.msra.mxu0 %v352
    %378 = vmatpush.bf16.msra.mxu0 %v351
    %379 = vmatpush.bf16.msra.mxu0 %v350
    %380 = vmatpush.bf16.msra.mxu0 %v349
    %381 = vmatpush.bf16.msra.mxu0 %v348
    %382 = vmatpush.bf16.msra.mxu0 %v347
    %383 = vmatpush.bf16.msra.mxu0 %v346
    %384 = vmatpush.bf16.msra.mxu0 %v345
    %385 = vmatmul.bf16.gmra.mxu0 %v277
    %v386 = vpop.f32.mrf.mxu0
    %v387 = vadd.f32 %v272, %v386
    %v388 = vpop.f32.mrf.mxu0
    %389 = vdwg.mxu0
    %390 = vmatpush.bf16.msra.mxu0 %v360
    %391 = vmatpush.bf16.msra.mxu0 %v359
    %392 = vmatpush.bf16.msra.mxu0 %v358
    %393 = vmatpush.bf16.msra.mxu0 %v357
    %394 = vmatpush.bf16.msra.mxu0 %v356
    %395 = vmatpush.bf16.msra.mxu0 %v355
    %396 = vmatpush.bf16.msra.mxu0 %v354
    %397 = vmatpush.bf16.msra.mxu0 %v353
    %398 = vmatmul.bf16.gmra.mxu0 %v278
    %v399 = vpop.f32.mrf.mxu0
    %v400 = vadd.f32 %v387, %v399
    %v401 = vpop.f32.mrf.mxu0
    %402 = vdwg.mxu0
    %v403 = vmax.f32 %v400, 0.0
    %v404 = vld [vmem:[%s2] sm:$0xf]
    %v405 = vld [vmem:[#allocation15] sm:$0xf]
    %v406 = vld [vmem:[#allocation17] sm:$0x3]
    %v408 = vperm.slane %v406, 0
    %v409 = vperm.slane %v406, 1
    %413 = vst [vmem:[#allocation1] ss:$4 sm:$0xff] %v405
    %v414 = vld.sshfl [vmem:[#allocation1] sm:$0xff pattern:$0x73625140]
    %v415 = vld.sshfl [vmem:[#allocation1 + $0x8] sm:$0xff pattern:$0x73625140]
    %vm416 = vcmask 31744
    %v418 = vsel %vm416, %v404, 0
    %vm420 = vcmask 1041408
    %v421 = vsel %vm420, %v414, 0
    %v423 = vsel %vm420, %v415, 0
    %425 = vmatpush.bf16.msra.mxu0 0
    %426 = vmatpush.bf16.msra.mxu0 0
    %427 = vmatpush.bf16.msra.mxu0 0
    %428 = vmatpush.bf16.msra.mxu0 0
    %429 = vmatpush.bf16.msra.mxu0 0
    %430 = vmatpush.bf16.msra.mxu0 0
    %431 = vmatpush.bf16.msra.mxu0 0
    %432 = vmatpush.bf16.msra.mxu0 %v421
    %433 = vmatmul.bf16.gmra.mxu0 %v418
    %v434 = vpop.f32.mrf.mxu0
    %v435 = vadd.f32 %v408, %v434
    %v436 = vpop.f32.mrf.mxu0
    %437 = vdwg.mxu0
    %438 = vmatpush.bf16.msra.mxu0 0
    %439 = vmatpush.bf16.msra.mxu0 0
    %440 = vmatpush.bf16.msra.mxu0 0
    %441 = vmatpush.bf16.msra.mxu0 0
    %442 = vmatpush.bf16.msra.mxu0 0
    %443 = vmatpush.bf16.msra.mxu0 0
    %444 = vmatpush.bf16.msra.mxu0 0
    %445 = vmatpush.bf16.msra.mxu0 %v423
    %446 = vmatmul.bf16.gmra.mxu0 %v418
    %v447 = vpop.f32.mrf.mxu0
    %v448 = vadd.f32 %v409, %v447
    %v449 = vpop.f32.mrf.mxu0
    %450 = vdwg.mxu0
    %v451 = vmax.f32 %v435, 0.0
    %v452 = vmax.f32 %v448, 0.0
    %v453 = vpack.c.bf16 %v236, %v236
    %454 = vst [vmem:[#allocation2] sm:$0xf] %v453
    %v455 = vpack.c.bf16 %v403, %v403
    %456 = vst [vmem:[#allocation2 + $0x4] sm:$0xf] %v455
    %v457 = vpack.c.bf16 %v452, %v451
    %458 = vst [vmem:[#allocation2 + $0x8] sm:$0xff] %v457
    %v459 = vld [vmem:[#allocation8] sm:$0xf]
    %460 = vst [vmem:[#allocation2 + $0x10] sm:$0xf] %v459
    %v461 = vld [vmem:[#allocation2] sm:$0xff]
    %v462 = vld [vmem:[#allocation2 + $0x8] sm:$0xff]
    %v463 = vld [vmem:[#allocation2 + $0x10] sm:$0xf]
    %v464 = vld [vmem:[#allocation18] sm:$0xff]
    %v465 = vld [vmem:[#allocation18 + $0x8] sm:$0xff]
    %v466 = vld [vmem:[#allocation18 + $0x10] sm:$0xff]
    %v467 = vld [vmem:[#allocation18 + $0x18] sm:$0xff]
    %v468 = vld [vmem:[#allocation18 + $0x20] sm:$0xff]
    %v469 = vld [vmem:[#allocation18 + $0x28] sm:$0xff]
    %v470 = vld [vmem:[#allocation18 + $0x30] sm:$0xff]
    %v471 = vld [vmem:[#allocation18 + $0x38] sm:$0xff]
    %v472 = vld [vmem:[#allocation18 + $0x40] sm:$0xff]
    %v473 = vld [vmem:[#allocation18 + $0x48] sm:$0xff]
    %v474 = vld [vmem:[#allocation18 + $0x50] sm:$0xff]
    %v475 = vld [vmem:[#allocation18 + $0x58] sm:$0xff]
    %v476 = vld [vmem:[#allocation18 + $0x60] sm:$0xff]
    %v477 = vld [vmem:[#allocation18 + $0x68] sm:$0xff]
    %v478 = vld [vmem:[#allocation18 + $0x70] sm:$0xff]
    %v479 = vld [vmem:[#allocation18 + $0x78] sm:$0xff]
    %v480 = vld [vmem:[#allocation18 + $0x80] sm:$0xff]
    %v481 = vld [vmem:[#allocation18 + $0x88] sm:$0xff]
    %v482 = vld [vmem:[#allocation18 + $0x90] sm:$0xff]
    %v483 = vld [vmem:[#allocation18 + $0x98] sm:$0xff]
    %v484 = vld [vmem:[#allocation18 + $0xa0] sm:$0xff]
    %v485 = vld [vmem:[#allocation18 + $0xa8] sm:$0xff]
    %v486 = vld [vmem:[#allocation18 + $0xb0] sm:$0xff]
    %v487 = vld [vmem:[#allocation18 + $0xb8] sm:$0xff]
    %v488 = vld [vmem:[#allocation18 + $0xc0] sm:$0xff]
    %v489 = vld [vmem:[#allocation18 + $0xc8] sm:$0xff]
    %v490 = vld [vmem:[#allocation18 + $0xd0] sm:$0xff]
    %v491 = vld [vmem:[#allocation18 + $0xd8] sm:$0xff]
    %v492 = vld [vmem:[#allocation18 + $0xe0] sm:$0xff]
    %v493 = vld [vmem:[#allocation18 + $0xe8] sm:$0xff]
    %v494 = vld [vmem:[#allocation18 + $0xf0] sm:$0xff]
    %v495 = vld [vmem:[#allocation18 + $0xf8] sm:$0xff]
    %v496 = vld [vmem:[#allocation18 + $0x100] sm:$0xff]
    %v497 = vld [vmem:[#allocation18 + $0x108] sm:$0xff]
    %v498 = vld [vmem:[#allocation18 + $0x110] sm:$0xff]
    %v499 = vld [vmem:[#allocation18 + $0x118] sm:$0xff]
    %v500 = vld [vmem:[#allocation18 + $0x120] sm:$0xff]
    %v501 = vld [vmem:[#allocation18 + $0x128] sm:$0xff]
    %v502 = vld [vmem:[#allocation18 + $0x130] sm:$0xff]
    %v503 = vld [vmem:[#allocation18 + $0x138] sm:$0xff]
    %v504 = vld [vmem:[#allocation18 + $0x140] sm:$0xff]
    %v505 = vld [vmem:[#allocation18 + $0x148] sm:$0xff]
    %v506 = vld [vmem:[#allocation18 + $0x150] sm:$0xff]
    %v507 = vld [vmem:[#allocation18 + $0x158] sm:$0xff]
    %v508 = vld [vmem:[#allocation18 + $0x160] sm:$0xff]
    %v509 = vld [vmem:[#allocation18 + $0x168] sm:$0xff]
    %v510 = vld [vmem:[#allocation18 + $0x170] sm:$0xff]
    %v511 = vld [vmem:[#allocation18 + $0x178] sm:$0xff]
    %v512 = vld [vmem:[#allocation18 + $0x180] sm:$0xff]
    %v513 = vld [vmem:[#allocation18 + $0x188] sm:$0xff]
    %v514 = vld [vmem:[#allocation18 + $0x190] sm:$0xff]
    %v515 = vld [vmem:[#allocation18 + $0x198] sm:$0xff]
    %v516 = vld [vmem:[#allocation18 + $0x1a0] sm:$0xff]
    %v517 = vld [vmem:[#allocation18 + $0x1a8] sm:$0xff]
    %v518 = vld [vmem:[#allocation18 + $0x1b0] sm:$0xff]
    %v519 = vld [vmem:[#allocation18 + $0x1b8] sm:$0xff]
    %v520 = vld [vmem:[#allocation18 + $0x1c0] sm:$0xff]
    %v521 = vld [vmem:[#allocation18 + $0x1c8] sm:$0xff]
    %v522 = vld [vmem:[#allocation18 + $0x1d0] sm:$0xff]
    %v523 = vld [vmem:[#allocation18 + $0x1d8] sm:$0xff]
    %v524 = vld [vmem:[#allocation18 + $0x1e0] sm:$0xff]
    %v525 = vld [vmem:[#allocation18 + $0x1e8] sm:$0xff]
    %v526 = vld [vmem:[#allocation18 + $0x1f0] sm:$0xff]
    %v527 = vld [vmem:[#allocation18 + $0x1f8] sm:$0xff]
    %v528 = vld [vmem:[#allocation18 + $0x200] sm:$0xff]
    %v529 = vld [vmem:[#allocation18 + $0x208] sm:$0xff]
    %v530 = vld [vmem:[#allocation18 + $0x210] sm:$0xff]
    %v531 = vld [vmem:[#allocation18 + $0x218] sm:$0xff]
    %v532 = vld [vmem:[#allocation18 + $0x220] sm:$0xff]
    %v533 = vld [vmem:[#allocation18 + $0x228] sm:$0xff]
    %v534 = vld [vmem:[#allocation18 + $0x230] sm:$0xff]
    %v535 = vld [vmem:[#allocation18 + $0x238] sm:$0xff]
    %v536 = vld [vmem:[#allocation18 + $0x240] sm:$0xff]
    %v537 = vld [vmem:[#allocation18 + $0x248] sm:$0xff]
    %v538 = vld [vmem:[#allocation18 + $0x250] sm:$0xff]
    %v539 = vld [vmem:[#allocation18 + $0x258] sm:$0xff]
    %v540 = vld [vmem:[#allocation18 + $0x260] sm:$0xff]
    %v541 = vld [vmem:[#allocation18 + $0x268] sm:$0xff]
    %v542 = vld [vmem:[#allocation18 + $0x270] sm:$0xff]
    %v543 = vld [vmem:[#allocation18 + $0x278] sm:$0xff]
    %v544 = vld [vmem:[#allocation18 + $0x280] sm:$0xff]
    %v545 = vld [vmem:[#allocation18 + $0x288] sm:$0xff]
    %v546 = vld [vmem:[#allocation18 + $0x290] sm:$0xff]
    %v547 = vld [vmem:[#allocation18 + $0x298] sm:$0xff]
    %v548 = vld [vmem:[#allocation18 + $0x2a0] sm:$0xff]
    %v549 = vld [vmem:[#allocation18 + $0x2a8] sm:$0xff]
    %v550 = vld [vmem:[#allocation18 + $0x2b0] sm:$0xff]
    %v551 = vld [vmem:[#allocation18 + $0x2b8] sm:$0xff]
    %v552 = vld [vmem:[#allocation18 + $0x2c0] sm:$0xff]
    %v553 = vld [vmem:[#allocation18 + $0x2c8] sm:$0xff]
    %v554 = vld [vmem:[#allocation18 + $0x2d0] sm:$0xff]
    %v555 = vld [vmem:[#allocation18 + $0x2d8] sm:$0xff]
    %v556 = vld [vmem:[#allocation18 + $0x2e0] sm:$0xff]
    %v557 = vld [vmem:[#allocation18 + $0x2e8] sm:$0xff]
    %v558 = vld [vmem:[#allocation18 + $0x2f0] sm:$0xff]
    %v559 = vld [vmem:[#allocation18 + $0x2f8] sm:$0xff]
    %v560 = vld [vmem:[#allocation18 + $0x300] sm:$0xff]
    %v561 = vld [vmem:[#allocation18 + $0x308] sm:$0xff]
    %v562 = vld [vmem:[#allocation18 + $0x310] sm:$0xff]
    %v563 = vld [vmem:[#allocation18 + $0x318] sm:$0xff]
    %v564 = vld [vmem:[#allocation18 + $0x320] sm:$0xff]
    %v565 = vld [vmem:[#allocation18 + $0x328] sm:$0xff]
    %v566 = vld [vmem:[#allocation18 + $0x330] sm:$0xff]
    %v567 = vld [vmem:[#allocation18 + $0x338] sm:$0xff]
    %v568 = vld [vmem:[#allocation18 + $0x340] sm:$0xff]
    %v569 = vld [vmem:[#allocation18 + $0x348] sm:$0xff]
    %v570 = vld [vmem:[#allocation18 + $0x350] sm:$0xff]
    %v571 = vld [vmem:[#allocation18 + $0x358] sm:$0xff]
    %v572 = vld [vmem:[#allocation18 + $0x360] sm:$0xff]
    %v573 = vld [vmem:[#allocation18 + $0x368] sm:$0xff]
    %v574 = vld [vmem:[#allocation18 + $0x370] sm:$0xff]
    %v575 = vld [vmem:[#allocation18 + $0x378] sm:$0xff]
    %v576 = vld [vmem:[#allocation18 + $0x380] sm:$0xff]
    %v577 = vld [vmem:[#allocation18 + $0x388] sm:$0xff]
    %v578 = vld [vmem:[#allocation18 + $0x390] sm:$0xff]
    %v579 = vld [vmem:[#allocation18 + $0x398] sm:$0xff]
    %v580 = vld [vmem:[#allocation18 + $0x3a0] sm:$0xff]
    %v581 = vld [vmem:[#allocation18 + $0x3a8] sm:$0xff]
    %v582 = vld [vmem:[#allocation18 + $0x3b0] sm:$0xff]
    %v583 = vld [vmem:[#allocation18 + $0x3b8] sm:$0xff]
    %v584 = vld [vmem:[#allocation18 + $0x3c0] sm:$0xff]
    %v585 = vld [vmem:[#allocation18 + $0x3c8] sm:$0xff]
    %v586 = vld [vmem:[#allocation18 + $0x3d0] sm:$0xff]
    %v587 = vld [vmem:[#allocation18 + $0x3d8] sm:$0xff]
    %v588 = vld [vmem:[#allocation18 + $0x3e0] sm:$0xff]
    %v589 = vld [vmem:[#allocation18 + $0x3e8] sm:$0xff]
    %v590 = vld [vmem:[#allocation18 + $0x3f0] sm:$0xff]
    %v591 = vld [vmem:[#allocation18 + $0x3f8] sm:$0xff]
    %v592 = vld [vmem:[#allocation18 + $0x400] sm:$0xff]
    %v593 = vld [vmem:[#allocation18 + $0x408] sm:$0xff]
    %v594 = vld [vmem:[#allocation18 + $0x410] sm:$0xff]
    %v595 = vld [vmem:[#allocation18 + $0x418] sm:$0xff]
    %v596 = vld [vmem:[#allocation18 + $0x420] sm:$0xff]
    %v597 = vld [vmem:[#allocation18 + $0x428] sm:$0xff]
    %v598 = vld [vmem:[#allocation18 + $0x430] sm:$0xff]
    %v599 = vld [vmem:[#allocation18 + $0x438] sm:$0xff]
    %v600 = vld [vmem:[#allocation18 + $0x440] sm:$0xff]
    %v601 = vld [vmem:[#allocation18 + $0x448] sm:$0xff]
    %v602 = vld [vmem:[#allocation18 + $0x450] sm:$0xff]
    %v603 = vld [vmem:[#allocation18 + $0x458] sm:$0xff]
    %v604 = vld [vmem:[#allocation18 + $0x460] sm:$0xff]
    %v605 = vld [vmem:[#allocation18 + $0x468] sm:$0xff]
    %v606 = vld [vmem:[#allocation18 + $0x470] sm:$0xff]
    %v607 = vld [vmem:[#allocation18 + $0x478] sm:$0xff]
    %v608 = vld [vmem:[#allocation18 + $0x480] sm:$0xff]
    %v609 = vld [vmem:[#allocation18 + $0x488] sm:$0xff]
    %v610 = vld [vmem:[#allocation18 + $0x490] sm:$0xff]
    %v611 = vld [vmem:[#allocation18 + $0x498] sm:$0xff]
    %v612 = vld [vmem:[#allocation18 + $0x4a0] sm:$0xff]
    %v613 = vld [vmem:[#allocation18 + $0x4a8] sm:$0xff]
    %v614 = vld [vmem:[#allocation18 + $0x4b0] sm:$0xff]
    %v615 = vld [vmem:[#allocation18 + $0x4b8] sm:$0xff]
    %v616 = vld [vmem:[#allocation18 + $0x4c0] sm:$0xff]
    %v617 = vld [vmem:[#allocation18 + $0x4c8] sm:$0xff]
    %v618 = vld [vmem:[#allocation18 + $0x4d0] sm:$0xff]
    %v619 = vld [vmem:[#allocation18 + $0x4d8] sm:$0xff]
    %v620 = vld [vmem:[#allocation18 + $0x4e0] sm:$0xff]
    %v621 = vld [vmem:[#allocation18 + $0x4e8] sm:$0xff]
    %v622 = vld [vmem:[#allocation18 + $0x4f0] sm:$0xff]
    %v623 = vld [vmem:[#allocation18 + $0x4f8] sm:$0xff]
    %v624 = vld [vmem:[#allocation18 + $0x500] sm:$0xff]
    %v625 = vld [vmem:[#allocation18 + $0x508] sm:$0xff]
    %v626 = vld [vmem:[#allocation18 + $0x510] sm:$0xff]
    %v627 = vld [vmem:[#allocation18 + $0x518] sm:$0xff]
    %v628 = vld [vmem:[#allocation18 + $0x520] sm:$0xff]
    %v629 = vld [vmem:[#allocation18 + $0x528] sm:$0xff]
    %v630 = vld [vmem:[#allocation18 + $0x530] sm:$0xff]
    %v631 = vld [vmem:[#allocation18 + $0x538] sm:$0xff]
    %v632 = vld [vmem:[#allocation18 + $0x540] sm:$0xff]
    %v633 = vld [vmem:[#allocation18 + $0x548] sm:$0xff]
    %v634 = vld [vmem:[#allocation18 + $0x550] sm:$0xff]
    %v635 = vld [vmem:[#allocation18 + $0x558] sm:$0xff]
    %v636 = vld [vmem:[#allocation18 + $0x560] sm:$0xff]
    %v637 = vld [vmem:[#allocation18 + $0x568] sm:$0xff]
    %v638 = vld [vmem:[#allocation18 + $0x570] sm:$0xff]
    %v639 = vld [vmem:[#allocation18 + $0x578] sm:$0xff]
    %v640 = vld [vmem:[#allocation18 + $0x580] sm:$0xff]
    %v641 = vld [vmem:[#allocation18 + $0x588] sm:$0xff]
    %v642 = vld [vmem:[#allocation18 + $0x590] sm:$0xff]
    %v643 = vld [vmem:[#allocation18 + $0x598] sm:$0xff]
    %v644 = vld [vmem:[#allocation18 + $0x5a0] sm:$0xff]
    %v645 = vld [vmem:[#allocation18 + $0x5a8] sm:$0xff]
    %v646 = vld [vmem:[#allocation18 + $0x5b0] sm:$0xff]
    %v647 = vld [vmem:[#allocation18 + $0x5b8] sm:$0xff]
    %v648 = vld [vmem:[#allocation18 + $0x5c0] sm:$0xff]
    %v649 = vld [vmem:[#allocation18 + $0x5c8] sm:$0xff]
    %v650 = vld [vmem:[#allocation18 + $0x5d0] sm:$0xff]
    %v651 = vld [vmem:[#allocation18 + $0x5d8] sm:$0xff]
    %v652 = vld [vmem:[#allocation18 + $0x5e0] sm:$0xff]
    %v653 = vld [vmem:[#allocation18 + $0x5e8] sm:$0xff]
    %v654 = vld [vmem:[#allocation18 + $0x5f0] sm:$0xff]
    %v655 = vld [vmem:[#allocation18 + $0x5f8] sm:$0xff]
    %v656 = vld [vmem:[#allocation18 + $0x600] sm:$0xff]
    %v657 = vld [vmem:[#allocation18 + $0x608] sm:$0xff]
    %v658 = vld [vmem:[#allocation18 + $0x610] sm:$0xff]
    %v659 = vld [vmem:[#allocation18 + $0x618] sm:$0xff]
    %v660 = vld [vmem:[#allocation18 + $0x620] sm:$0xff]
    %v661 = vld [vmem:[#allocation18 + $0x628] sm:$0xff]
    %v662 = vld [vmem:[#allocation18 + $0x630] sm:$0xff]
    %v663 = vld [vmem:[#allocation18 + $0x638] sm:$0xff]
    %v664 = vld [vmem:[#allocation18 + $0x640] sm:$0xff]
    %v665 = vld [vmem:[#allocation18 + $0x648] sm:$0xff]
    %v666 = vld [vmem:[#allocation18 + $0x650] sm:$0xff]
    %v667 = vld [vmem:[#allocation18 + $0x658] sm:$0xff]
    %v668 = vld [vmem:[#allocation18 + $0x660] sm:$0xff]
    %v669 = vld [vmem:[#allocation18 + $0x668] sm:$0xff]
    %v670 = vld [vmem:[#allocation18 + $0x670] sm:$0xff]
    %v671 = vld [vmem:[#allocation18 + $0x678] sm:$0xff]
    %v672 = vld [vmem:[#allocation18 + $0x680] sm:$0xff]
    %v673 = vld [vmem:[#allocation18 + $0x688] sm:$0xff]
    %v674 = vld [vmem:[#allocation18 + $0x690] sm:$0xff]
    %v675 = vld [vmem:[#allocation18 + $0x698] sm:$0xff]
    %v676 = vld [vmem:[#allocation18 + $0x6a0] sm:$0xff]
    %v677 = vld [vmem:[#allocation18 + $0x6a8] sm:$0xff]
    %v678 = vld [vmem:[#allocation18 + $0x6b0] sm:$0xff]
    %v679 = vld [vmem:[#allocation18 + $0x6b8] sm:$0xff]
    %v680 = vld [vmem:[#allocation18 + $0x6c0] sm:$0xff]
    %v681 = vld [vmem:[#allocation18 + $0x6c8] sm:$0xff]
    %v682 = vld [vmem:[#allocation18 + $0x6d0] sm:$0xff]
    %v683 = vld [vmem:[#allocation18 + $0x6d8] sm:$0xff]
    %v684 = vld [vmem:[#allocation18 + $0x6e0] sm:$0xff]
    %v685 = vld [vmem:[#allocation18 + $0x6e8] sm:$0xff]
    %v686 = vld [vmem:[#allocation18 + $0x6f0] sm:$0xff]
    %v687 = vld [vmem:[#allocation18 + $0x6f8] sm:$0xff]
    %v688 = vld [vmem:[#allocation18 + $0x700] sm:$0xff]
    %v689 = vld [vmem:[#allocation18 + $0x708] sm:$0xff]
    %v690 = vld [vmem:[#allocation18 + $0x710] sm:$0xff]
    %v691 = vld [vmem:[#allocation18 + $0x718] sm:$0xff]
    %v692 = vld [vmem:[#allocation18 + $0x720] sm:$0xff]
    %v693 = vld [vmem:[#allocation18 + $0x728] sm:$0xff]
    %v694 = vld [vmem:[#allocation18 + $0x730] sm:$0xff]
    %v695 = vld [vmem:[#allocation18 + $0x738] sm:$0xff]
    %v696 = vld [vmem:[#allocation18 + $0x740] sm:$0xff]
    %v697 = vld [vmem:[#allocation18 + $0x748] sm:$0xff]
    %v698 = vld [vmem:[#allocation18 + $0x750] sm:$0xff]
    %v699 = vld [vmem:[#allocation18 + $0x758] sm:$0xff]
    %v700 = vld [vmem:[#allocation18 + $0x760] sm:$0xff]
    %v701 = vld [vmem:[#allocation18 + $0x768] sm:$0xff]
    %v702 = vld [vmem:[#allocation18 + $0x770] sm:$0xff]
    %v703 = vld [vmem:[#allocation18 + $0x778] sm:$0xff]
    %v704 = vld [vmem:[#allocation18 + $0x780] sm:$0xff]
    %v705 = vld [vmem:[#allocation18 + $0x788] sm:$0xff]
    %v706 = vld [vmem:[#allocation18 + $0x790] sm:$0xff]
    %v707 = vld [vmem:[#allocation18 + $0x798] sm:$0xff]
    %v708 = vld [vmem:[#allocation18 + $0x7a0] sm:$0xff]
    %v709 = vld [vmem:[#allocation18 + $0x7a8] sm:$0xff]
    %v710 = vld [vmem:[#allocation18 + $0x7b0] sm:$0xff]
    %v711 = vld [vmem:[#allocation18 + $0x7b8] sm:$0xff]
    %v712 = vld [vmem:[#allocation18 + $0x7c0] sm:$0xff]
    %v713 = vld [vmem:[#allocation18 + $0x7c8] sm:$0xff]
    %v714 = vld [vmem:[#allocation18 + $0x7d0] sm:$0xff]
    %v715 = vld [vmem:[#allocation18 + $0x7d8] sm:$0xff]
    %v716 = vld [vmem:[#allocation18 + $0x7e0] sm:$0xff]
    %v717 = vld [vmem:[#allocation18 + $0x7e8] sm:$0xff]
    %v718 = vld [vmem:[#allocation18 + $0x7f0] sm:$0xff]
    %v719 = vld [vmem:[#allocation18 + $0x7f8] sm:$0xff]
    %v720 = vld [vmem:[#allocation18 + $0x800] sm:$0xff]
    %v721 = vld [vmem:[#allocation18 + $0x808] sm:$0xff]
    %v722 = vld [vmem:[#allocation18 + $0x810] sm:$0xff]
    %v723 = vld [vmem:[#allocation18 + $0x818] sm:$0xff]
    %v724 = vld [vmem:[#allocation18 + $0x820] sm:$0xff]
    %v725 = vld [vmem:[#allocation18 + $0x828] sm:$0xff]
    %v726 = vld [vmem:[#allocation18 + $0x830] sm:$0xff]
    %v727 = vld [vmem:[#allocation18 + $0x838] sm:$0xff]
    %v728 = vld [vmem:[#allocation18 + $0x840] sm:$0xff]
    %v729 = vld [vmem:[#allocation18 + $0x848] sm:$0xff]
    %v730 = vld [vmem:[#allocation18 + $0x850] sm:$0xff]
    %v731 = vld [vmem:[#allocation18 + $0x858] sm:$0xff]
    %v732 = vld [vmem:[#allocation18 + $0x860] sm:$0xff]
    %v733 = vld [vmem:[#allocation18 + $0x868] sm:$0xff]
    %v734 = vld [vmem:[#allocation18 + $0x870] sm:$0xff]
    %v735 = vld [vmem:[#allocation18 + $0x878] sm:$0xff]
    %v736 = vld [vmem:[#allocation18 + $0x880] sm:$0xff]
    %v737 = vld [vmem:[#allocation18 + $0x888] sm:$0xff]
    %v738 = vld [vmem:[#allocation18 + $0x890] sm:$0xff]
    %v739 = vld [vmem:[#allocation18 + $0x898] sm:$0xff]
    %v740 = vld [vmem:[#allocation18 + $0x8a0] sm:$0xff]
    %v741 = vld [vmem:[#allocation18 + $0x8a8] sm:$0xff]
    %v742 = vld [vmem:[#allocation18 + $0x8b0] sm:$0xff]
    %v743 = vld [vmem:[#allocation18 + $0x8b8] sm:$0xff]
    %v744 = vld [vmem:[#allocation18 + $0x8c0] sm:$0xff]
    %v745 = vld [vmem:[#allocation18 + $0x8c8] sm:$0xff]
    %v746 = vld [vmem:[#allocation18 + $0x8d0] sm:$0xff]
    %v747 = vld [vmem:[#allocation18 + $0x8d8] sm:$0xff]
    %v748 = vld [vmem:[#allocation18 + $0x8e0] sm:$0xff]
    %v749 = vld [vmem:[#allocation18 + $0x8e8] sm:$0xff]
    %v750 = vld [vmem:[#allocation18 + $0x8f0] sm:$0xff]
    %v751 = vld [vmem:[#allocation18 + $0x8f8] sm:$0xff]
    %v752 = vld [vmem:[#allocation18 + $0x900] sm:$0xff]
    %v753 = vld [vmem:[#allocation18 + $0x908] sm:$0xff]
    %v754 = vld [vmem:[#allocation18 + $0x910] sm:$0xff]
    %v755 = vld [vmem:[#allocation18 + $0x918] sm:$0xff]
    %v756 = vld [vmem:[#allocation18 + $0x920] sm:$0xff]
    %v757 = vld [vmem:[#allocation18 + $0x928] sm:$0xff]
    %v758 = vld [vmem:[#allocation18 + $0x930] sm:$0xff]
    %v759 = vld [vmem:[#allocation18 + $0x938] sm:$0xff]
    %v760 = vld [vmem:[#allocation18 + $0x940] sm:$0xff]
    %v761 = vld [vmem:[#allocation18 + $0x948] sm:$0xff]
    %v762 = vld [vmem:[#allocation18 + $0x950] sm:$0xff]
    %v763 = vld [vmem:[#allocation18 + $0x958] sm:$0xff]
    %v764 = vld [vmem:[#allocation18 + $0x960] sm:$0xff]
    %v765 = vld [vmem:[#allocation18 + $0x968] sm:$0xff]
    %v766 = vld [vmem:[#allocation18 + $0x970] sm:$0xff]
    %v767 = vld [vmem:[#allocation18 + $0x978] sm:$0xff]
    %v768 = vld [vmem:[#allocation18 + $0x980] sm:$0xff]
    %v769 = vld [vmem:[#allocation18 + $0x988] sm:$0xff]
    %v770 = vld [vmem:[#allocation18 + $0x990] sm:$0xff]
    %v771 = vld [vmem:[#allocation18 + $0x998] sm:$0xff]
    %v772 = vld [vmem:[#allocation18 + $0x9a0] sm:$0xff]
    %v773 = vld [vmem:[#allocation18 + $0x9a8] sm:$0xff]
    %v774 = vld [vmem:[#allocation18 + $0x9b0] sm:$0xff]
    %v775 = vld [vmem:[#allocation18 + $0x9b8] sm:$0xff]
    %v776 = vld [vmem:[#allocation18 + $0x9c0] sm:$0xff]
    %v777 = vld [vmem:[#allocation18 + $0x9c8] sm:$0xff]
    %v778 = vld [vmem:[#allocation18 + $0x9d0] sm:$0xff]
    %v779 = vld [vmem:[#allocation18 + $0x9d8] sm:$0xff]
    %v780 = vld [vmem:[#allocation18 + $0x9e0] sm:$0xff]
    %v781 = vld [vmem:[#allocation18 + $0x9e8] sm:$0xff]
    %v782 = vld [vmem:[#allocation18 + $0x9f0] sm:$0xff]
    %v783 = vld [vmem:[#allocation18 + $0x9f8] sm:$0xff]
    %v784 = vld [vmem:[#allocation18 + $0xa00] sm:$0xff]
    %v785 = vld [vmem:[#allocation18 + $0xa08] sm:$0xff]
    %v786 = vld [vmem:[#allocation18 + $0xa10] sm:$0xff]
    %v787 = vld [vmem:[#allocation18 + $0xa18] sm:$0xff]
    %v788 = vld [vmem:[#allocation18 + $0xa20] sm:$0xff]
    %v789 = vld [vmem:[#allocation18 + $0xa28] sm:$0xff]
    %v790 = vld [vmem:[#allocation18 + $0xa30] sm:$0xff]
    %v791 = vld [vmem:[#allocation18 + $0xa38] sm:$0xff]
    %v792 = vld [vmem:[#allocation18 + $0xa40] sm:$0xff]
    %v793 = vld [vmem:[#allocation18 + $0xa48] sm:$0xff]
    %v794 = vld [vmem:[#allocation18 + $0xa50] sm:$0xff]
    %v795 = vld [vmem:[#allocation18 + $0xa58] sm:$0xff]
    %v796 = vld [vmem:[#allocation18 + $0xa60] sm:$0xff]
    %v797 = vld [vmem:[#allocation18 + $0xa68] sm:$0xff]
    %v798 = vld [vmem:[#allocation18 + $0xa70] sm:$0xff]
    %v799 = vld [vmem:[#allocation18 + $0xa78] sm:$0xff]
    %v800 = vld [vmem:[#allocation18 + $0xa80] sm:$0xff]
    %v801 = vld [vmem:[#allocation18 + $0xa88] sm:$0xff]
    %v802 = vld [vmem:[#allocation18 + $0xa90] sm:$0xff]
    %v803 = vld [vmem:[#allocation18 + $0xa98] sm:$0xff]
    %v804 = vld [vmem:[#allocation18 + $0xaa0] sm:$0xff]
    %v805 = vld [vmem:[#allocation18 + $0xaa8] sm:$0xff]
    %v806 = vld [vmem:[#allocation18 + $0xab0] sm:$0xff]
    %v807 = vld [vmem:[#allocation18 + $0xab8] sm:$0xff]
    %v808 = vld [vmem:[#allocation18 + $0xac0] sm:$0xff]
    %v809 = vld [vmem:[#allocation18 + $0xac8] sm:$0xff]
    %v810 = vld [vmem:[#allocation18 + $0xad0] sm:$0xff]
    %v811 = vld [vmem:[#allocation18 + $0xad8] sm:$0xff]
    %v812 = vld [vmem:[#allocation18 + $0xae0] sm:$0xff]
    %v813 = vld [vmem:[#allocation18 + $0xae8] sm:$0xff]
    %v814 = vld [vmem:[#allocation18 + $0xaf0] sm:$0xff]
    %v815 = vld [vmem:[#allocation18 + $0xaf8] sm:$0xff]
    %v816 = vld [vmem:[#allocation18 + $0xb00] sm:$0xff]
    %v817 = vld [vmem:[#allocation18 + $0xb08] sm:$0xff]
    %v818 = vld [vmem:[#allocation18 + $0xb10] sm:$0xff]
    %v819 = vld [vmem:[#allocation18 + $0xb18] sm:$0xff]
    %v820 = vld [vmem:[#allocation18 + $0xb20] sm:$0xff]
    %v821 = vld [vmem:[#allocation18 + $0xb28] sm:$0xff]
    %v822 = vld [vmem:[#allocation18 + $0xb30] sm:$0xff]
    %v823 = vld [vmem:[#allocation18 + $0xb38] sm:$0xff]
    %v824 = vld [vmem:[#allocation18 + $0xb40] sm:$0xff]
    %v825 = vld [vmem:[#allocation18 + $0xb48] sm:$0xff]
    %v826 = vld [vmem:[#allocation18 + $0xb50] sm:$0xff]
    %v827 = vld [vmem:[#allocation18 + $0xb58] sm:$0xff]
    %v828 = vld [vmem:[#allocation18 + $0xb60] sm:$0xff]
    %v829 = vld [vmem:[#allocation18 + $0xb68] sm:$0xff]
    %v830 = vld [vmem:[#allocation18 + $0xb70] sm:$0xff]
    %v831 = vld [vmem:[#allocation18 + $0xb78] sm:$0xff]
    %v832 = vld [vmem:[#allocation18 + $0xb80] sm:$0xff]
    %v833 = vld [vmem:[#allocation18 + $0xb88] sm:$0xff]
    %v834 = vld [vmem:[#allocation18 + $0xb90] sm:$0xff]
    %v835 = vld [vmem:[#allocation18 + $0xb98] sm:$0xff]
    %v836 = vld [vmem:[#allocation18 + $0xba0] sm:$0xff]
    %v837 = vld [vmem:[#allocation18 + $0xba8] sm:$0xff]
    %v838 = vld [vmem:[#allocation18 + $0xbb0] sm:$0xff]
    %v839 = vld [vmem:[#allocation18 + $0xbb8] sm:$0xff]
    %v840 = vld [vmem:[#allocation18 + $0xbc0] sm:$0xff]
    %v841 = vld [vmem:[#allocation18 + $0xbc8] sm:$0xff]
    %v842 = vld [vmem:[#allocation18 + $0xbd0] sm:$0xff]
    %v843 = vld [vmem:[#allocation18 + $0xbd8] sm:$0xff]
    %v844 = vld [vmem:[#allocation18 + $0xbe0] sm:$0xff]
    %v845 = vld [vmem:[#allocation18 + $0xbe8] sm:$0xff]
    %v846 = vld [vmem:[#allocation18 + $0xbf0] sm:$0xff]
    %v847 = vld [vmem:[#allocation18 + $0xbf8] sm:$0xff]
    %v848 = vld [vmem:[#allocation18 + $0xc00] sm:$0xff]
    %v849 = vld [vmem:[#allocation18 + $0xc08] sm:$0xff]
    %v850 = vld [vmem:[#allocation18 + $0xc10] sm:$0xff]
    %v851 = vld [vmem:[#allocation18 + $0xc18] sm:$0xff]
    %v852 = vld [vmem:[#allocation18 + $0xc20] sm:$0xff]
    %v853 = vld [vmem:[#allocation18 + $0xc28] sm:$0xff]
    %v854 = vld [vmem:[#allocation18 + $0xc30] sm:$0xff]
    %v855 = vld [vmem:[#allocation18 + $0xc38] sm:$0xff]
    %v856 = vld [vmem:[#allocation18 + $0xc40] sm:$0xff]
    %v857 = vld [vmem:[#allocation18 + $0xc48] sm:$0xff]
    %v858 = vld [vmem:[#allocation18 + $0xc50] sm:$0xff]
    %v859 = vld [vmem:[#allocation18 + $0xc58] sm:$0xff]
    %v860 = vld [vmem:[#allocation18 + $0xc60] sm:$0xff]
    %v861 = vld [vmem:[#allocation18 + $0xc68] sm:$0xff]
    %v862 = vld [vmem:[#allocation18 + $0xc70] sm:$0xff]
    %v863 = vld [vmem:[#allocation18 + $0xc78] sm:$0xff]
    %v864 = vld [vmem:[#allocation18 + $0xc80] sm:$0xff]
    %v865 = vld [vmem:[#allocation18 + $0xc88] sm:$0xff]
    %v866 = vld [vmem:[#allocation18 + $0xc90] sm:$0xff]
    %v867 = vld [vmem:[#allocation18 + $0xc98] sm:$0xff]
    %v868 = vld [vmem:[#allocation18 + $0xca0] sm:$0xff]
    %v869 = vld [vmem:[#allocation18 + $0xca8] sm:$0xff]
    %v870 = vld [vmem:[#allocation18 + $0xcb0] sm:$0xff]
    %v871 = vld [vmem:[#allocation18 + $0xcb8] sm:$0xff]
    %v872 = vld [vmem:[#allocation18 + $0xcc0] sm:$0xff]
    %v873 = vld [vmem:[#allocation18 + $0xcc8] sm:$0xff]
    %v874 = vld [vmem:[#allocation18 + $0xcd0] sm:$0xff]
    %v875 = vld [vmem:[#allocation18 + $0xcd8] sm:$0xff]
    %v876 = vld [vmem:[#allocation18 + $0xce0] sm:$0xff]
    %v877 = vld [vmem:[#allocation18 + $0xce8] sm:$0xff]
    %v878 = vld [vmem:[#allocation18 + $0xcf0] sm:$0xff]
    %v879 = vld [vmem:[#allocation18 + $0xcf8] sm:$0xff]
    %v880 = vld [vmem:[#allocation18 + $0xd00] sm:$0xff]
    %v881 = vld [vmem:[#allocation18 + $0xd08] sm:$0xff]
    %v882 = vld [vmem:[#allocation18 + $0xd10] sm:$0xff]
    %v883 = vld [vmem:[#allocation18 + $0xd18] sm:$0xff]
    %v884 = vld [vmem:[#allocation18 + $0xd20] sm:$0xff]
    %v885 = vld [vmem:[#allocation18 + $0xd28] sm:$0xff]
    %v886 = vld [vmem:[#allocation18 + $0xd30] sm:$0xff]
    %v887 = vld [vmem:[#allocation18 + $0xd38] sm:$0xff]
    %v888 = vld [vmem:[#allocation18 + $0xd40] sm:$0xff]
    %v889 = vld [vmem:[#allocation18 + $0xd48] sm:$0xff]
    %v890 = vld [vmem:[#allocation18 + $0xd50] sm:$0xff]
    %v891 = vld [vmem:[#allocation18 + $0xd58] sm:$0xff]
    %v892 = vld [vmem:[#allocation18 + $0xd60] sm:$0xff]
    %v893 = vld [vmem:[#allocation18 + $0xd68] sm:$0xff]
    %v894 = vld [vmem:[#allocation18 + $0xd70] sm:$0xff]
    %v895 = vld [vmem:[#allocation18 + $0xd78] sm:$0xff]
    %v896 = vld [vmem:[#allocation18 + $0xd80] sm:$0xff]
    %v897 = vld [vmem:[#allocation18 + $0xd88] sm:$0xff]
    %v898 = vld [vmem:[#allocation18 + $0xd90] sm:$0xff]
    %v899 = vld [vmem:[#allocation18 + $0xd98] sm:$0xff]
    %v900 = vld [vmem:[#allocation18 + $0xda0] sm:$0xff]
    %v901 = vld [vmem:[#allocation18 + $0xda8] sm:$0xff]
    %v902 = vld [vmem:[#allocation18 + $0xdb0] sm:$0xff]
    %v903 = vld [vmem:[#allocation18 + $0xdb8] sm:$0xff]
    %v904 = vld [vmem:[#allocation18 + $0xdc0] sm:$0xff]
    %v905 = vld [vmem:[#allocation18 + $0xdc8] sm:$0xff]
    %v906 = vld [vmem:[#allocation18 + $0xdd0] sm:$0xff]
    %v907 = vld [vmem:[#allocation18 + $0xdd8] sm:$0xff]
    %v908 = vld [vmem:[#allocation18 + $0xde0] sm:$0xff]
    %v909 = vld [vmem:[#allocation18 + $0xde8] sm:$0xff]
    %v910 = vld [vmem:[#allocation18 + $0xdf0] sm:$0xff]
    %v911 = vld [vmem:[#allocation18 + $0xdf8] sm:$0xff]
    %v912 = vld [vmem:[#allocation18 + $0xe00] sm:$0xff]
    %v913 = vld [vmem:[#allocation18 + $0xe08] sm:$0xff]
    %v914 = vld [vmem:[#allocation18 + $0xe10] sm:$0xff]
    %v915 = vld [vmem:[#allocation18 + $0xe18] sm:$0xff]
    %v916 = vld [vmem:[#allocation18 + $0xe20] sm:$0xff]
    %v917 = vld [vmem:[#allocation18 + $0xe28] sm:$0xff]
    %v918 = vld [vmem:[#allocation18 + $0xe30] sm:$0xff]
    %v919 = vld [vmem:[#allocation18 + $0xe38] sm:$0xff]
    %v920 = vld [vmem:[#allocation18 + $0xe40] sm:$0xff]
    %v921 = vld [vmem:[#allocation18 + $0xe48] sm:$0xff]
    %v922 = vld [vmem:[#allocation18 + $0xe50] sm:$0xff]
    %v923 = vld [vmem:[#allocation18 + $0xe58] sm:$0xff]
    %v924 = vld [vmem:[#allocation18 + $0xe60] sm:$0xff]
    %v925 = vld [vmem:[#allocation18 + $0xe68] sm:$0xff]
    %v926 = vld [vmem:[#allocation18 + $0xe70] sm:$0xff]
    %v927 = vld [vmem:[#allocation18 + $0xe78] sm:$0xff]
    %v928 = vld [vmem:[#allocation18 + $0xe80] sm:$0xff]
    %v929 = vld [vmem:[#allocation18 + $0xe88] sm:$0xff]
    %v930 = vld [vmem:[#allocation18 + $0xe90] sm:$0xff]
    %v931 = vld [vmem:[#allocation18 + $0xe98] sm:$0xff]
    %v932 = vld [vmem:[#allocation18 + $0xea0] sm:$0xff]
    %v933 = vld [vmem:[#allocation18 + $0xea8] sm:$0xff]
    %v934 = vld [vmem:[#allocation18 + $0xeb0] sm:$0xff]
    %v935 = vld [vmem:[#allocation18 + $0xeb8] sm:$0xff]
    %v936 = vld [vmem:[#allocation18 + $0xec0] sm:$0xff]
    %v937 = vld [vmem:[#allocation18 + $0xec8] sm:$0xff]
    %v938 = vld [vmem:[#allocation18 + $0xed0] sm:$0xff]
    %v939 = vld [vmem:[#allocation18 + $0xed8] sm:$0xff]
    %v940 = vld [vmem:[#allocation18 + $0xee0] sm:$0xff]
    %v941 = vld [vmem:[#allocation18 + $0xee8] sm:$0xff]
    %v942 = vld [vmem:[#allocation18 + $0xef0] sm:$0xff]
    %v943 = vld [vmem:[#allocation18 + $0xef8] sm:$0xff]
    %v944 = vld [vmem:[#allocation20] sm:$0xff]
    %v945 = vld [vmem:[#allocation20 + $0x8] sm:$0xf]
    %v948 = vperm.slane %v944, 0
    %v949 = vperm.slane %v944, 1
    %v950 = vperm.slane %v944, 2
    %v951 = vperm.slane %v944, 3
    %v952 = vperm.slane %v944, 4
    %v953 = vperm.slane %v944, 5
    %v954 = vperm.slane %v944, 6
    %v955 = vperm.slane %v944, 7
    %v956 = vperm.slane %v945, 0
    %v957 = vperm.slane %v945, 1
    %v958 = vperm.slane %v945, 2
    %v959 = vperm.slane %v945, 3
    %v975 = vunpack.c.l.b16 %v461
    %v976 = vunpack.c.h.b16 %v461
    %v977 = vunpack.c.l.b16 %v462
    %v978 = vunpack.c.h.b16 %v462
    %v979 = vunpack.c.l.b16 %v463
    %v980 = vpack.c.b16 %v975, %v975
    %v981 = vpack.c.b16 %v976, %v976
    %v982 = vpack.c.b16 %v977, %v977
    %v983 = vpack.c.b16 %v978, %v978
    %v984 = vpack.c.b16 %v979, %v979
    %v1470 = vunpack.c.l.b16 %v464
    %v1471 = vunpack.c.h.b16 %v464
    %v1472 = vunpack.c.l.b16 %v465
    %v1473 = vunpack.c.h.b16 %v465
    %v1474 = vunpack.c.l.b16 %v466
    %v1475 = vunpack.c.h.b16 %v466
    %v1476 = vunpack.c.l.b16 %v467
    %v1477 = vunpack.c.h.b16 %v467
    %v1478 = vunpack.c.l.b16 %v468
    %v1479 = vunpack.c.h.b16 %v468
    %v1480 = vunpack.c.l.b16 %v469
    %v1481 = vunpack.c.h.b16 %v469
    %v1482 = vunpack.c.l.b16 %v470
    %v1483 = vunpack.c.h.b16 %v470
    %v1484 = vunpack.c.l.b16 %v471
    %v1485 = vunpack.c.h.b16 %v471
    %v1486 = vunpack.c.l.b16 %v472
    %v1487 = vunpack.c.h.b16 %v472
    %v1488 = vunpack.c.l.b16 %v473
    %v1489 = vunpack.c.h.b16 %v473
    %v1490 = vunpack.c.l.b16 %v474
    %v1491 = vunpack.c.h.b16 %v474
    %v1492 = vunpack.c.l.b16 %v475
    %v1493 = vunpack.c.h.b16 %v475
    %v1494 = vunpack.c.l.b16 %v476
    %v1495 = vunpack.c.h.b16 %v476
    %v1496 = vunpack.c.l.b16 %v477
    %v1497 = vunpack.c.h.b16 %v477
    %v1498 = vunpack.c.l.b16 %v478
    %v1499 = vunpack.c.h.b16 %v478
    %v1500 = vunpack.c.l.b16 %v479
    %v1501 = vunpack.c.h.b16 %v479
    %v1502 = vunpack.c.l.b16 %v480
    %v1503 = vunpack.c.h.b16 %v480
    %v1504 = vunpack.c.l.b16 %v481
    %v1505 = vunpack.c.h.b16 %v481
    %v1506 = vunpack.c.l.b16 %v482
    %v1507 = vunpack.c.h.b16 %v482
    %v1508 = vunpack.c.l.b16 %v483
    %v1509 = vunpack.c.h.b16 %v483
    %v1510 = vunpack.c.l.b16 %v484
    %v1511 = vunpack.c.h.b16 %v484
    %v1512 = vunpack.c.l.b16 %v485
    %v1513 = vunpack.c.h.b16 %v485
    %v1514 = vunpack.c.l.b16 %v486
    %v1515 = vunpack.c.h.b16 %v486
    %v1516 = vunpack.c.l.b16 %v487
    %v1517 = vunpack.c.h.b16 %v487
    %v1518 = vunpack.c.l.b16 %v488
    %v1519 = vunpack.c.h.b16 %v488
    %v1520 = vunpack.c.l.b16 %v489
    %v1521 = vunpack.c.h.b16 %v489
    %v1522 = vunpack.c.l.b16 %v490
    %v1523 = vunpack.c.h.b16 %v490
    %v1524 = vunpack.c.l.b16 %v491
    %v1525 = vunpack.c.h.b16 %v491
    %v1526 = vunpack.c.l.b16 %v492
    %v1527 = vunpack.c.h.b16 %v492
    %v1528 = vunpack.c.l.b16 %v493
    %v1529 = vunpack.c.h.b16 %v493
    %v1530 = vunpack.c.l.b16 %v494
    %v1531 = vunpack.c.h.b16 %v494
    %v1532 = vunpack.c.l.b16 %v495
    %v1533 = vunpack.c.h.b16 %v495
    %v1534 = vunpack.c.l.b16 %v496
    %v1535 = vunpack.c.h.b16 %v496
    %v1536 = vunpack.c.l.b16 %v497
    %v1537 = vunpack.c.h.b16 %v497
    %v1538 = vunpack.c.l.b16 %v498
    %v1539 = vunpack.c.h.b16 %v498
    %v1540 = vunpack.c.l.b16 %v499
    %v1541 = vunpack.c.h.b16 %v499
    %v1542 = vunpack.c.l.b16 %v500
    %v1543 = vunpack.c.h.b16 %v500
    %v1544 = vunpack.c.l.b16 %v501
    %v1545 = vunpack.c.h.b16 %v501
    %v1546 = vunpack.c.l.b16 %v502
    %v1547 = vunpack.c.h.b16 %v502
    %v1548 = vunpack.c.l.b16 %v503
    %v1549 = vunpack.c.h.b16 %v503
    %v1550 = vunpack.c.l.b16 %v504
    %v1551 = vunpack.c.h.b16 %v504
    %v1552 = vunpack.c.l.b16 %v505
    %v1553 = vunpack.c.h.b16 %v505
    %v1554 = vunpack.c.l.b16 %v506
    %v1555 = vunpack.c.h.b16 %v506
    %v1556 = vunpack.c.l.b16 %v507
    %v1557 = vunpack.c.h.b16 %v507
    %v1558 = vunpack.c.l.b16 %v508
    %v1559 = vunpack.c.h.b16 %v508
    %v1560 = vunpack.c.l.b16 %v509
    %v1561 = vunpack.c.h.b16 %v509
    %v1562 = vunpack.c.l.b16 %v510
    %v1563 = vunpack.c.h.b16 %v510
    %v1564 = vunpack.c.l.b16 %v511
    %v1565 = vunpack.c.h.b16 %v511
    %v1566 = vunpack.c.l.b16 %v512
    %v1567 = vunpack.c.h.b16 %v512
    %v1568 = vunpack.c.l.b16 %v513
    %v1569 = vunpack.c.h.b16 %v513
    %v1570 = vunpack.c.l.b16 %v514
    %v1571 = vunpack.c.h.b16 %v514
    %v1572 = vunpack.c.l.b16 %v515
    %v1573 = vunpack.c.h.b16 %v515
    %v1574 = vunpack.c.l.b16 %v516
    %v1575 = vunpack.c.h.b16 %v516
    %v1576 = vunpack.c.l.b16 %v517
    %v1577 = vunpack.c.h.b16 %v517
    %v1578 = vunpack.c.l.b16 %v518
    %v1579 = vunpack.c.h.b16 %v518
    %v1580 = vunpack.c.l.b16 %v519
    %v1581 = vunpack.c.h.b16 %v519
    %v1582 = vunpack.c.l.b16 %v520
    %v1583 = vunpack.c.h.b16 %v520
    %v1584 = vunpack.c.l.b16 %v521
    %v1585 = vunpack.c.h.b16 %v521
    %v1586 = vunpack.c.l.b16 %v522
    %v1587 = vunpack.c.h.b16 %v522
    %v1588 = vunpack.c.l.b16 %v523
    %v1589 = vunpack.c.h.b16 %v523
    %v1590 = vunpack.c.l.b16 %v524
    %v1591 = vunpack.c.h.b16 %v524
    %v1592 = vunpack.c.l.b16 %v525
    %v1593 = vunpack.c.h.b16 %v525
    %v1594 = vunpack.c.l.b16 %v526
    %v1595 = vunpack.c.h.b16 %v526
    %v1596 = vunpack.c.l.b16 %v527
    %v1597 = vunpack.c.h.b16 %v527
    %v1598 = vunpack.c.l.b16 %v528
    %v1599 = vunpack.c.h.b16 %v528
    %v1600 = vunpack.c.l.b16 %v529
    %v1601 = vunpack.c.h.b16 %v529
    %v1602 = vunpack.c.l.b16 %v530
    %v1603 = vunpack.c.h.b16 %v530
    %v1604 = vunpack.c.l.b16 %v531
    %v1605 = vunpack.c.h.b16 %v531
    %v1606 = vunpack.c.l.b16 %v532
    %v1607 = vunpack.c.h.b16 %v532
    %v1608 = vunpack.c.l.b16 %v533
    %v1609 = vunpack.c.h.b16 %v533
    %v1610 = vunpack.c.l.b16 %v534
    %v1611 = vunpack.c.h.b16 %v534
    %v1612 = vunpack.c.l.b16 %v535
    %v1613 = vunpack.c.h.b16 %v535
    %v1614 = vunpack.c.l.b16 %v536
    %v1615 = vunpack.c.h.b16 %v536
    %v1616 = vunpack.c.l.b16 %v537
    %v1617 = vunpack.c.h.b16 %v537
    %v1618 = vunpack.c.l.b16 %v538
    %v1619 = vunpack.c.h.b16 %v538
    %v1620 = vunpack.c.l.b16 %v539
    %v1621 = vunpack.c.h.b16 %v539
    %v1622 = vunpack.c.l.b16 %v540
    %v1623 = vunpack.c.h.b16 %v540
    %v1624 = vunpack.c.l.b16 %v541
    %v1625 = vunpack.c.h.b16 %v541
    %v1626 = vunpack.c.l.b16 %v542
    %v1627 = vunpack.c.h.b16 %v542
    %v1628 = vunpack.c.l.b16 %v543
    %v1629 = vunpack.c.h.b16 %v543
    %v1630 = vunpack.c.l.b16 %v544
    %v1631 = vunpack.c.h.b16 %v544
    %v1632 = vunpack.c.l.b16 %v545
    %v1633 = vunpack.c.h.b16 %v545
    %v1634 = vunpack.c.l.b16 %v546
    %v1635 = vunpack.c.h.b16 %v546
    %v1636 = vunpack.c.l.b16 %v547
    %v1637 = vunpack.c.h.b16 %v547
    %v1638 = vunpack.c.l.b16 %v548
    %v1639 = vunpack.c.h.b16 %v548
    %v1640 = vunpack.c.l.b16 %v549
    %v1641 = vunpack.c.h.b16 %v549
    %v1642 = vunpack.c.l.b16 %v550
    %v1643 = vunpack.c.h.b16 %v550
    %v1644 = vunpack.c.l.b16 %v551
    %v1645 = vunpack.c.h.b16 %v551
    %v1646 = vunpack.c.l.b16 %v552
    %v1647 = vunpack.c.h.b16 %v552
    %v1648 = vunpack.c.l.b16 %v553
    %v1649 = vunpack.c.h.b16 %v553
    %v1650 = vunpack.c.l.b16 %v554
    %v1651 = vunpack.c.h.b16 %v554
    %v1652 = vunpack.c.l.b16 %v555
    %v1653 = vunpack.c.h.b16 %v555
    %v1654 = vunpack.c.l.b16 %v556
    %v1655 = vunpack.c.h.b16 %v556
    %v1656 = vunpack.c.l.b16 %v557
    %v1657 = vunpack.c.h.b16 %v557
    %v1658 = vunpack.c.l.b16 %v558
    %v1659 = vunpack.c.h.b16 %v558
    %v1660 = vunpack.c.l.b16 %v559
    %v1661 = vunpack.c.h.b16 %v559
    %v1662 = vunpack.c.l.b16 %v560
    %v1663 = vunpack.c.h.b16 %v560
    %v1664 = vunpack.c.l.b16 %v561
    %v1665 = vunpack.c.h.b16 %v561
    %v1666 = vunpack.c.l.b16 %v562
    %v1667 = vunpack.c.h.b16 %v562
    %v1668 = vunpack.c.l.b16 %v563
    %v1669 = vunpack.c.h.b16 %v563
    %v1670 = vunpack.c.l.b16 %v564
    %v1671 = vunpack.c.h.b16 %v564
    %v1672 = vunpack.c.l.b16 %v565
    %v1673 = vunpack.c.h.b16 %v565
    %v1674 = vunpack.c.l.b16 %v566
    %v1675 = vunpack.c.h.b16 %v566
    %v1676 = vunpack.c.l.b16 %v567
    %v1677 = vunpack.c.h.b16 %v567
    %v1678 = vunpack.c.l.b16 %v568
    %v1679 = vunpack.c.h.b16 %v568
    %v1680 = vunpack.c.l.b16 %v569
    %v1681 = vunpack.c.h.b16 %v569
    %v1682 = vunpack.c.l.b16 %v570
    %v1683 = vunpack.c.h.b16 %v570
    %v1684 = vunpack.c.l.b16 %v571
    %v1685 = vunpack.c.h.b16 %v571
    %v1686 = vunpack.c.l.b16 %v572
    %v1687 = vunpack.c.h.b16 %v572
    %v1688 = vunpack.c.l.b16 %v573
    %v1689 = vunpack.c.h.b16 %v573
    %v1690 = vunpack.c.l.b16 %v574
    %v1691 = vunpack.c.h.b16 %v574
    %v1692 = vunpack.c.l.b16 %v575
    %v1693 = vunpack.c.h.b16 %v575
    %v1694 = vunpack.c.l.b16 %v576
    %v1695 = vunpack.c.h.b16 %v576
    %v1696 = vunpack.c.l.b16 %v577
    %v1697 = vunpack.c.h.b16 %v577
    %v1698 = vunpack.c.l.b16 %v578
    %v1699 = vunpack.c.h.b16 %v578
    %v1700 = vunpack.c.l.b16 %v579
    %v1701 = vunpack.c.h.b16 %v579
    %v1702 = vunpack.c.l.b16 %v580
    %v1703 = vunpack.c.h.b16 %v580
    %v1704 = vunpack.c.l.b16 %v581
    %v1705 = vunpack.c.h.b16 %v581
    %v1706 = vunpack.c.l.b16 %v582
    %v1707 = vunpack.c.h.b16 %v582
    %v1708 = vunpack.c.l.b16 %v583
    %v1709 = vunpack.c.h.b16 %v583
    %v1710 = vunpack.c.l.b16 %v584
    %v1711 = vunpack.c.h.b16 %v584
    %v1712 = vunpack.c.l.b16 %v585
    %v1713 = vunpack.c.h.b16 %v585
    %v1714 = vunpack.c.l.b16 %v586
    %v1715 = vunpack.c.h.b16 %v586
    %v1716 = vunpack.c.l.b16 %v587
    %v1717 = vunpack.c.h.b16 %v587
    %v1718 = vunpack.c.l.b16 %v588
    %v1719 = vunpack.c.h.b16 %v588
    %v1720 = vunpack.c.l.b16 %v589
    %v1721 = vunpack.c.h.b16 %v589
    %v1722 = vunpack.c.l.b16 %v590
    %v1723 = vunpack.c.h.b16 %v590
    %v1724 = vunpack.c.l.b16 %v591
    %v1725 = vunpack.c.h.b16 %v591
    %v1726 = vunpack.c.l.b16 %v592
    %v1727 = vunpack.c.h.b16 %v592
    %v1728 = vunpack.c.l.b16 %v593
    %v1729 = vunpack.c.h.b16 %v593
    %v1730 = vunpack.c.l.b16 %v594
    %v1731 = vunpack.c.h.b16 %v594
    %v1732 = vunpack.c.l.b16 %v595
    %v1733 = vunpack.c.h.b16 %v595
    %v1734 = vunpack.c.l.b16 %v596
    %v1735 = vunpack.c.h.b16 %v596
    %v1736 = vunpack.c.l.b16 %v597
    %v1737 = vunpack.c.h.b16 %v597
    %v1738 = vunpack.c.l.b16 %v598
    %v1739 = vunpack.c.h.b16 %v598
    %v1740 = vunpack.c.l.b16 %v599
    %v1741 = vunpack.c.h.b16 %v599
    %v1742 = vunpack.c.l.b16 %v600
    %v1743 = vunpack.c.h.b16 %v600
    %v1744 = vunpack.c.l.b16 %v601
    %v1745 = vunpack.c.h.b16 %v601
    %v1746 = vunpack.c.l.b16 %v602
    %v1747 = vunpack.c.h.b16 %v602
    %v1748 = vunpack.c.l.b16 %v603
    %v1749 = vunpack.c.h.b16 %v603
    %v1750 = vunpack.c.l.b16 %v604
    %v1751 = vunpack.c.h.b16 %v604
    %v1752 = vunpack.c.l.b16 %v605
    %v1753 = vunpack.c.h.b16 %v605
    %v1754 = vunpack.c.l.b16 %v606
    %v1755 = vunpack.c.h.b16 %v606
    %v1756 = vunpack.c.l.b16 %v607
    %v1757 = vunpack.c.h.b16 %v607
    %v1758 = vunpack.c.l.b16 %v608
    %v1759 = vunpack.c.h.b16 %v608
    %v1760 = vunpack.c.l.b16 %v609
    %v1761 = vunpack.c.h.b16 %v609
    %v1762 = vunpack.c.l.b16 %v610
    %v1763 = vunpack.c.h.b16 %v610
    %v1764 = vunpack.c.l.b16 %v611
    %v1765 = vunpack.c.h.b16 %v611
    %v1766 = vunpack.c.l.b16 %v612
    %v1767 = vunpack.c.h.b16 %v612
    %v1768 = vunpack.c.l.b16 %v613
    %v1769 = vunpack.c.h.b16 %v613
    %v1770 = vunpack.c.l.b16 %v614
    %v1771 = vunpack.c.h.b16 %v614
    %v1772 = vunpack.c.l.b16 %v615
    %v1773 = vunpack.c.h.b16 %v615
    %v1774 = vunpack.c.l.b16 %v616
    %v1775 = vunpack.c.h.b16 %v616
    %v1776 = vunpack.c.l.b16 %v617
    %v1777 = vunpack.c.h.b16 %v617
    %v1778 = vunpack.c.l.b16 %v618
    %v1779 = vunpack.c.h.b16 %v618
    %v1780 = vunpack.c.l.b16 %v619
    %v1781 = vunpack.c.h.b16 %v619
    %v1782 = vunpack.c.l.b16 %v620
    %v1783 = vunpack.c.h.b16 %v620
    %v1784 = vunpack.c.l.b16 %v621
    %v1785 = vunpack.c.h.b16 %v621
    %v1786 = vunpack.c.l.b16 %v622
    %v1787 = vunpack.c.h.b16 %v622
    %v1788 = vunpack.c.l.b16 %v623
    %v1789 = vunpack.c.h.b16 %v623
    %v1790 = vunpack.c.l.b16 %v624
    %v1791 = vunpack.c.h.b16 %v624
    %v1792 = vunpack.c.l.b16 %v625
    %v1793 = vunpack.c.h.b16 %v625
    %v1794 = vunpack.c.l.b16 %v626
    %v1795 = vunpack.c.h.b16 %v626
    %v1796 = vunpack.c.l.b16 %v627
    %v1797 = vunpack.c.h.b16 %v627
    %v1798 = vunpack.c.l.b16 %v628
    %v1799 = vunpack.c.h.b16 %v628
    %v1800 = vunpack.c.l.b16 %v629
    %v1801 = vunpack.c.h.b16 %v629
    %v1802 = vunpack.c.l.b16 %v630
    %v1803 = vunpack.c.h.b16 %v630
    %v1804 = vunpack.c.l.b16 %v631
    %v1805 = vunpack.c.h.b16 %v631
    %v1806 = vunpack.c.l.b16 %v632
    %v1807 = vunpack.c.h.b16 %v632
    %v1808 = vunpack.c.l.b16 %v633
    %v1809 = vunpack.c.h.b16 %v633
    %v1810 = vunpack.c.l.b16 %v634
    %v1811 = vunpack.c.h.b16 %v634
    %v1812 = vunpack.c.l.b16 %v635
    %v1813 = vunpack.c.h.b16 %v635
    %v1814 = vunpack.c.l.b16 %v636
    %v1815 = vunpack.c.h.b16 %v636
    %v1816 = vunpack.c.l.b16 %v637
    %v1817 = vunpack.c.h.b16 %v637
    %v1818 = vunpack.c.l.b16 %v638
    %v1819 = vunpack.c.h.b16 %v638
    %v1820 = vunpack.c.l.b16 %v639
    %v1821 = vunpack.c.h.b16 %v639
    %v1822 = vunpack.c.l.b16 %v640
    %v1823 = vunpack.c.h.b16 %v640
    %v1824 = vunpack.c.l.b16 %v641
    %v1825 = vunpack.c.h.b16 %v641
    %v1826 = vunpack.c.l.b16 %v642
    %v1827 = vunpack.c.h.b16 %v642
    %v1828 = vunpack.c.l.b16 %v643
    %v1829 = vunpack.c.h.b16 %v643
    %v1830 = vunpack.c.l.b16 %v644
    %v1831 = vunpack.c.h.b16 %v644
    %v1832 = vunpack.c.l.b16 %v645
    %v1833 = vunpack.c.h.b16 %v645
    %v1834 = vunpack.c.l.b16 %v646
    %v1835 = vunpack.c.h.b16 %v646
    %v1836 = vunpack.c.l.b16 %v647
    %v1837 = vunpack.c.h.b16 %v647
    %v1838 = vunpack.c.l.b16 %v648
    %v1839 = vunpack.c.h.b16 %v648
    %v1840 = vunpack.c.l.b16 %v649
    %v1841 = vunpack.c.h.b16 %v649
    %v1842 = vunpack.c.l.b16 %v650
    %v1843 = vunpack.c.h.b16 %v650
    %v1844 = vunpack.c.l.b16 %v651
    %v1845 = vunpack.c.h.b16 %v651
    %v1846 = vunpack.c.l.b16 %v652
    %v1847 = vunpack.c.h.b16 %v652
    %v1848 = vunpack.c.l.b16 %v653
    %v1849 = vunpack.c.h.b16 %v653
    %v1850 = vunpack.c.l.b16 %v654
    %v1851 = vunpack.c.h.b16 %v654
    %v1852 = vunpack.c.l.b16 %v655
    %v1853 = vunpack.c.h.b16 %v655
    %v1854 = vunpack.c.l.b16 %v656
    %v1855 = vunpack.c.h.b16 %v656
    %v1856 = vunpack.c.l.b16 %v657
    %v1857 = vunpack.c.h.b16 %v657
    %v1858 = vunpack.c.l.b16 %v658
    %v1859 = vunpack.c.h.b16 %v658
    %v1860 = vunpack.c.l.b16 %v659
    %v1861 = vunpack.c.h.b16 %v659
    %v1862 = vunpack.c.l.b16 %v660
    %v1863 = vunpack.c.h.b16 %v660
    %v1864 = vunpack.c.l.b16 %v661
    %v1865 = vunpack.c.h.b16 %v661
    %v1866 = vunpack.c.l.b16 %v662
    %v1867 = vunpack.c.h.b16 %v662
    %v1868 = vunpack.c.l.b16 %v663
    %v1869 = vunpack.c.h.b16 %v663
    %v1870 = vunpack.c.l.b16 %v664
    %v1871 = vunpack.c.h.b16 %v664
    %v1872 = vunpack.c.l.b16 %v665
    %v1873 = vunpack.c.h.b16 %v665
    %v1874 = vunpack.c.l.b16 %v666
    %v1875 = vunpack.c.h.b16 %v666
    %v1876 = vunpack.c.l.b16 %v667
    %v1877 = vunpack.c.h.b16 %v667
    %v1878 = vunpack.c.l.b16 %v668
    %v1879 = vunpack.c.h.b16 %v668
    %v1880 = vunpack.c.l.b16 %v669
    %v1881 = vunpack.c.h.b16 %v669
    %v1882 = vunpack.c.l.b16 %v670
    %v1883 = vunpack.c.h.b16 %v670
    %v1884 = vunpack.c.l.b16 %v671
    %v1885 = vunpack.c.h.b16 %v671
    %v1886 = vunpack.c.l.b16 %v672
    %v1887 = vunpack.c.h.b16 %v672
    %v1888 = vunpack.c.l.b16 %v673
    %v1889 = vunpack.c.h.b16 %v673
    %v1890 = vunpack.c.l.b16 %v674
    %v1891 = vunpack.c.h.b16 %v674
    %v1892 = vunpack.c.l.b16 %v675
    %v1893 = vunpack.c.h.b16 %v675
    %v1894 = vunpack.c.l.b16 %v676
    %v1895 = vunpack.c.h.b16 %v676
    %v1896 = vunpack.c.l.b16 %v677
    %v1897 = vunpack.c.h.b16 %v677
    %v1898 = vunpack.c.l.b16 %v678
    %v1899 = vunpack.c.h.b16 %v678
    %v1900 = vunpack.c.l.b16 %v679
    %v1901 = vunpack.c.h.b16 %v679
    %v1902 = vunpack.c.l.b16 %v680
    %v1903 = vunpack.c.h.b16 %v680
    %v1904 = vunpack.c.l.b16 %v681
    %v1905 = vunpack.c.h.b16 %v681
    %v1906 = vunpack.c.l.b16 %v682
    %v1907 = vunpack.c.h.b16 %v682
    %v1908 = vunpack.c.l.b16 %v683
    %v1909 = vunpack.c.h.b16 %v683
    %v1910 = vunpack.c.l.b16 %v684
    %v1911 = vunpack.c.h.b16 %v684
    %v1912 = vunpack.c.l.b16 %v685
    %v1913 = vunpack.c.h.b16 %v685
    %v1914 = vunpack.c.l.b16 %v686
    %v1915 = vunpack.c.h.b16 %v686
    %v1916 = vunpack.c.l.b16 %v687
    %v1917 = vunpack.c.h.b16 %v687
    %v1918 = vunpack.c.l.b16 %v688
    %v1919 = vunpack.c.h.b16 %v688
    %v1920 = vunpack.c.l.b16 %v689
    %v1921 = vunpack.c.h.b16 %v689
    %v1922 = vunpack.c.l.b16 %v690
    %v1923 = vunpack.c.h.b16 %v690
    %v1924 = vunpack.c.l.b16 %v691
    %v1925 = vunpack.c.h.b16 %v691
    %v1926 = vunpack.c.l.b16 %v692
    %v1927 = vunpack.c.h.b16 %v692
    %v1928 = vunpack.c.l.b16 %v693
    %v1929 = vunpack.c.h.b16 %v693
    %v1930 = vunpack.c.l.b16 %v694
    %v1931 = vunpack.c.h.b16 %v694
    %v1932 = vunpack.c.l.b16 %v695
    %v1933 = vunpack.c.h.b16 %v695
    %v1934 = vunpack.c.l.b16 %v696
    %v1935 = vunpack.c.h.b16 %v696
    %v1936 = vunpack.c.l.b16 %v697
    %v1937 = vunpack.c.h.b16 %v697
    %v1938 = vunpack.c.l.b16 %v698
    %v1939 = vunpack.c.h.b16 %v698
    %v1940 = vunpack.c.l.b16 %v699
    %v1941 = vunpack.c.h.b16 %v699
    %v1942 = vunpack.c.l.b16 %v700
    %v1943 = vunpack.c.h.b16 %v700
    %v1944 = vunpack.c.l.b16 %v701
    %v1945 = vunpack.c.h.b16 %v701
    %v1946 = vunpack.c.l.b16 %v702
    %v1947 = vunpack.c.h.b16 %v702
    %v1948 = vunpack.c.l.b16 %v703
    %v1949 = vunpack.c.h.b16 %v703
    %v1950 = vunpack.c.l.b16 %v704
    %v1951 = vunpack.c.h.b16 %v704
    %v1952 = vunpack.c.l.b16 %v705
    %v1953 = vunpack.c.h.b16 %v705
    %v1954 = vunpack.c.l.b16 %v706
    %v1955 = vunpack.c.h.b16 %v706
    %v1956 = vunpack.c.l.b16 %v707
    %v1957 = vunpack.c.h.b16 %v707
    %v1958 = vunpack.c.l.b16 %v708
    %v1959 = vunpack.c.h.b16 %v708
    %v1960 = vunpack.c.l.b16 %v709
    %v1961 = vunpack.c.h.b16 %v709
    %v1962 = vunpack.c.l.b16 %v710
    %v1963 = vunpack.c.h.b16 %v710
    %v1964 = vunpack.c.l.b16 %v711
    %v1965 = vunpack.c.h.b16 %v711
    %v1966 = vunpack.c.l.b16 %v712
    %v1967 = vunpack.c.h.b16 %v712
    %v1968 = vunpack.c.l.b16 %v713
    %v1969 = vunpack.c.h.b16 %v713
    %v1970 = vunpack.c.l.b16 %v714
    %v1971 = vunpack.c.h.b16 %v714
    %v1972 = vunpack.c.l.b16 %v715
    %v1973 = vunpack.c.h.b16 %v715
    %v1974 = vunpack.c.l.b16 %v716
    %v1975 = vunpack.c.h.b16 %v716
    %v1976 = vunpack.c.l.b16 %v717
    %v1977 = vunpack.c.h.b16 %v717
    %v1978 = vunpack.c.l.b16 %v718
    %v1979 = vunpack.c.h.b16 %v718
    %v1980 = vunpack.c.l.b16 %v719
    %v1981 = vunpack.c.h.b16 %v719
    %v1982 = vunpack.c.l.b16 %v720
    %v1983 = vunpack.c.h.b16 %v720
    %v1984 = vunpack.c.l.b16 %v721
    %v1985 = vunpack.c.h.b16 %v721
    %v1986 = vunpack.c.l.b16 %v722
    %v1987 = vunpack.c.h.b16 %v722
    %v1988 = vunpack.c.l.b16 %v723
    %v1989 = vunpack.c.h.b16 %v723
    %v1990 = vunpack.c.l.b16 %v724
    %v1991 = vunpack.c.h.b16 %v724
    %v1992 = vunpack.c.l.b16 %v725
    %v1993 = vunpack.c.h.b16 %v725
    %v1994 = vunpack.c.l.b16 %v726
    %v1995 = vunpack.c.h.b16 %v726
    %v1996 = vunpack.c.l.b16 %v727
    %v1997 = vunpack.c.h.b16 %v727
    %v1998 = vunpack.c.l.b16 %v728
    %v1999 = vunpack.c.h.b16 %v728
    %v2000 = vunpack.c.l.b16 %v729
    %v2001 = vunpack.c.h.b16 %v729
    %v2002 = vunpack.c.l.b16 %v730
    %v2003 = vunpack.c.h.b16 %v730
    %v2004 = vunpack.c.l.b16 %v731
    %v2005 = vunpack.c.h.b16 %v731
    %v2006 = vunpack.c.l.b16 %v732
    %v2007 = vunpack.c.h.b16 %v732
    %v2008 = vunpack.c.l.b16 %v733
    %v2009 = vunpack.c.h.b16 %v733
    %v2010 = vunpack.c.l.b16 %v734
    %v2011 = vunpack.c.h.b16 %v734
    %v2012 = vunpack.c.l.b16 %v735
    %v2013 = vunpack.c.h.b16 %v735
    %v2014 = vunpack.c.l.b16 %v736
    %v2015 = vunpack.c.h.b16 %v736
    %v2016 = vunpack.c.l.b16 %v737
    %v2017 = vunpack.c.h.b16 %v737
    %v2018 = vunpack.c.l.b16 %v738
    %v2019 = vunpack.c.h.b16 %v738
    %v2020 = vunpack.c.l.b16 %v739
    %v2021 = vunpack.c.h.b16 %v739
    %v2022 = vunpack.c.l.b16 %v740
    %v2023 = vunpack.c.h.b16 %v740
    %v2024 = vunpack.c.l.b16 %v741
    %v2025 = vunpack.c.h.b16 %v741
    %v2026 = vunpack.c.l.b16 %v742
    %v2027 = vunpack.c.h.b16 %v742
    %v2028 = vunpack.c.l.b16 %v743
    %v2029 = vunpack.c.h.b16 %v743
    %v2030 = vunpack.c.l.b16 %v744
    %v2031 = vunpack.c.h.b16 %v744
    %v2032 = vunpack.c.l.b16 %v745
    %v2033 = vunpack.c.h.b16 %v745
    %v2034 = vunpack.c.l.b16 %v746
    %v2035 = vunpack.c.h.b16 %v746
    %v2036 = vunpack.c.l.b16 %v747
    %v2037 = vunpack.c.h.b16 %v747
    %v2038 = vunpack.c.l.b16 %v748
    %v2039 = vunpack.c.h.b16 %v748
    %v2040 = vunpack.c.l.b16 %v749
    %v2041 = vunpack.c.h.b16 %v749
    %v2042 = vunpack.c.l.b16 %v750
    %v2043 = vunpack.c.h.b16 %v750
    %v2044 = vunpack.c.l.b16 %v751
    %v2045 = vunpack.c.h.b16 %v751
    %v2046 = vunpack.c.l.b16 %v752
    %v2047 = vunpack.c.h.b16 %v752
    %v2048 = vunpack.c.l.b16 %v753
    %v2049 = vunpack.c.h.b16 %v753
    %v2050 = vunpack.c.l.b16 %v754
    %v2051 = vunpack.c.h.b16 %v754
    %v2052 = vunpack.c.l.b16 %v755
    %v2053 = vunpack.c.h.b16 %v755
    %v2054 = vunpack.c.l.b16 %v756
    %v2055 = vunpack.c.h.b16 %v756
    %v2056 = vunpack.c.l.b16 %v757
    %v2057 = vunpack.c.h.b16 %v757
    %v2058 = vunpack.c.l.b16 %v758
    %v2059 = vunpack.c.h.b16 %v758
    %v2060 = vunpack.c.l.b16 %v759
    %v2061 = vunpack.c.h.b16 %v759
    %v2062 = vunpack.c.l.b16 %v760
    %v2063 = vunpack.c.h.b16 %v760
    %v2064 = vunpack.c.l.b16 %v761
    %v2065 = vunpack.c.h.b16 %v761
    %v2066 = vunpack.c.l.b16 %v762
    %v2067 = vunpack.c.h.b16 %v762
    %v2068 = vunpack.c.l.b16 %v763
    %v2069 = vunpack.c.h.b16 %v763
    %v2070 = vunpack.c.l.b16 %v764
    %v2071 = vunpack.c.h.b16 %v764
    %v2072 = vunpack.c.l.b16 %v765
    %v2073 = vunpack.c.h.b16 %v765
    %v2074 = vunpack.c.l.b16 %v766
    %v2075 = vunpack.c.h.b16 %v766
    %v2076 = vunpack.c.l.b16 %v767
    %v2077 = vunpack.c.h.b16 %v767
    %v2078 = vunpack.c.l.b16 %v768
    %v2079 = vunpack.c.h.b16 %v768
    %v2080 = vunpack.c.l.b16 %v769
    %v2081 = vunpack.c.h.b16 %v769
    %v2082 = vunpack.c.l.b16 %v770
    %v2083 = vunpack.c.h.b16 %v770
    %v2084 = vunpack.c.l.b16 %v771
    %v2085 = vunpack.c.h.b16 %v771
    %v2086 = vunpack.c.l.b16 %v772
    %v2087 = vunpack.c.h.b16 %v772
    %v2088 = vunpack.c.l.b16 %v773
    %v2089 = vunpack.c.h.b16 %v773
    %v2090 = vunpack.c.l.b16 %v774
    %v2091 = vunpack.c.h.b16 %v774
    %v2092 = vunpack.c.l.b16 %v775
    %v2093 = vunpack.c.h.b16 %v775
    %v2094 = vunpack.c.l.b16 %v776
    %v2095 = vunpack.c.h.b16 %v776
    %v2096 = vunpack.c.l.b16 %v777
    %v2097 = vunpack.c.h.b16 %v777
    %v2098 = vunpack.c.l.b16 %v778
    %v2099 = vunpack.c.h.b16 %v778
    %v2100 = vunpack.c.l.b16 %v779
    %v2101 = vunpack.c.h.b16 %v779
    %v2102 = vunpack.c.l.b16 %v780
    %v2103 = vunpack.c.h.b16 %v780
    %v2104 = vunpack.c.l.b16 %v781
    %v2105 = vunpack.c.h.b16 %v781
    %v2106 = vunpack.c.l.b16 %v782
    %v2107 = vunpack.c.h.b16 %v782
    %v2108 = vunpack.c.l.b16 %v783
    %v2109 = vunpack.c.h.b16 %v783
    %v2110 = vunpack.c.l.b16 %v784
    %v2111 = vunpack.c.h.b16 %v784
    %v2112 = vunpack.c.l.b16 %v785
    %v2113 = vunpack.c.h.b16 %v785
    %v2114 = vunpack.c.l.b16 %v786
    %v2115 = vunpack.c.h.b16 %v786
    %v2116 = vunpack.c.l.b16 %v787
    %v2117 = vunpack.c.h.b16 %v787
    %v2118 = vunpack.c.l.b16 %v788
    %v2119 = vunpack.c.h.b16 %v788
    %v2120 = vunpack.c.l.b16 %v789
    %v2121 = vunpack.c.h.b16 %v789
    %v2122 = vunpack.c.l.b16 %v790
    %v2123 = vunpack.c.h.b16 %v790
    %v2124 = vunpack.c.l.b16 %v791
    %v2125 = vunpack.c.h.b16 %v791
    %v2126 = vunpack.c.l.b16 %v792
    %v2127 = vunpack.c.h.b16 %v792
    %v2128 = vunpack.c.l.b16 %v793
    %v2129 = vunpack.c.h.b16 %v793
    %v2130 = vunpack.c.l.b16 %v794
    %v2131 = vunpack.c.h.b16 %v794
    %v2132 = vunpack.c.l.b16 %v795
    %v2133 = vunpack.c.h.b16 %v795
    %v2134 = vunpack.c.l.b16 %v796
    %v2135 = vunpack.c.h.b16 %v796
    %v2136 = vunpack.c.l.b16 %v797
    %v2137 = vunpack.c.h.b16 %v797
    %v2138 = vunpack.c.l.b16 %v798
    %v2139 = vunpack.c.h.b16 %v798
    %v2140 = vunpack.c.l.b16 %v799
    %v2141 = vunpack.c.h.b16 %v799
    %v2142 = vunpack.c.l.b16 %v800
    %v2143 = vunpack.c.h.b16 %v800
    %v2144 = vunpack.c.l.b16 %v801
    %v2145 = vunpack.c.h.b16 %v801
    %v2146 = vunpack.c.l.b16 %v802
    %v2147 = vunpack.c.h.b16 %v802
    %v2148 = vunpack.c.l.b16 %v803
    %v2149 = vunpack.c.h.b16 %v803
    %v2150 = vunpack.c.l.b16 %v804
    %v2151 = vunpack.c.h.b16 %v804
    %v2152 = vunpack.c.l.b16 %v805
    %v2153 = vunpack.c.h.b16 %v805
    %v2154 = vunpack.c.l.b16 %v806
    %v2155 = vunpack.c.h.b16 %v806
    %v2156 = vunpack.c.l.b16 %v807
    %v2157 = vunpack.c.h.b16 %v807
    %v2158 = vunpack.c.l.b16 %v808
    %v2159 = vunpack.c.h.b16 %v808
    %v2160 = vunpack.c.l.b16 %v809
    %v2161 = vunpack.c.h.b16 %v809
    %v2162 = vunpack.c.l.b16 %v810
    %v2163 = vunpack.c.h.b16 %v810
    %v2164 = vunpack.c.l.b16 %v811
    %v2165 = vunpack.c.h.b16 %v811
    %v2166 = vunpack.c.l.b16 %v812
    %v2167 = vunpack.c.h.b16 %v812
    %v2168 = vunpack.c.l.b16 %v813
    %v2169 = vunpack.c.h.b16 %v813
    %v2170 = vunpack.c.l.b16 %v814
    %v2171 = vunpack.c.h.b16 %v814
    %v2172 = vunpack.c.l.b16 %v815
    %v2173 = vunpack.c.h.b16 %v815
    %v2174 = vunpack.c.l.b16 %v816
    %v2175 = vunpack.c.h.b16 %v816
    %v2176 = vunpack.c.l.b16 %v817
    %v2177 = vunpack.c.h.b16 %v817
    %v2178 = vunpack.c.l.b16 %v818
    %v2179 = vunpack.c.h.b16 %v818
    %v2180 = vunpack.c.l.b16 %v819
    %v2181 = vunpack.c.h.b16 %v819
    %v2182 = vunpack.c.l.b16 %v820
    %v2183 = vunpack.c.h.b16 %v820
    %v2184 = vunpack.c.l.b16 %v821
    %v2185 = vunpack.c.h.b16 %v821
    %v2186 = vunpack.c.l.b16 %v822
    %v2187 = vunpack.c.h.b16 %v822
    %v2188 = vunpack.c.l.b16 %v823
    %v2189 = vunpack.c.h.b16 %v823
    %v2190 = vunpack.c.l.b16 %v824
    %v2191 = vunpack.c.h.b16 %v824
    %v2192 = vunpack.c.l.b16 %v825
    %v2193 = vunpack.c.h.b16 %v825
    %v2194 = vunpack.c.l.b16 %v826
    %v2195 = vunpack.c.h.b16 %v826
    %v2196 = vunpack.c.l.b16 %v827
    %v2197 = vunpack.c.h.b16 %v827
    %v2198 = vunpack.c.l.b16 %v828
    %v2199 = vunpack.c.h.b16 %v828
    %v2200 = vunpack.c.l.b16 %v829
    %v2201 = vunpack.c.h.b16 %v829
    %v2202 = vunpack.c.l.b16 %v830
    %v2203 = vunpack.c.h.b16 %v830
    %v2204 = vunpack.c.l.b16 %v831
    %v2205 = vunpack.c.h.b16 %v831
    %v2206 = vunpack.c.l.b16 %v832
    %v2207 = vunpack.c.h.b16 %v832
    %v2208 = vunpack.c.l.b16 %v833
    %v2209 = vunpack.c.h.b16 %v833
    %v2210 = vunpack.c.l.b16 %v834
    %v2211 = vunpack.c.h.b16 %v834
    %v2212 = vunpack.c.l.b16 %v835
    %v2213 = vunpack.c.h.b16 %v835
    %v2214 = vunpack.c.l.b16 %v836
    %v2215 = vunpack.c.h.b16 %v836
    %v2216 = vunpack.c.l.b16 %v837
    %v2217 = vunpack.c.h.b16 %v837
    %v2218 = vunpack.c.l.b16 %v838
    %v2219 = vunpack.c.h.b16 %v838
    %v2220 = vunpack.c.l.b16 %v839
    %v2221 = vunpack.c.h.b16 %v839
    %v2222 = vunpack.c.l.b16 %v840
    %v2223 = vunpack.c.h.b16 %v840
    %v2224 = vunpack.c.l.b16 %v841
    %v2225 = vunpack.c.h.b16 %v841
    %v2226 = vunpack.c.l.b16 %v842
    %v2227 = vunpack.c.h.b16 %v842
    %v2228 = vunpack.c.l.b16 %v843
    %v2229 = vunpack.c.h.b16 %v843
    %v2230 = vunpack.c.l.b16 %v844
    %v2231 = vunpack.c.h.b16 %v844
    %v2232 = vunpack.c.l.b16 %v845
    %v2233 = vunpack.c.h.b16 %v845
    %v2234 = vunpack.c.l.b16 %v846
    %v2235 = vunpack.c.h.b16 %v846
    %v2236 = vunpack.c.l.b16 %v847
    %v2237 = vunpack.c.h.b16 %v847
    %v2238 = vunpack.c.l.b16 %v848
    %v2239 = vunpack.c.h.b16 %v848
    %v2240 = vunpack.c.l.b16 %v849
    %v2241 = vunpack.c.h.b16 %v849
    %v2242 = vunpack.c.l.b16 %v850
    %v2243 = vunpack.c.h.b16 %v850
    %v2244 = vunpack.c.l.b16 %v851
    %v2245 = vunpack.c.h.b16 %v851
    %v2246 = vunpack.c.l.b16 %v852
    %v2247 = vunpack.c.h.b16 %v852
    %v2248 = vunpack.c.l.b16 %v853
    %v2249 = vunpack.c.h.b16 %v853
    %v2250 = vunpack.c.l.b16 %v854
    %v2251 = vunpack.c.h.b16 %v854
    %v2252 = vunpack.c.l.b16 %v855
    %v2253 = vunpack.c.h.b16 %v855
    %v2254 = vunpack.c.l.b16 %v856
    %v2255 = vunpack.c.h.b16 %v856
    %v2256 = vunpack.c.l.b16 %v857
    %v2257 = vunpack.c.h.b16 %v857
    %v2258 = vunpack.c.l.b16 %v858
    %v2259 = vunpack.c.h.b16 %v858
    %v2260 = vunpack.c.l.b16 %v859
    %v2261 = vunpack.c.h.b16 %v859
    %v2262 = vunpack.c.l.b16 %v860
    %v2263 = vunpack.c.h.b16 %v860
    %v2264 = vunpack.c.l.b16 %v861
    %v2265 = vunpack.c.h.b16 %v861
    %v2266 = vunpack.c.l.b16 %v862
    %v2267 = vunpack.c.h.b16 %v862
    %v2268 = vunpack.c.l.b16 %v863
    %v2269 = vunpack.c.h.b16 %v863
    %v2270 = vunpack.c.l.b16 %v864
    %v2271 = vunpack.c.h.b16 %v864
    %v2272 = vunpack.c.l.b16 %v865
    %v2273 = vunpack.c.h.b16 %v865
    %v2274 = vunpack.c.l.b16 %v866
    %v2275 = vunpack.c.h.b16 %v866
    %v2276 = vunpack.c.l.b16 %v867
    %v2277 = vunpack.c.h.b16 %v867
    %v2278 = vunpack.c.l.b16 %v868
    %v2279 = vunpack.c.h.b16 %v868
    %v2280 = vunpack.c.l.b16 %v869
    %v2281 = vunpack.c.h.b16 %v869
    %v2282 = vunpack.c.l.b16 %v870
    %v2283 = vunpack.c.h.b16 %v870
    %v2284 = vunpack.c.l.b16 %v871
    %v2285 = vunpack.c.h.b16 %v871
    %v2286 = vunpack.c.l.b16 %v872
    %v2287 = vunpack.c.h.b16 %v872
    %v2288 = vunpack.c.l.b16 %v873
    %v2289 = vunpack.c.h.b16 %v873
    %v2290 = vunpack.c.l.b16 %v874
    %v2291 = vunpack.c.h.b16 %v874
    %v2292 = vunpack.c.l.b16 %v875
    %v2293 = vunpack.c.h.b16 %v875
    %v2294 = vunpack.c.l.b16 %v876
    %v2295 = vunpack.c.h.b16 %v876
    %v2296 = vunpack.c.l.b16 %v877
    %v2297 = vunpack.c.h.b16 %v877
    %v2298 = vunpack.c.l.b16 %v878
    %v2299 = vunpack.c.h.b16 %v878
    %v2300 = vunpack.c.l.b16 %v879
    %v2301 = vunpack.c.h.b16 %v879
    %v2302 = vunpack.c.l.b16 %v880
    %v2303 = vunpack.c.h.b16 %v880
    %v2304 = vunpack.c.l.b16 %v881
    %v2305 = vunpack.c.h.b16 %v881
    %v2306 = vunpack.c.l.b16 %v882
    %v2307 = vunpack.c.h.b16 %v882
    %v2308 = vunpack.c.l.b16 %v883
    %v2309 = vunpack.c.h.b16 %v883
    %v2310 = vunpack.c.l.b16 %v884
    %v2311 = vunpack.c.h.b16 %v884
    %v2312 = vunpack.c.l.b16 %v885
    %v2313 = vunpack.c.h.b16 %v885
    %v2314 = vunpack.c.l.b16 %v886
    %v2315 = vunpack.c.h.b16 %v886
    %v2316 = vunpack.c.l.b16 %v887
    %v2317 = vunpack.c.h.b16 %v887
    %v2318 = vunpack.c.l.b16 %v888
    %v2319 = vunpack.c.h.b16 %v888
    %v2320 = vunpack.c.l.b16 %v889
    %v2321 = vunpack.c.h.b16 %v889
    %v2322 = vunpack.c.l.b16 %v890
    %v2323 = vunpack.c.h.b16 %v890
    %v2324 = vunpack.c.l.b16 %v891
    %v2325 = vunpack.c.h.b16 %v891
    %v2326 = vunpack.c.l.b16 %v892
    %v2327 = vunpack.c.h.b16 %v892
    %v2328 = vunpack.c.l.b16 %v893
    %v2329 = vunpack.c.h.b16 %v893
    %v2330 = vunpack.c.l.b16 %v894
    %v2331 = vunpack.c.h.b16 %v894
    %v2332 = vunpack.c.l.b16 %v895
    %v2333 = vunpack.c.h.b16 %v895
    %v2334 = vunpack.c.l.b16 %v896
    %v2335 = vunpack.c.h.b16 %v896
    %v2336 = vunpack.c.l.b16 %v897
    %v2337 = vunpack.c.h.b16 %v897
    %v2338 = vunpack.c.l.b16 %v898
    %v2339 = vunpack.c.h.b16 %v898
    %v2340 = vunpack.c.l.b16 %v899
    %v2341 = vunpack.c.h.b16 %v899
    %v2342 = vunpack.c.l.b16 %v900
    %v2343 = vunpack.c.h.b16 %v900
    %v2344 = vunpack.c.l.b16 %v901
    %v2345 = vunpack.c.h.b16 %v901
    %v2346 = vunpack.c.l.b16 %v902
    %v2347 = vunpack.c.h.b16 %v902
    %v2348 = vunpack.c.l.b16 %v903
    %v2349 = vunpack.c.h.b16 %v903
    %v2350 = vunpack.c.l.b16 %v904
    %v2351 = vunpack.c.h.b16 %v904
    %v2352 = vunpack.c.l.b16 %v905
    %v2353 = vunpack.c.h.b16 %v905
    %v2354 = vunpack.c.l.b16 %v906
    %v2355 = vunpack.c.h.b16 %v906
    %v2356 = vunpack.c.l.b16 %v907
    %v2357 = vunpack.c.h.b16 %v907
    %v2358 = vunpack.c.l.b16 %v908
    %v2359 = vunpack.c.h.b16 %v908
    %v2360 = vunpack.c.l.b16 %v909
    %v2361 = vunpack.c.h.b16 %v909
    %v2362 = vunpack.c.l.b16 %v910
    %v2363 = vunpack.c.h.b16 %v910
    %v2364 = vunpack.c.l.b16 %v911
    %v2365 = vunpack.c.h.b16 %v911
    %v2366 = vunpack.c.l.b16 %v912
    %v2367 = vunpack.c.h.b16 %v912
    %v2368 = vunpack.c.l.b16 %v913
    %v2369 = vunpack.c.h.b16 %v913
    %v2370 = vunpack.c.l.b16 %v914
    %v2371 = vunpack.c.h.b16 %v914
    %v2372 = vunpack.c.l.b16 %v915
    %v2373 = vunpack.c.h.b16 %v915
    %v2374 = vunpack.c.l.b16 %v916
    %v2375 = vunpack.c.h.b16 %v916
    %v2376 = vunpack.c.l.b16 %v917
    %v2377 = vunpack.c.h.b16 %v917
    %v2378 = vunpack.c.l.b16 %v918
    %v2379 = vunpack.c.h.b16 %v918
    %v2380 = vunpack.c.l.b16 %v919
    %v2381 = vunpack.c.h.b16 %v919
    %v2382 = vunpack.c.l.b16 %v920
    %v2383 = vunpack.c.h.b16 %v920
    %v2384 = vunpack.c.l.b16 %v921
    %v2385 = vunpack.c.h.b16 %v921
    %v2386 = vunpack.c.l.b16 %v922
    %v2387 = vunpack.c.h.b16 %v922
    %v2388 = vunpack.c.l.b16 %v923
    %v2389 = vunpack.c.h.b16 %v923
    %v2390 = vunpack.c.l.b16 %v924
    %v2391 = vunpack.c.h.b16 %v924
    %v2392 = vunpack.c.l.b16 %v925
    %v2393 = vunpack.c.h.b16 %v925
    %v2394 = vunpack.c.l.b16 %v926
    %v2395 = vunpack.c.h.b16 %v926
    %v2396 = vunpack.c.l.b16 %v927
    %v2397 = vunpack.c.h.b16 %v927
    %v2398 = vunpack.c.l.b16 %v928
    %v2399 = vunpack.c.h.b16 %v928
    %v2400 = vunpack.c.l.b16 %v929
    %v2401 = vunpack.c.h.b16 %v929
    %v2402 = vunpack.c.l.b16 %v930
    %v2403 = vunpack.c.h.b16 %v930
    %v2404 = vunpack.c.l.b16 %v931
    %v2405 = vunpack.c.h.b16 %v931
    %v2406 = vunpack.c.l.b16 %v932
    %v2407 = vunpack.c.h.b16 %v932
    %v2408 = vunpack.c.l.b16 %v933
    %v2409 = vunpack.c.h.b16 %v933
    %v2410 = vunpack.c.l.b16 %v934
    %v2411 = vunpack.c.h.b16 %v934
    %v2412 = vunpack.c.l.b16 %v935
    %v2413 = vunpack.c.h.b16 %v935
    %v2414 = vunpack.c.l.b16 %v936
    %v2415 = vunpack.c.h.b16 %v936
    %v2416 = vunpack.c.l.b16 %v937
    %v2417 = vunpack.c.h.b16 %v937
    %v2418 = vunpack.c.l.b16 %v938
    %v2419 = vunpack.c.h.b16 %v938
    %v2420 = vunpack.c.l.b16 %v939
    %v2421 = vunpack.c.h.b16 %v939
    %v2422 = vunpack.c.l.b16 %v940
    %v2423 = vunpack.c.h.b16 %v940
    %v2424 = vunpack.c.l.b16 %v941
    %v2425 = vunpack.c.h.b16 %v941
    %v2426 = vunpack.c.l.b16 %v942
    %v2427 = vunpack.c.h.b16 %v942
    %v2428 = vunpack.c.l.b16 %v943
    %v2429 = vunpack.c.h.b16 %v943
    %v2430 = vpack.c.b16 %v1482, %v1470
    %v2431 = vpack.c.b16 %v1483, %v1471
    %v2432 = vpack.c.b16 %v1484, %v1472
    %v2433 = vpack.c.b16 %v1485, %v1473
    %v2434 = vpack.c.b16 %v1486, %v1474
    %v2435 = vpack.c.b16 %v1487, %v1475
    %v2436 = vpack.c.b16 %v1488, %v1476
    %v2437 = vpack.c.b16 %v1489, %v1477
    %v2438 = vpack.c.b16 %v1490, %v1478
    %v2439 = vpack.c.b16 %v1491, %v1479
    %v2440 = vpack.c.b16 %v1492, %v1480
    %v2441 = vpack.c.b16 %v1493, %v1481
    %v2442 = vpack.c.b16 %v1506, %v1494
    %v2443 = vpack.c.b16 %v1507, %v1495
    %v2444 = vpack.c.b16 %v1508, %v1496
    %v2445 = vpack.c.b16 %v1509, %v1497
    %v2446 = vpack.c.b16 %v1510, %v1498
    %v2447 = vpack.c.b16 %v1511, %v1499
    %v2448 = vpack.c.b16 %v1512, %v1500
    %v2449 = vpack.c.b16 %v1513, %v1501
    %v2450 = vpack.c.b16 %v1514, %v1502
    %v2451 = vpack.c.b16 %v1515, %v1503
    %v2452 = vpack.c.b16 %v1516, %v1504
    %v2453 = vpack.c.b16 %v1517, %v1505
    %v2454 = vpack.c.b16 %v1530, %v1518
    %v2455 = vpack.c.b16 %v1531, %v1519
    %v2456 = vpack.c.b16 %v1532, %v1520
    %v2457 = vpack.c.b16 %v1533, %v1521
    %v2458 = vpack.c.b16 %v1534, %v1522
    %v2459 = vpack.c.b16 %v1535, %v1523
    %v2460 = vpack.c.b16 %v1536, %v1524
    %v2461 = vpack.c.b16 %v1537, %v1525
    %v2462 = vpack.c.b16 %v1538, %v1526
    %v2463 = vpack.c.b16 %v1539, %v1527
    %v2464 = vpack.c.b16 %v1540, %v1528
    %v2465 = vpack.c.b16 %v1541, %v1529
    %v2466 = vpack.c.b16 %v1554, %v1542
    %v2467 = vpack.c.b16 %v1555, %v1543
    %v2468 = vpack.c.b16 %v1556, %v1544
    %v2469 = vpack.c.b16 %v1557, %v1545
    %v2470 = vpack.c.b16 %v1558, %v1546
    %v2471 = vpack.c.b16 %v1559, %v1547
    %v2472 = vpack.c.b16 %v1560, %v1548
    %v2473 = vpack.c.b16 %v1561, %v1549
    %v2474 = vpack.c.b16 %v1562, %v1550
    %v2475 = vpack.c.b16 %v1563, %v1551
    %v2476 = vpack.c.b16 %v1564, %v1552
    %v2477 = vpack.c.b16 %v1565, %v1553
    %v2478 = vpack.c.b16 %v1578, %v1566
    %v2479 = vpack.c.b16 %v1579, %v1567
    %v2480 = vpack.c.b16 %v1580, %v1568
    %v2481 = vpack.c.b16 %v1581, %v1569
    %v2482 = vpack.c.b16 %v1582, %v1570
    %v2483 = vpack.c.b16 %v1583, %v1571
    %v2484 = vpack.c.b16 %v1584, %v1572
    %v2485 = vpack.c.b16 %v1585, %v1573
    %v2486 = vpack.c.b16 %v1586, %v1574
    %v2487 = vpack.c.b16 %v1587, %v1575
    %v2488 = vpack.c.b16 %v1588, %v1576
    %v2489 = vpack.c.b16 %v1589, %v1577
    %v2490 = vpack.c.b16 %v1602, %v1590
    %v2491 = vpack.c.b16 %v1603, %v1591
    %v2492 = vpack.c.b16 %v1604, %v1592
    %v2493 = vpack.c.b16 %v1605, %v1593
    %v2494 = vpack.c.b16 %v1606, %v1594
    %v2495 = vpack.c.b16 %v1607, %v1595
    %v2496 = vpack.c.b16 %v1608, %v1596
    %v2497 = vpack.c.b16 %v1609, %v1597
    %v2498 = vpack.c.b16 %v1610, %v1598
    %v2499 = vpack.c.b16 %v1611, %v1599
    %v2500 = vpack.c.b16 %v1612, %v1600
    %v2501 = vpack.c.b16 %v1613, %v1601
    %v2502 = vpack.c.b16 %v1626, %v1614
    %v2503 = vpack.c.b16 %v1627, %v1615
    %v2504 = vpack.c.b16 %v1628, %v1616
    %v2505 = vpack.c.b16 %v1629, %v1617
    %v2506 = vpack.c.b16 %v1630, %v1618
    %v2507 = vpack.c.b16 %v1631, %v1619
    %v2508 = vpack.c.b16 %v1632, %v1620
    %v2509 = vpack.c.b16 %v1633, %v1621
    %v2510 = vpack.c.b16 %v1634, %v1622
    %v2511 = vpack.c.b16 %v1635, %v1623
    %v2512 = vpack.c.b16 %v1636, %v1624
    %v2513 = vpack.c.b16 %v1637, %v1625
    %v2514 = vpack.c.b16 %v1650, %v1638
    %v2515 = vpack.c.b16 %v1651, %v1639
    %v2516 = vpack.c.b16 %v1652, %v1640
    %v2517 = vpack.c.b16 %v1653, %v1641
    %v2518 = vpack.c.b16 %v1654, %v1642
    %v2519 = vpack.c.b16 %v1655, %v1643
    %v2520 = vpack.c.b16 %v1656, %v1644
    %v2521 = vpack.c.b16 %v1657, %v1645
    %v2522 = vpack.c.b16 %v1658, %v1646
    %v2523 = vpack.c.b16 %v1659, %v1647
    %v2524 = vpack.c.b16 %v1660, %v1648
    %v2525 = vpack.c.b16 %v1661, %v1649
    %v2526 = vpack.c.b16 %v1674, %v1662
    %v2527 = vpack.c.b16 %v1675, %v1663
    %v2528 = vpack.c.b16 %v1676, %v1664
    %v2529 = vpack.c.b16 %v1677, %v1665
    %v2530 = vpack.c.b16 %v1678, %v1666
    %v2531 = vpack.c.b16 %v1679, %v1667
    %v2532 = vpack.c.b16 %v1680, %v1668
    %v2533 = vpack.c.b16 %v1681, %v1669
    %v2534 = vpack.c.b16 %v1682, %v1670
    %v2535 = vpack.c.b16 %v1683, %v1671
    %v2536 = vpack.c.b16 %v1684, %v1672
    %v2537 = vpack.c.b16 %v1685, %v1673
    %v2538 = vpack.c.b16 %v1698, %v1686
    %v2539 = vpack.c.b16 %v1699, %v1687
    %v2540 = vpack.c.b16 %v1700, %v1688
    %v2541 = vpack.c.b16 %v1701, %v1689
    %v2542 = vpack.c.b16 %v1702, %v1690
    %v2543 = vpack.c.b16 %v1703, %v1691
    %v2544 = vpack.c.b16 %v1704, %v1692
    %v2545 = vpack.c.b16 %v1705, %v1693
    %v2546 = vpack.c.b16 %v1706, %v1694
    %v2547 = vpack.c.b16 %v1707, %v1695
    %v2548 = vpack.c.b16 %v1708, %v1696
    %v2549 = vpack.c.b16 %v1709, %v1697
    %v2550 = vpack.c.b16 %v1722, %v1710
    %v2551 = vpack.c.b16 %v1723, %v1711
    %v2552 = vpack.c.b16 %v1724, %v1712
    %v2553 = vpack.c.b16 %v1725, %v1713
    %v2554 = vpack.c.b16 %v1726, %v1714
    %v2555 = vpack.c.b16 %v1727, %v1715
    %v2556 = vpack.c.b16 %v1728, %v1716
    %v2557 = vpack.c.b16 %v1729, %v1717
    %v2558 = vpack.c.b16 %v1730, %v1718
    %v2559 = vpack.c.b16 %v1731, %v1719
    %v2560 = vpack.c.b16 %v1732, %v1720
    %v2561 = vpack.c.b16 %v1733, %v1721
    %v2562 = vpack.c.b16 %v1746, %v1734
    %v2563 = vpack.c.b16 %v1747, %v1735
    %v2564 = vpack.c.b16 %v1748, %v1736
    %v2565 = vpack.c.b16 %v1749, %v1737
    %v2566 = vpack.c.b16 %v1750, %v1738
    %v2567 = vpack.c.b16 %v1751, %v1739
    %v2568 = vpack.c.b16 %v1752, %v1740
    %v2569 = vpack.c.b16 %v1753, %v1741
    %v2570 = vpack.c.b16 %v1754, %v1742
    %v2571 = vpack.c.b16 %v1755, %v1743
    %v2572 = vpack.c.b16 %v1756, %v1744
    %v2573 = vpack.c.b16 %v1757, %v1745
    %v2574 = vpack.c.b16 %v1770, %v1758
    %v2575 = vpack.c.b16 %v1771, %v1759
    %v2576 = vpack.c.b16 %v1772, %v1760
    %v2577 = vpack.c.b16 %v1773, %v1761
    %v2578 = vpack.c.b16 %v1774, %v1762
    %v2579 = vpack.c.b16 %v1775, %v1763
    %v2580 = vpack.c.b16 %v1776, %v1764
    %v2581 = vpack.c.b16 %v1777, %v1765
    %v2582 = vpack.c.b16 %v1778, %v1766
    %v2583 = vpack.c.b16 %v1779, %v1767
    %v2584 = vpack.c.b16 %v1780, %v1768
    %v2585 = vpack.c.b16 %v1781, %v1769
    %v2586 = vpack.c.b16 %v1794, %v1782
    %v2587 = vpack.c.b16 %v1795, %v1783
    %v2588 = vpack.c.b16 %v1796, %v1784
    %v2589 = vpack.c.b16 %v1797, %v1785
    %v2590 = vpack.c.b16 %v1798, %v1786
    %v2591 = vpack.c.b16 %v1799, %v1787
    %v2592 = vpack.c.b16 %v1800, %v1788
    %v2593 = vpack.c.b16 %v1801, %v1789
    %v2594 = vpack.c.b16 %v1802, %v1790
    %v2595 = vpack.c.b16 %v1803, %v1791
    %v2596 = vpack.c.b16 %v1804, %v1792
    %v2597 = vpack.c.b16 %v1805, %v1793
    %v2598 = vpack.c.b16 %v1818, %v1806
    %v2599 = vpack.c.b16 %v1819, %v1807
    %v2600 = vpack.c.b16 %v1820, %v1808
    %v2601 = vpack.c.b16 %v1821, %v1809
    %v2602 = vpack.c.b16 %v1822, %v1810
    %v2603 = vpack.c.b16 %v1823, %v1811
    %v2604 = vpack.c.b16 %v1824, %v1812
    %v2605 = vpack.c.b16 %v1825, %v1813
    %v2606 = vpack.c.b16 %v1826, %v1814
    %v2607 = vpack.c.b16 %v1827, %v1815
    %v2608 = vpack.c.b16 %v1828, %v1816
    %v2609 = vpack.c.b16 %v1829, %v1817
    %v2610 = vpack.c.b16 %v1842, %v1830
    %v2611 = vpack.c.b16 %v1843, %v1831
    %v2612 = vpack.c.b16 %v1844, %v1832
    %v2613 = vpack.c.b16 %v1845, %v1833
    %v2614 = vpack.c.b16 %v1846, %v1834
    %v2615 = vpack.c.b16 %v1847, %v1835
    %v2616 = vpack.c.b16 %v1848, %v1836
    %v2617 = vpack.c.b16 %v1849, %v1837
    %v2618 = vpack.c.b16 %v1850, %v1838
    %v2619 = vpack.c.b16 %v1851, %v1839
    %v2620 = vpack.c.b16 %v1852, %v1840
    %v2621 = vpack.c.b16 %v1853, %v1841
    %v2622 = vpack.c.b16 %v1866, %v1854
    %v2623 = vpack.c.b16 %v1867, %v1855
    %v2624 = vpack.c.b16 %v1868, %v1856
    %v2625 = vpack.c.b16 %v1869, %v1857
    %v2626 = vpack.c.b16 %v1870, %v1858
    %v2627 = vpack.c.b16 %v1871, %v1859
    %v2628 = vpack.c.b16 %v1872, %v1860
    %v2629 = vpack.c.b16 %v1873, %v1861
    %v2630 = vpack.c.b16 %v1874, %v1862
    %v2631 = vpack.c.b16 %v1875, %v1863
    %v2632 = vpack.c.b16 %v1876, %v1864
    %v2633 = vpack.c.b16 %v1877, %v1865
    %v2634 = vpack.c.b16 %v1890, %v1878
    %v2635 = vpack.c.b16 %v1891, %v1879
    %v2636 = vpack.c.b16 %v1892, %v1880
    %v2637 = vpack.c.b16 %v1893, %v1881
    %v2638 = vpack.c.b16 %v1894, %v1882
    %v2639 = vpack.c.b16 %v1895, %v1883
    %v2640 = vpack.c.b16 %v1896, %v1884
    %v2641 = vpack.c.b16 %v1897, %v1885
    %v2642 = vpack.c.b16 %v1898, %v1886
    %v2643 = vpack.c.b16 %v1899, %v1887
    %v2644 = vpack.c.b16 %v1900, %v1888
    %v2645 = vpack.c.b16 %v1901, %v1889
    %v2646 = vpack.c.b16 %v1914, %v1902
    %v2647 = vpack.c.b16 %v1915, %v1903
    %v2648 = vpack.c.b16 %v1916, %v1904
    %v2649 = vpack.c.b16 %v1917, %v1905
    %v2650 = vpack.c.b16 %v1918, %v1906
    %v2651 = vpack.c.b16 %v1919, %v1907
    %v2652 = vpack.c.b16 %v1920, %v1908
    %v2653 = vpack.c.b16 %v1921, %v1909
    %v2654 = vpack.c.b16 %v1922, %v1910
    %v2655 = vpack.c.b16 %v1923, %v1911
    %v2656 = vpack.c.b16 %v1924, %v1912
    %v2657 = vpack.c.b16 %v1925, %v1913
    %v2658 = vpack.c.b16 %v1938, %v1926
    %v2659 = vpack.c.b16 %v1939, %v1927
    %v2660 = vpack.c.b16 %v1940, %v1928
    %v2661 = vpack.c.b16 %v1941, %v1929
    %v2662 = vpack.c.b16 %v1942, %v1930
    %v2663 = vpack.c.b16 %v1943, %v1931
    %v2664 = vpack.c.b16 %v1944, %v1932
    %v2665 = vpack.c.b16 %v1945, %v1933
    %v2666 = vpack.c.b16 %v1946, %v1934
    %v2667 = vpack.c.b16 %v1947, %v1935
    %v2668 = vpack.c.b16 %v1948, %v1936
    %v2669 = vpack.c.b16 %v1949, %v1937
    %v2670 = vpack.c.b16 %v1962, %v1950
    %v2671 = vpack.c.b16 %v1963, %v1951
    %v2672 = vpack.c.b16 %v1964, %v1952
    %v2673 = vpack.c.b16 %v1965, %v1953
    %v2674 = vpack.c.b16 %v1966, %v1954
    %v2675 = vpack.c.b16 %v1967, %v1955
    %v2676 = vpack.c.b16 %v1968, %v1956
    %v2677 = vpack.c.b16 %v1969, %v1957
    %v2678 = vpack.c.b16 %v1970, %v1958
    %v2679 = vpack.c.b16 %v1971, %v1959
    %v2680 = vpack.c.b16 %v1972, %v1960
    %v2681 = vpack.c.b16 %v1973, %v1961
    %v2682 = vpack.c.b16 %v1986, %v1974
    %v2683 = vpack.c.b16 %v1987, %v1975
    %v2684 = vpack.c.b16 %v1988, %v1976
    %v2685 = vpack.c.b16 %v1989, %v1977
    %v2686 = vpack.c.b16 %v1990, %v1978
    %v2687 = vpack.c.b16 %v1991, %v1979
    %v2688 = vpack.c.b16 %v1992, %v1980
    %v2689 = vpack.c.b16 %v1993, %v1981
    %v2690 = vpack.c.b16 %v1994, %v1982
    %v2691 = vpack.c.b16 %v1995, %v1983
    %v2692 = vpack.c.b16 %v1996, %v1984
    %v2693 = vpack.c.b16 %v1997, %v1985
    %v2694 = vpack.c.b16 %v2010, %v1998
    %v2695 = vpack.c.b16 %v2011, %v1999
    %v2696 = vpack.c.b16 %v2012, %v2000
    %v2697 = vpack.c.b16 %v2013, %v2001
    %v2698 = vpack.c.b16 %v2014, %v2002
    %v2699 = vpack.c.b16 %v2015, %v2003
    %v2700 = vpack.c.b16 %v2016, %v2004
    %v2701 = vpack.c.b16 %v2017, %v2005
    %v2702 = vpack.c.b16 %v2018, %v2006
    %v2703 = vpack.c.b16 %v2019, %v2007
    %v2704 = vpack.c.b16 %v2020, %v2008
    %v2705 = vpack.c.b16 %v2021, %v2009
    %v2706 = vpack.c.b16 %v2034, %v2022
    %v2707 = vpack.c.b16 %v2035, %v2023
    %v2708 = vpack.c.b16 %v2036, %v2024
    %v2709 = vpack.c.b16 %v2037, %v2025
    %v2710 = vpack.c.b16 %v2038, %v2026
    %v2711 = vpack.c.b16 %v2039, %v2027
    %v2712 = vpack.c.b16 %v2040, %v2028
    %v2713 = vpack.c.b16 %v2041, %v2029
    %v2714 = vpack.c.b16 %v2042, %v2030
    %v2715 = vpack.c.b16 %v2043, %v2031
    %v2716 = vpack.c.b16 %v2044, %v2032
    %v2717 = vpack.c.b16 %v2045, %v2033
    %v2718 = vpack.c.b16 %v2058, %v2046
    %v2719 = vpack.c.b16 %v2059, %v2047
    %v2720 = vpack.c.b16 %v2060, %v2048
    %v2721 = vpack.c.b16 %v2061, %v2049
    %v2722 = vpack.c.b16 %v2062, %v2050
    %v2723 = vpack.c.b16 %v2063, %v2051
    %v2724 = vpack.c.b16 %v2064, %v2052
    %v2725 = vpack.c.b16 %v2065, %v2053
    %v2726 = vpack.c.b16 %v2066, %v2054
    %v2727 = vpack.c.b16 %v2067, %v2055
    %v2728 = vpack.c.b16 %v2068, %v2056
    %v2729 = vpack.c.b16 %v2069, %v2057
    %v2730 = vpack.c.b16 %v2082, %v2070
    %v2731 = vpack.c.b16 %v2083, %v2071
    %v2732 = vpack.c.b16 %v2084, %v2072
    %v2733 = vpack.c.b16 %v2085, %v2073
    %v2734 = vpack.c.b16 %v2086, %v2074
    %v2735 = vpack.c.b16 %v2087, %v2075
    %v2736 = vpack.c.b16 %v2088, %v2076
    %v2737 = vpack.c.b16 %v2089, %v2077
    %v2738 = vpack.c.b16 %v2090, %v2078
    %v2739 = vpack.c.b16 %v2091, %v2079
    %v2740 = vpack.c.b16 %v2092, %v2080
    %v2741 = vpack.c.b16 %v2093, %v2081
    %v2742 = vpack.c.b16 %v2106, %v2094
    %v2743 = vpack.c.b16 %v2107, %v2095
    %v2744 = vpack.c.b16 %v2108, %v2096
    %v2745 = vpack.c.b16 %v2109, %v2097
    %v2746 = vpack.c.b16 %v2110, %v2098
    %v2747 = vpack.c.b16 %v2111, %v2099
    %v2748 = vpack.c.b16 %v2112, %v2100
    %v2749 = vpack.c.b16 %v2113, %v2101
    %v2750 = vpack.c.b16 %v2114, %v2102
    %v2751 = vpack.c.b16 %v2115, %v2103
    %v2752 = vpack.c.b16 %v2116, %v2104
    %v2753 = vpack.c.b16 %v2117, %v2105
    %v2754 = vpack.c.b16 %v2130, %v2118
    %v2755 = vpack.c.b16 %v2131, %v2119
    %v2756 = vpack.c.b16 %v2132, %v2120
    %v2757 = vpack.c.b16 %v2133, %v2121
    %v2758 = vpack.c.b16 %v2134, %v2122
    %v2759 = vpack.c.b16 %v2135, %v2123
    %v2760 = vpack.c.b16 %v2136, %v2124
    %v2761 = vpack.c.b16 %v2137, %v2125
    %v2762 = vpack.c.b16 %v2138, %v2126
    %v2763 = vpack.c.b16 %v2139, %v2127
    %v2764 = vpack.c.b16 %v2140, %v2128
    %v2765 = vpack.c.b16 %v2141, %v2129
    %v2766 = vpack.c.b16 %v2154, %v2142
    %v2767 = vpack.c.b16 %v2155, %v2143
    %v2768 = vpack.c.b16 %v2156, %v2144
    %v2769 = vpack.c.b16 %v2157, %v2145
    %v2770 = vpack.c.b16 %v2158, %v2146
    %v2771 = vpack.c.b16 %v2159, %v2147
    %v2772 = vpack.c.b16 %v2160, %v2148
    %v2773 = vpack.c.b16 %v2161, %v2149
    %v2774 = vpack.c.b16 %v2162, %v2150
    %v2775 = vpack.c.b16 %v2163, %v2151
    %v2776 = vpack.c.b16 %v2164, %v2152
    %v2777 = vpack.c.b16 %v2165, %v2153
    %v2778 = vpack.c.b16 %v2178, %v2166
    %v2779 = vpack.c.b16 %v2179, %v2167
    %v2780 = vpack.c.b16 %v2180, %v2168
    %v2781 = vpack.c.b16 %v2181, %v2169
    %v2782 = vpack.c.b16 %v2182, %v2170
    %v2783 = vpack.c.b16 %v2183, %v2171
    %v2784 = vpack.c.b16 %v2184, %v2172
    %v2785 = vpack.c.b16 %v2185, %v2173
    %v2786 = vpack.c.b16 %v2186, %v2174
    %v2787 = vpack.c.b16 %v2187, %v2175
    %v2788 = vpack.c.b16 %v2188, %v2176
    %v2789 = vpack.c.b16 %v2189, %v2177
    %v2790 = vpack.c.b16 %v2202, %v2190
    %v2791 = vpack.c.b16 %v2203, %v2191
    %v2792 = vpack.c.b16 %v2204, %v2192
    %v2793 = vpack.c.b16 %v2205, %v2193
    %v2794 = vpack.c.b16 %v2206, %v2194
    %v2795 = vpack.c.b16 %v2207, %v2195
    %v2796 = vpack.c.b16 %v2208, %v2196
    %v2797 = vpack.c.b16 %v2209, %v2197
    %v2798 = vpack.c.b16 %v2210, %v2198
    %v2799 = vpack.c.b16 %v2211, %v2199
    %v2800 = vpack.c.b16 %v2212, %v2200
    %v2801 = vpack.c.b16 %v2213, %v2201
    %v2802 = vpack.c.b16 %v2226, %v2214
    %v2803 = vpack.c.b16 %v2227, %v2215
    %v2804 = vpack.c.b16 %v2228, %v2216
    %v2805 = vpack.c.b16 %v2229, %v2217
    %v2806 = vpack.c.b16 %v2230, %v2218
    %v2807 = vpack.c.b16 %v2231, %v2219
    %v2808 = vpack.c.b16 %v2232, %v2220
    %v2809 = vpack.c.b16 %v2233, %v2221
    %v2810 = vpack.c.b16 %v2234, %v2222
    %v2811 = vpack.c.b16 %v2235, %v2223
    %v2812 = vpack.c.b16 %v2236, %v2224
    %v2813 = vpack.c.b16 %v2237, %v2225
    %v2814 = vpack.c.b16 %v2250, %v2238
    %v2815 = vpack.c.b16 %v2251, %v2239
    %v2816 = vpack.c.b16 %v2252, %v2240
    %v2817 = vpack.c.b16 %v2253, %v2241
    %v2818 = vpack.c.b16 %v2254, %v2242
    %v2819 = vpack.c.b16 %v2255, %v2243
    %v2820 = vpack.c.b16 %v2256, %v2244
    %v2821 = vpack.c.b16 %v2257, %v2245
    %v2822 = vpack.c.b16 %v2258, %v2246
    %v2823 = vpack.c.b16 %v2259, %v2247
    %v2824 = vpack.c.b16 %v2260, %v2248
    %v2825 = vpack.c.b16 %v2261, %v2249
    %v2826 = vpack.c.b16 %v2274, %v2262
    %v2827 = vpack.c.b16 %v2275, %v2263
    %v2828 = vpack.c.b16 %v2276, %v2264
    %v2829 = vpack.c.b16 %v2277, %v2265
    %v2830 = vpack.c.b16 %v2278, %v2266
    %v2831 = vpack.c.b16 %v2279, %v2267
    %v2832 = vpack.c.b16 %v2280, %v2268
    %v2833 = vpack.c.b16 %v2281, %v2269
    %v2834 = vpack.c.b16 %v2282, %v2270
    %v2835 = vpack.c.b16 %v2283, %v2271
    %v2836 = vpack.c.b16 %v2284, %v2272
    %v2837 = vpack.c.b16 %v2285, %v2273
    %v2838 = vpack.c.b16 %v2298, %v2286
    %v2839 = vpack.c.b16 %v2299, %v2287
    %v2840 = vpack.c.b16 %v2300, %v2288
    %v2841 = vpack.c.b16 %v2301, %v2289
    %v2842 = vpack.c.b16 %v2302, %v2290
    %v2843 = vpack.c.b16 %v2303, %v2291
    %v2844 = vpack.c.b16 %v2304, %v2292
    %v2845 = vpack.c.b16 %v2305, %v2293
    %v2846 = vpack.c.b16 %v2306, %v2294
    %v2847 = vpack.c.b16 %v2307, %v2295
    %v2848 = vpack.c.b16 %v2308, %v2296
    %v2849 = vpack.c.b16 %v2309, %v2297
    %v2850 = vpack.c.b16 %v2322, %v2310
    %v2851 = vpack.c.b16 %v2323, %v2311
    %v2852 = vpack.c.b16 %v2324, %v2312
    %v2853 = vpack.c.b16 %v2325, %v2313
    %v2854 = vpack.c.b16 %v2326, %v2314
    %v2855 = vpack.c.b16 %v2327, %v2315
    %v2856 = vpack.c.b16 %v2328, %v2316
    %v2857 = vpack.c.b16 %v2329, %v2317
    %v2858 = vpack.c.b16 %v2330, %v2318
    %v2859 = vpack.c.b16 %v2331, %v2319
    %v2860 = vpack.c.b16 %v2332, %v2320
    %v2861 = vpack.c.b16 %v2333, %v2321
    %v2862 = vpack.c.b16 %v2346, %v2334
    %v2863 = vpack.c.b16 %v2347, %v2335
    %v2864 = vpack.c.b16 %v2348, %v2336
    %v2865 = vpack.c.b16 %v2349, %v2337
    %v2866 = vpack.c.b16 %v2350, %v2338
    %v2867 = vpack.c.b16 %v2351, %v2339
    %v2868 = vpack.c.b16 %v2352, %v2340
    %v2869 = vpack.c.b16 %v2353, %v2341
    %v2870 = vpack.c.b16 %v2354, %v2342
    %v2871 = vpack.c.b16 %v2355, %v2343
    %v2872 = vpack.c.b16 %v2356, %v2344
    %v2873 = vpack.c.b16 %v2357, %v2345
    %v2874 = vpack.c.b16 %v2370, %v2358
    %v2875 = vpack.c.b16 %v2371, %v2359
    %v2876 = vpack.c.b16 %v2372, %v2360
    %v2877 = vpack.c.b16 %v2373, %v2361
    %v2878 = vpack.c.b16 %v2374, %v2362
    %v2879 = vpack.c.b16 %v2375, %v2363
    %v2880 = vpack.c.b16 %v2376, %v2364
    %v2881 = vpack.c.b16 %v2377, %v2365
    %v2882 = vpack.c.b16 %v2378, %v2366
    %v2883 = vpack.c.b16 %v2379, %v2367
    %v2884 = vpack.c.b16 %v2380, %v2368
    %v2885 = vpack.c.b16 %v2381, %v2369
    %v2886 = vpack.c.b16 %v2394, %v2382
    %v2887 = vpack.c.b16 %v2395, %v2383
    %v2888 = vpack.c.b16 %v2396, %v2384
    %v2889 = vpack.c.b16 %v2397, %v2385
    %v2890 = vpack.c.b16 %v2398, %v2386
    %v2891 = vpack.c.b16 %v2399, %v2387
    %v2892 = vpack.c.b16 %v2400, %v2388
    %v2893 = vpack.c.b16 %v2401, %v2389
    %v2894 = vpack.c.b16 %v2402, %v2390
    %v2895 = vpack.c.b16 %v2403, %v2391
    %v2896 = vpack.c.b16 %v2404, %v2392
    %v2897 = vpack.c.b16 %v2405, %v2393
    %v2898 = vpack.c.b16 %v2418, %v2406
    %v2899 = vpack.c.b16 %v2419, %v2407
    %v2900 = vpack.c.b16 %v2420, %v2408
    %v2901 = vpack.c.b16 %v2421, %v2409
    %v2902 = vpack.c.b16 %v2422, %v2410
    %v2903 = vpack.c.b16 %v2423, %v2411
    %v2904 = vpack.c.b16 %v2424, %v2412
    %v2905 = vpack.c.b16 %v2425, %v2413
    %v2906 = vpack.c.b16 %v2426, %v2414
    %v2907 = vpack.c.b16 %v2427, %v2415
    %v2908 = vpack.c.b16 %v2428, %v2416
    %v2909 = vpack.c.b16 %v2429, %v2417
    %3390 = vmatpush.bf16.msra.mxu0 %v2514
    %3391 = vmatpush.bf16.msra.mxu0 %v2502
    %3392 = vmatpush.bf16.msra.mxu0 %v2490
    %3393 = vmatpush.bf16.msra.mxu0 %v2478
    %3394 = vmatpush.bf16.msra.mxu0 %v2466
    %3395 = vmatpush.bf16.msra.mxu0 %v2454
    %3396 = vmatpush.bf16.msra.mxu0 %v2442
    %3397 = vmatpush.bf16.msra.mxu0 %v2430
    %3398 = vmatmul.bf16.gmra.mxu0 %v980
    %v3399 = vpop.f32.mrf.mxu0
    %v3400 = vadd.f32 %v948, %v3399
    %v3401 = vpop.f32.mrf.mxu0
    %3402 = vdwg.mxu0
    %3403 = vmatpush.bf16.msra.mxu0 %v2610
    %3404 = vmatpush.bf16.msra.mxu0 %v2598
    %3405 = vmatpush.bf16.msra.mxu0 %v2586
    %3406 = vmatpush.bf16.msra.mxu0 %v2574
    %3407 = vmatpush.bf16.msra.mxu0 %v2562
    %3408 = vmatpush.bf16.msra.mxu0 %v2550
    %3409 = vmatpush.bf16.msra.mxu0 %v2538
    %3410 = vmatpush.bf16.msra.mxu0 %v2526
    %3411 = vmatmul.bf16.gmra.mxu0 %v981
    %v3412 = vpop.f32.mrf.mxu0
    %v3413 = vadd.f32 %v3400, %v3412
    %v3414 = vpop.f32.mrf.mxu0
    %3415 = vdwg.mxu0
    %3416 = vmatpush.bf16.msra.mxu0 %v2706
    %3417 = vmatpush.bf16.msra.mxu0 %v2694
    %3418 = vmatpush.bf16.msra.mxu0 %v2682
    %3419 = vmatpush.bf16.msra.mxu0 %v2670
    %3420 = vmatpush.bf16.msra.mxu0 %v2658
    %3421 = vmatpush.bf16.msra.mxu0 %v2646
    %3422 = vmatpush.bf16.msra.mxu0 %v2634
    %3423 = vmatpush.bf16.msra.mxu0 %v2622
    %3424 = vmatmul.bf16.gmra.mxu0 %v982
    %v3425 = vpop.f32.mrf.mxu0
    %v3426 = vadd.f32 %v3413, %v3425
    %v3427 = vpop.f32.mrf.mxu0
    %3428 = vdwg.mxu0
    %3429 = vmatpush.bf16.msra.mxu0 %v2802
    %3430 = vmatpush.bf16.msra.mxu0 %v2790
    %3431 = vmatpush.bf16.msra.mxu0 %v2778
    %3432 = vmatpush.bf16.msra.mxu0 %v2766
    %3433 = vmatpush.bf16.msra.mxu0 %v2754
    %3434 = vmatpush.bf16.msra.mxu0 %v2742
    %3435 = vmatpush.bf16.msra.mxu0 %v2730
    %3436 = vmatpush.bf16.msra.mxu0 %v2718
    %3437 = vmatmul.bf16.gmra.mxu0 %v983
    %v3438 = vpop.f32.mrf.mxu0
    %v3439 = vadd.f32 %v3426, %v3438
    %v3440 = vpop.f32.mrf.mxu0
    %3441 = vdwg.mxu0
    %3442 = vmatpush.bf16.msra.mxu0 %v2898
    %3443 = vmatpush.bf16.msra.mxu0 %v2886
    %3444 = vmatpush.bf16.msra.mxu0 %v2874
    %3445 = vmatpush.bf16.msra.mxu0 %v2862
    %3446 = vmatpush.bf16.msra.mxu0 %v2850
    %3447 = vmatpush.bf16.msra.mxu0 %v2838
    %3448 = vmatpush.bf16.msra.mxu0 %v2826
    %3449 = vmatpush.bf16.msra.mxu0 %v2814
    %3450 = vmatmul.bf16.gmra.mxu0 %v984
    %v3451 = vpop.f32.mrf.mxu0
    %v3452 = vadd.f32 %v3439, %v3451
    %v3453 = vpop.f32.mrf.mxu0
    %3454 = vdwg.mxu0
    %3455 = vmatpush.bf16.msra.mxu0 %v2515
    %3456 = vmatpush.bf16.msra.mxu0 %v2503
    %3457 = vmatpush.bf16.msra.mxu0 %v2491
    %3458 = vmatpush.bf16.msra.mxu0 %v2479
    %3459 = vmatpush.bf16.msra.mxu0 %v2467
    %3460 = vmatpush.bf16.msra.mxu0 %v2455
    %3461 = vmatpush.bf16.msra.mxu0 %v2443
    %3462 = vmatpush.bf16.msra.mxu0 %v2431
    %3463 = vmatmul.bf16.gmra.mxu0 %v980
    %v3464 = vpop.f32.mrf.mxu0
    %v3465 = vadd.f32 %v949, %v3464
    %v3466 = vpop.f32.mrf.mxu0
    %3467 = vdwg.mxu0
    %3468 = vmatpush.bf16.msra.mxu0 %v2611
    %3469 = vmatpush.bf16.msra.mxu0 %v2599
    %3470 = vmatpush.bf16.msra.mxu0 %v2587
    %3471 = vmatpush.bf16.msra.mxu0 %v2575
    %3472 = vmatpush.bf16.msra.mxu0 %v2563
    %3473 = vmatpush.bf16.msra.mxu0 %v2551
    %3474 = vmatpush.bf16.msra.mxu0 %v2539
    %3475 = vmatpush.bf16.msra.mxu0 %v2527
    %3476 = vmatmul.bf16.gmra.mxu0 %v981
    %v3477 = vpop.f32.mrf.mxu0
    %v3478 = vadd.f32 %v3465, %v3477
    %v3479 = vpop.f32.mrf.mxu0
    %3480 = vdwg.mxu0
    %3481 = vmatpush.bf16.msra.mxu0 %v2707
    %3482 = vmatpush.bf16.msra.mxu0 %v2695
    %3483 = vmatpush.bf16.msra.mxu0 %v2683
    %3484 = vmatpush.bf16.msra.mxu0 %v2671
    %3485 = vmatpush.bf16.msra.mxu0 %v2659
    %3486 = vmatpush.bf16.msra.mxu0 %v2647
    %3487 = vmatpush.bf16.msra.mxu0 %v2635
    %3488 = vmatpush.bf16.msra.mxu0 %v2623
    %3489 = vmatmul.bf16.gmra.mxu0 %v982
    %v3490 = vpop.f32.mrf.mxu0
    %v3491 = vadd.f32 %v3478, %v3490
    %v3492 = vpop.f32.mrf.mxu0
    %3493 = vdwg.mxu0
    %3494 = vmatpush.bf16.msra.mxu0 %v2803
    %3495 = vmatpush.bf16.msra.mxu0 %v2791
    %3496 = vmatpush.bf16.msra.mxu0 %v2779
    %3497 = vmatpush.bf16.msra.mxu0 %v2767
    %3498 = vmatpush.bf16.msra.mxu0 %v2755
    %3499 = vmatpush.bf16.msra.mxu0 %v2743
    %3500 = vmatpush.bf16.msra.mxu0 %v2731
    %3501 = vmatpush.bf16.msra.mxu0 %v2719
    %3502 = vmatmul.bf16.gmra.mxu0 %v983
    %v3503 = vpop.f32.mrf.mxu0
    %v3504 = vadd.f32 %v3491, %v3503
    %v3505 = vpop.f32.mrf.mxu0
    %3506 = vdwg.mxu0
    %3507 = vmatpush.bf16.msra.mxu0 %v2899
    %3508 = vmatpush.bf16.msra.mxu0 %v2887
    %3509 = vmatpush.bf16.msra.mxu0 %v2875
    %3510 = vmatpush.bf16.msra.mxu0 %v2863
    %3511 = vmatpush.bf16.msra.mxu0 %v2851
    %3512 = vmatpush.bf16.msra.mxu0 %v2839
    %3513 = vmatpush.bf16.msra.mxu0 %v2827
    %3514 = vmatpush.bf16.msra.mxu0 %v2815
    %3515 = vmatmul.bf16.gmra.mxu0 %v984
    %v3516 = vpop.f32.mrf.mxu0
    %v3517 = vadd.f32 %v3504, %v3516
    %v3518 = vpop.f32.mrf.mxu0
    %3519 = vdwg.mxu0
    %3520 = vmatpush.bf16.msra.mxu0 %v2516
    %3521 = vmatpush.bf16.msra.mxu0 %v2504
    %3522 = vmatpush.bf16.msra.mxu0 %v2492
    %3523 = vmatpush.bf16.msra.mxu0 %v2480
    %3524 = vmatpush.bf16.msra.mxu0 %v2468
    %3525 = vmatpush.bf16.msra.mxu0 %v2456
    %3526 = vmatpush.bf16.msra.mxu0 %v2444
    %3527 = vmatpush.bf16.msra.mxu0 %v2432
    %3528 = vmatmul.bf16.gmra.mxu0 %v980
    %v3529 = vpop.f32.mrf.mxu0
    %v3530 = vadd.f32 %v950, %v3529
    %v3531 = vpop.f32.mrf.mxu0
    %3532 = vdwg.mxu0
    %3533 = vmatpush.bf16.msra.mxu0 %v2612
    %3534 = vmatpush.bf16.msra.mxu0 %v2600
    %3535 = vmatpush.bf16.msra.mxu0 %v2588
    %3536 = vmatpush.bf16.msra.mxu0 %v2576
    %3537 = vmatpush.bf16.msra.mxu0 %v2564
    %3538 = vmatpush.bf16.msra.mxu0 %v2552
    %3539 = vmatpush.bf16.msra.mxu0 %v2540
    %3540 = vmatpush.bf16.msra.mxu0 %v2528
    %3541 = vmatmul.bf16.gmra.mxu0 %v981
    %v3542 = vpop.f32.mrf.mxu0
    %v3543 = vadd.f32 %v3530, %v3542
    %v3544 = vpop.f32.mrf.mxu0
    %3545 = vdwg.mxu0
    %3546 = vmatpush.bf16.msra.mxu0 %v2708
    %3547 = vmatpush.bf16.msra.mxu0 %v2696
    %3548 = vmatpush.bf16.msra.mxu0 %v2684
    %3549 = vmatpush.bf16.msra.mxu0 %v2672
    %3550 = vmatpush.bf16.msra.mxu0 %v2660
    %3551 = vmatpush.bf16.msra.mxu0 %v2648
    %3552 = vmatpush.bf16.msra.mxu0 %v2636
    %3553 = vmatpush.bf16.msra.mxu0 %v2624
    %3554 = vmatmul.bf16.gmra.mxu0 %v982
    %v3555 = vpop.f32.mrf.mxu0
    %v3556 = vadd.f32 %v3543, %v3555
    %v3557 = vpop.f32.mrf.mxu0
    %3558 = vdwg.mxu0
    %3559 = vmatpush.bf16.msra.mxu0 %v2804
    %3560 = vmatpush.bf16.msra.mxu0 %v2792
    %3561 = vmatpush.bf16.msra.mxu0 %v2780
    %3562 = vmatpush.bf16.msra.mxu0 %v2768
    %3563 = vmatpush.bf16.msra.mxu0 %v2756
    %3564 = vmatpush.bf16.msra.mxu0 %v2744
    %3565 = vmatpush.bf16.msra.mxu0 %v2732
    %3566 = vmatpush.bf16.msra.mxu0 %v2720
    %3567 = vmatmul.bf16.gmra.mxu0 %v983
    %v3568 = vpop.f32.mrf.mxu0
    %v3569 = vadd.f32 %v3556, %v3568
    %v3570 = vpop.f32.mrf.mxu0
    %3571 = vdwg.mxu0
    %3572 = vmatpush.bf16.msra.mxu0 %v2900
    %3573 = vmatpush.bf16.msra.mxu0 %v2888
    %3574 = vmatpush.bf16.msra.mxu0 %v2876
    %3575 = vmatpush.bf16.msra.mxu0 %v2864
    %3576 = vmatpush.bf16.msra.mxu0 %v2852
    %3577 = vmatpush.bf16.msra.mxu0 %v2840
    %3578 = vmatpush.bf16.msra.mxu0 %v2828
    %3579 = vmatpush.bf16.msra.mxu0 %v2816
    %3580 = vmatmul.bf16.gmra.mxu0 %v984
    %v3581 = vpop.f32.mrf.mxu0
    %v3582 = vadd.f32 %v3569, %v3581
    %v3583 = vpop.f32.mrf.mxu0
    %3584 = vdwg.mxu0
    %3585 = vmatpush.bf16.msra.mxu0 %v2517
    %3586 = vmatpush.bf16.msra.mxu0 %v2505
    %3587 = vmatpush.bf16.msra.mxu0 %v2493
    %3588 = vmatpush.bf16.msra.mxu0 %v2481
    %3589 = vmatpush.bf16.msra.mxu0 %v2469
    %3590 = vmatpush.bf16.msra.mxu0 %v2457
    %3591 = vmatpush.bf16.msra.mxu0 %v2445
    %3592 = vmatpush.bf16.msra.mxu0 %v2433
    %3593 = vmatmul.bf16.gmra.mxu0 %v980
    %v3594 = vpop.f32.mrf.mxu0
    %v3595 = vadd.f32 %v951, %v3594
    %v3596 = vpop.f32.mrf.mxu0
    %3597 = vdwg.mxu0
    %3598 = vmatpush.bf16.msra.mxu0 %v2613
    %3599 = vmatpush.bf16.msra.mxu0 %v2601
    %3600 = vmatpush.bf16.msra.mxu0 %v2589
    %3601 = vmatpush.bf16.msra.mxu0 %v2577
    %3602 = vmatpush.bf16.msra.mxu0 %v2565
    %3603 = vmatpush.bf16.msra.mxu0 %v2553
    %3604 = vmatpush.bf16.msra.mxu0 %v2541
    %3605 = vmatpush.bf16.msra.mxu0 %v2529
    %3606 = vmatmul.bf16.gmra.mxu0 %v981
    %v3607 = vpop.f32.mrf.mxu0
    %v3608 = vadd.f32 %v3595, %v3607
    %v3609 = vpop.f32.mrf.mxu0
    %3610 = vdwg.mxu0
    %3611 = vmatpush.bf16.msra.mxu0 %v2709
    %3612 = vmatpush.bf16.msra.mxu0 %v2697
    %3613 = vmatpush.bf16.msra.mxu0 %v2685
    %3614 = vmatpush.bf16.msra.mxu0 %v2673
    %3615 = vmatpush.bf16.msra.mxu0 %v2661
    %3616 = vmatpush.bf16.msra.mxu0 %v2649
    %3617 = vmatpush.bf16.msra.mxu0 %v2637
    %3618 = vmatpush.bf16.msra.mxu0 %v2625
    %3619 = vmatmul.bf16.gmra.mxu0 %v982
    %v3620 = vpop.f32.mrf.mxu0
    %v3621 = vadd.f32 %v3608, %v3620
    %v3622 = vpop.f32.mrf.mxu0
    %3623 = vdwg.mxu0
    %3624 = vmatpush.bf16.msra.mxu0 %v2805
    %3625 = vmatpush.bf16.msra.mxu0 %v2793
    %3626 = vmatpush.bf16.msra.mxu0 %v2781
    %3627 = vmatpush.bf16.msra.mxu0 %v2769
    %3628 = vmatpush.bf16.msra.mxu0 %v2757
    %3629 = vmatpush.bf16.msra.mxu0 %v2745
    %3630 = vmatpush.bf16.msra.mxu0 %v2733
    %3631 = vmatpush.bf16.msra.mxu0 %v2721
    %3632 = vmatmul.bf16.gmra.mxu0 %v983
    %v3633 = vpop.f32.mrf.mxu0
    %v3634 = vadd.f32 %v3621, %v3633
    %v3635 = vpop.f32.mrf.mxu0
    %3636 = vdwg.mxu0
    %3637 = vmatpush.bf16.msra.mxu0 %v2901
    %3638 = vmatpush.bf16.msra.mxu0 %v2889
    %3639 = vmatpush.bf16.msra.mxu0 %v2877
    %3640 = vmatpush.bf16.msra.mxu0 %v2865
    %3641 = vmatpush.bf16.msra.mxu0 %v2853
    %3642 = vmatpush.bf16.msra.mxu0 %v2841
    %3643 = vmatpush.bf16.msra.mxu0 %v2829
    %3644 = vmatpush.bf16.msra.mxu0 %v2817
    %3645 = vmatmul.bf16.gmra.mxu0 %v984
    %v3646 = vpop.f32.mrf.mxu0
    %v3647 = vadd.f32 %v3634, %v3646
    %v3648 = vpop.f32.mrf.mxu0
    %3649 = vdwg.mxu0
    %3650 = vmatpush.bf16.msra.mxu0 %v2518
    %3651 = vmatpush.bf16.msra.mxu0 %v2506
    %3652 = vmatpush.bf16.msra.mxu0 %v2494
    %3653 = vmatpush.bf16.msra.mxu0 %v2482
    %3654 = vmatpush.bf16.msra.mxu0 %v2470
    %3655 = vmatpush.bf16.msra.mxu0 %v2458
    %3656 = vmatpush.bf16.msra.mxu0 %v2446
    %3657 = vmatpush.bf16.msra.mxu0 %v2434
    %3658 = vmatmul.bf16.gmra.mxu0 %v980
    %v3659 = vpop.f32.mrf.mxu0
    %v3660 = vadd.f32 %v952, %v3659
    %v3661 = vpop.f32.mrf.mxu0
    %3662 = vdwg.mxu0
    %3663 = vmatpush.bf16.msra.mxu0 %v2614
    %3664 = vmatpush.bf16.msra.mxu0 %v2602
    %3665 = vmatpush.bf16.msra.mxu0 %v2590
    %3666 = vmatpush.bf16.msra.mxu0 %v2578
    %3667 = vmatpush.bf16.msra.mxu0 %v2566
    %3668 = vmatpush.bf16.msra.mxu0 %v2554
    %3669 = vmatpush.bf16.msra.mxu0 %v2542
    %3670 = vmatpush.bf16.msra.mxu0 %v2530
    %3671 = vmatmul.bf16.gmra.mxu0 %v981
    %v3672 = vpop.f32.mrf.mxu0
    %v3673 = vadd.f32 %v3660, %v3672
    %v3674 = vpop.f32.mrf.mxu0
    %3675 = vdwg.mxu0
    %3676 = vmatpush.bf16.msra.mxu0 %v2710
    %3677 = vmatpush.bf16.msra.mxu0 %v2698
    %3678 = vmatpush.bf16.msra.mxu0 %v2686
    %3679 = vmatpush.bf16.msra.mxu0 %v2674
    %3680 = vmatpush.bf16.msra.mxu0 %v2662
    %3681 = vmatpush.bf16.msra.mxu0 %v2650
    %3682 = vmatpush.bf16.msra.mxu0 %v2638
    %3683 = vmatpush.bf16.msra.mxu0 %v2626
    %3684 = vmatmul.bf16.gmra.mxu0 %v982
    %v3685 = vpop.f32.mrf.mxu0
    %v3686 = vadd.f32 %v3673, %v3685
    %v3687 = vpop.f32.mrf.mxu0
    %3688 = vdwg.mxu0
    %3689 = vmatpush.bf16.msra.mxu0 %v2806
    %3690 = vmatpush.bf16.msra.mxu0 %v2794
    %3691 = vmatpush.bf16.msra.mxu0 %v2782
    %3692 = vmatpush.bf16.msra.mxu0 %v2770
    %3693 = vmatpush.bf16.msra.mxu0 %v2758
    %3694 = vmatpush.bf16.msra.mxu0 %v2746
    %3695 = vmatpush.bf16.msra.mxu0 %v2734
    %3696 = vmatpush.bf16.msra.mxu0 %v2722
    %3697 = vmatmul.bf16.gmra.mxu0 %v983
    %v3698 = vpop.f32.mrf.mxu0
    %v3699 = vadd.f32 %v3686, %v3698
    %v3700 = vpop.f32.mrf.mxu0
    %3701 = vdwg.mxu0
    %3702 = vmatpush.bf16.msra.mxu0 %v2902
    %3703 = vmatpush.bf16.msra.mxu0 %v2890
    %3704 = vmatpush.bf16.msra.mxu0 %v2878
    %3705 = vmatpush.bf16.msra.mxu0 %v2866
    %3706 = vmatpush.bf16.msra.mxu0 %v2854
    %3707 = vmatpush.bf16.msra.mxu0 %v2842
    %3708 = vmatpush.bf16.msra.mxu0 %v2830
    %3709 = vmatpush.bf16.msra.mxu0 %v2818
    %3710 = vmatmul.bf16.gmra.mxu0 %v984
    %v3711 = vpop.f32.mrf.mxu0
    %v3712 = vadd.f32 %v3699, %v3711
    %v3713 = vpop.f32.mrf.mxu0
    %3714 = vdwg.mxu0
    %3715 = vmatpush.bf16.msra.mxu0 %v2519
    %3716 = vmatpush.bf16.msra.mxu0 %v2507
    %3717 = vmatpush.bf16.msra.mxu0 %v2495
    %3718 = vmatpush.bf16.msra.mxu0 %v2483
    %3719 = vmatpush.bf16.msra.mxu0 %v2471
    %3720 = vmatpush.bf16.msra.mxu0 %v2459
    %3721 = vmatpush.bf16.msra.mxu0 %v2447
    %3722 = vmatpush.bf16.msra.mxu0 %v2435
    %3723 = vmatmul.bf16.gmra.mxu0 %v980
    %v3724 = vpop.f32.mrf.mxu0
    %v3725 = vadd.f32 %v953, %v3724
    %v3726 = vpop.f32.mrf.mxu0
    %3727 = vdwg.mxu0
    %3728 = vmatpush.bf16.msra.mxu0 %v2615
    %3729 = vmatpush.bf16.msra.mxu0 %v2603
    %3730 = vmatpush.bf16.msra.mxu0 %v2591
    %3731 = vmatpush.bf16.msra.mxu0 %v2579
    %3732 = vmatpush.bf16.msra.mxu0 %v2567
    %3733 = vmatpush.bf16.msra.mxu0 %v2555
    %3734 = vmatpush.bf16.msra.mxu0 %v2543
    %3735 = vmatpush.bf16.msra.mxu0 %v2531
    %3736 = vmatmul.bf16.gmra.mxu0 %v981
    %v3737 = vpop.f32.mrf.mxu0
    %v3738 = vadd.f32 %v3725, %v3737
    %v3739 = vpop.f32.mrf.mxu0
    %3740 = vdwg.mxu0
    %3741 = vmatpush.bf16.msra.mxu0 %v2711
    %3742 = vmatpush.bf16.msra.mxu0 %v2699
    %3743 = vmatpush.bf16.msra.mxu0 %v2687
    %3744 = vmatpush.bf16.msra.mxu0 %v2675
    %3745 = vmatpush.bf16.msra.mxu0 %v2663
    %3746 = vmatpush.bf16.msra.mxu0 %v2651
    %3747 = vmatpush.bf16.msra.mxu0 %v2639
    %3748 = vmatpush.bf16.msra.mxu0 %v2627
    %3749 = vmatmul.bf16.gmra.mxu0 %v982
    %v3750 = vpop.f32.mrf.mxu0
    %v3751 = vadd.f32 %v3738, %v3750
    %v3752 = vpop.f32.mrf.mxu0
    %3753 = vdwg.mxu0
    %3754 = vmatpush.bf16.msra.mxu0 %v2807
    %3755 = vmatpush.bf16.msra.mxu0 %v2795
    %3756 = vmatpush.bf16.msra.mxu0 %v2783
    %3757 = vmatpush.bf16.msra.mxu0 %v2771
    %3758 = vmatpush.bf16.msra.mxu0 %v2759
    %3759 = vmatpush.bf16.msra.mxu0 %v2747
    %3760 = vmatpush.bf16.msra.mxu0 %v2735
    %3761 = vmatpush.bf16.msra.mxu0 %v2723
    %3762 = vmatmul.bf16.gmra.mxu0 %v983
    %v3763 = vpop.f32.mrf.mxu0
    %v3764 = vadd.f32 %v3751, %v3763
    %v3765 = vpop.f32.mrf.mxu0
    %3766 = vdwg.mxu0
    %3767 = vmatpush.bf16.msra.mxu0 %v2903
    %3768 = vmatpush.bf16.msra.mxu0 %v2891
    %3769 = vmatpush.bf16.msra.mxu0 %v2879
    %3770 = vmatpush.bf16.msra.mxu0 %v2867
    %3771 = vmatpush.bf16.msra.mxu0 %v2855
    %3772 = vmatpush.bf16.msra.mxu0 %v2843
    %3773 = vmatpush.bf16.msra.mxu0 %v2831
    %3774 = vmatpush.bf16.msra.mxu0 %v2819
    %3775 = vmatmul.bf16.gmra.mxu0 %v984
    %v3776 = vpop.f32.mrf.mxu0
    %v3777 = vadd.f32 %v3764, %v3776
    %v3778 = vpop.f32.mrf.mxu0
    %3779 = vdwg.mxu0
    %3780 = vmatpush.bf16.msra.mxu0 %v2520
    %3781 = vmatpush.bf16.msra.mxu0 %v2508
    %3782 = vmatpush.bf16.msra.mxu0 %v2496
    %3783 = vmatpush.bf16.msra.mxu0 %v2484
    %3784 = vmatpush.bf16.msra.mxu0 %v2472
    %3785 = vmatpush.bf16.msra.mxu0 %v2460
    %3786 = vmatpush.bf16.msra.mxu0 %v2448
    %3787 = vmatpush.bf16.msra.mxu0 %v2436
    %3788 = vmatmul.bf16.gmra.mxu0 %v980
    %v3789 = vpop.f32.mrf.mxu0
    %v3790 = vadd.f32 %v954, %v3789
    %v3791 = vpop.f32.mrf.mxu0
    %3792 = vdwg.mxu0
    %3793 = vmatpush.bf16.msra.mxu0 %v2616
    %3794 = vmatpush.bf16.msra.mxu0 %v2604
    %3795 = vmatpush.bf16.msra.mxu0 %v2592
    %3796 = vmatpush.bf16.msra.mxu0 %v2580
    %3797 = vmatpush.bf16.msra.mxu0 %v2568
    %3798 = vmatpush.bf16.msra.mxu0 %v2556
    %3799 = vmatpush.bf16.msra.mxu0 %v2544
    %3800 = vmatpush.bf16.msra.mxu0 %v2532
    %3801 = vmatmul.bf16.gmra.mxu0 %v981
    %v3802 = vpop.f32.mrf.mxu0
    %v3803 = vadd.f32 %v3790, %v3802
    %v3804 = vpop.f32.mrf.mxu0
    %3805 = vdwg.mxu0
    %3806 = vmatpush.bf16.msra.mxu0 %v2712
    %3807 = vmatpush.bf16.msra.mxu0 %v2700
    %3808 = vmatpush.bf16.msra.mxu0 %v2688
    %3809 = vmatpush.bf16.msra.mxu0 %v2676
    %3810 = vmatpush.bf16.msra.mxu0 %v2664
    %3811 = vmatpush.bf16.msra.mxu0 %v2652
    %3812 = vmatpush.bf16.msra.mxu0 %v2640
    %3813 = vmatpush.bf16.msra.mxu0 %v2628
    %3814 = vmatmul.bf16.gmra.mxu0 %v982
    %v3815 = vpop.f32.mrf.mxu0
    %v3816 = vadd.f32 %v3803, %v3815
    %v3817 = vpop.f32.mrf.mxu0
    %3818 = vdwg.mxu0
    %3819 = vmatpush.bf16.msra.mxu0 %v2808
    %3820 = vmatpush.bf16.msra.mxu0 %v2796
    %3821 = vmatpush.bf16.msra.mxu0 %v2784
    %3822 = vmatpush.bf16.msra.mxu0 %v2772
    %3823 = vmatpush.bf16.msra.mxu0 %v2760
    %3824 = vmatpush.bf16.msra.mxu0 %v2748
    %3825 = vmatpush.bf16.msra.mxu0 %v2736
    %3826 = vmatpush.bf16.msra.mxu0 %v2724
    %3827 = vmatmul.bf16.gmra.mxu0 %v983
    %v3828 = vpop.f32.mrf.mxu0
    %v3829 = vadd.f32 %v3816, %v3828
    %v3830 = vpop.f32.mrf.mxu0
    %3831 = vdwg.mxu0
    %3832 = vmatpush.bf16.msra.mxu0 %v2904
    %3833 = vmatpush.bf16.msra.mxu0 %v2892
    %3834 = vmatpush.bf16.msra.mxu0 %v2880
    %3835 = vmatpush.bf16.msra.mxu0 %v2868
    %3836 = vmatpush.bf16.msra.mxu0 %v2856
    %3837 = vmatpush.bf16.msra.mxu0 %v2844
    %3838 = vmatpush.bf16.msra.mxu0 %v2832
    %3839 = vmatpush.bf16.msra.mxu0 %v2820
    %3840 = vmatmul.bf16.gmra.mxu0 %v984
    %v3841 = vpop.f32.mrf.mxu0
    %v3842 = vadd.f32 %v3829, %v3841
    %v3843 = vpop.f32.mrf.mxu0
    %3844 = vdwg.mxu0
    %3845 = vmatpush.bf16.msra.mxu0 %v2521
    %3846 = vmatpush.bf16.msra.mxu0 %v2509
    %3847 = vmatpush.bf16.msra.mxu0 %v2497
    %3848 = vmatpush.bf16.msra.mxu0 %v2485
    %3849 = vmatpush.bf16.msra.mxu0 %v2473
    %3850 = vmatpush.bf16.msra.mxu0 %v2461
    %3851 = vmatpush.bf16.msra.mxu0 %v2449
    %3852 = vmatpush.bf16.msra.mxu0 %v2437
    %3853 = vmatmul.bf16.gmra.mxu0 %v980
    %v3854 = vpop.f32.mrf.mxu0
    %v3855 = vadd.f32 %v955, %v3854
    %v3856 = vpop.f32.mrf.mxu0
    %3857 = vdwg.mxu0
    %3858 = vmatpush.bf16.msra.mxu0 %v2617
    %3859 = vmatpush.bf16.msra.mxu0 %v2605
    %3860 = vmatpush.bf16.msra.mxu0 %v2593
    %3861 = vmatpush.bf16.msra.mxu0 %v2581
    %3862 = vmatpush.bf16.msra.mxu0 %v2569
    %3863 = vmatpush.bf16.msra.mxu0 %v2557
    %3864 = vmatpush.bf16.msra.mxu0 %v2545
    %3865 = vmatpush.bf16.msra.mxu0 %v2533
    %3866 = vmatmul.bf16.gmra.mxu0 %v981
    %v3867 = vpop.f32.mrf.mxu0
    %v3868 = vadd.f32 %v3855, %v3867
    %v3869 = vpop.f32.mrf.mxu0
    %3870 = vdwg.mxu0
    %3871 = vmatpush.bf16.msra.mxu0 %v2713
    %3872 = vmatpush.bf16.msra.mxu0 %v2701
    %3873 = vmatpush.bf16.msra.mxu0 %v2689
    %3874 = vmatpush.bf16.msra.mxu0 %v2677
    %3875 = vmatpush.bf16.msra.mxu0 %v2665
    %3876 = vmatpush.bf16.msra.mxu0 %v2653
    %3877 = vmatpush.bf16.msra.mxu0 %v2641
    %3878 = vmatpush.bf16.msra.mxu0 %v2629
    %3879 = vmatmul.bf16.gmra.mxu0 %v982
    %v3880 = vpop.f32.mrf.mxu0
    %v3881 = vadd.f32 %v3868, %v3880
    %v3882 = vpop.f32.mrf.mxu0
    %3883 = vdwg.mxu0
    %3884 = vmatpush.bf16.msra.mxu0 %v2809
    %3885 = vmatpush.bf16.msra.mxu0 %v2797
    %3886 = vmatpush.bf16.msra.mxu0 %v2785
    %3887 = vmatpush.bf16.msra.mxu0 %v2773
    %3888 = vmatpush.bf16.msra.mxu0 %v2761
    %3889 = vmatpush.bf16.msra.mxu0 %v2749
    %3890 = vmatpush.bf16.msra.mxu0 %v2737
    %3891 = vmatpush.bf16.msra.mxu0 %v2725
    %3892 = vmatmul.bf16.gmra.mxu0 %v983
    %v3893 = vpop.f32.mrf.mxu0
    %v3894 = vadd.f32 %v3881, %v3893
    %v3895 = vpop.f32.mrf.mxu0
    %3896 = vdwg.mxu0
    %3897 = vmatpush.bf16.msra.mxu0 %v2905
    %3898 = vmatpush.bf16.msra.mxu0 %v2893
    %3899 = vmatpush.bf16.msra.mxu0 %v2881
    %3900 = vmatpush.bf16.msra.mxu0 %v2869
    %3901 = vmatpush.bf16.msra.mxu0 %v2857
    %3902 = vmatpush.bf16.msra.mxu0 %v2845
    %3903 = vmatpush.bf16.msra.mxu0 %v2833
    %3904 = vmatpush.bf16.msra.mxu0 %v2821
    %3905 = vmatmul.bf16.gmra.mxu0 %v984
    %v3906 = vpop.f32.mrf.mxu0
    %v3907 = vadd.f32 %v3894, %v3906
    %v3908 = vpop.f32.mrf.mxu0
    %3909 = vdwg.mxu0
    %3910 = vmatpush.bf16.msra.mxu0 %v2522
    %3911 = vmatpush.bf16.msra.mxu0 %v2510
    %3912 = vmatpush.bf16.msra.mxu0 %v2498
    %3913 = vmatpush.bf16.msra.mxu0 %v2486
    %3914 = vmatpush.bf16.msra.mxu0 %v2474
    %3915 = vmatpush.bf16.msra.mxu0 %v2462
    %3916 = vmatpush.bf16.msra.mxu0 %v2450
    %3917 = vmatpush.bf16.msra.mxu0 %v2438
    %3918 = vmatmul.bf16.gmra.mxu0 %v980
    %v3919 = vpop.f32.mrf.mxu0
    %v3920 = vadd.f32 %v956, %v3919
    %v3921 = vpop.f32.mrf.mxu0
    %3922 = vdwg.mxu0
    %3923 = vmatpush.bf16.msra.mxu0 %v2618
    %3924 = vmatpush.bf16.msra.mxu0 %v2606
    %3925 = vmatpush.bf16.msra.mxu0 %v2594
    %3926 = vmatpush.bf16.msra.mxu0 %v2582
    %3927 = vmatpush.bf16.msra.mxu0 %v2570
    %3928 = vmatpush.bf16.msra.mxu0 %v2558
    %3929 = vmatpush.bf16.msra.mxu0 %v2546
    %3930 = vmatpush.bf16.msra.mxu0 %v2534
    %3931 = vmatmul.bf16.gmra.mxu0 %v981
    %v3932 = vpop.f32.mrf.mxu0
    %v3933 = vadd.f32 %v3920, %v3932
    %v3934 = vpop.f32.mrf.mxu0
    %3935 = vdwg.mxu0
    %3936 = vmatpush.bf16.msra.mxu0 %v2714
    %3937 = vmatpush.bf16.msra.mxu0 %v2702
    %3938 = vmatpush.bf16.msra.mxu0 %v2690
    %3939 = vmatpush.bf16.msra.mxu0 %v2678
    %3940 = vmatpush.bf16.msra.mxu0 %v2666
    %3941 = vmatpush.bf16.msra.mxu0 %v2654
    %3942 = vmatpush.bf16.msra.mxu0 %v2642
    %3943 = vmatpush.bf16.msra.mxu0 %v2630
    %3944 = vmatmul.bf16.gmra.mxu0 %v982
    %v3945 = vpop.f32.mrf.mxu0
    %v3946 = vadd.f32 %v3933, %v3945
    %v3947 = vpop.f32.mrf.mxu0
    %3948 = vdwg.mxu0
    %3949 = vmatpush.bf16.msra.mxu0 %v2810
    %3950 = vmatpush.bf16.msra.mxu0 %v2798
    %3951 = vmatpush.bf16.msra.mxu0 %v2786
    %3952 = vmatpush.bf16.msra.mxu0 %v2774
    %3953 = vmatpush.bf16.msra.mxu0 %v2762
    %3954 = vmatpush.bf16.msra.mxu0 %v2750
    %3955 = vmatpush.bf16.msra.mxu0 %v2738
    %3956 = vmatpush.bf16.msra.mxu0 %v2726
    %3957 = vmatmul.bf16.gmra.mxu0 %v983
    %v3958 = vpop.f32.mrf.mxu0
    %v3959 = vadd.f32 %v3946, %v3958
    %v3960 = vpop.f32.mrf.mxu0
    %3961 = vdwg.mxu0
    %3962 = vmatpush.bf16.msra.mxu0 %v2906
    %3963 = vmatpush.bf16.msra.mxu0 %v2894
    %3964 = vmatpush.bf16.msra.mxu0 %v2882
    %3965 = vmatpush.bf16.msra.mxu0 %v2870
    %3966 = vmatpush.bf16.msra.mxu0 %v2858
    %3967 = vmatpush.bf16.msra.mxu0 %v2846
    %3968 = vmatpush.bf16.msra.mxu0 %v2834
    %3969 = vmatpush.bf16.msra.mxu0 %v2822
    %3970 = vmatmul.bf16.gmra.mxu0 %v984
    %v3971 = vpop.f32.mrf.mxu0
    %v3972 = vadd.f32 %v3959, %v3971
    %v3973 = vpop.f32.mrf.mxu0
    %3974 = vdwg.mxu0
    %3975 = vmatpush.bf16.msra.mxu0 %v2523
    %3976 = vmatpush.bf16.msra.mxu0 %v2511
    %3977 = vmatpush.bf16.msra.mxu0 %v2499
    %3978 = vmatpush.bf16.msra.mxu0 %v2487
    %3979 = vmatpush.bf16.msra.mxu0 %v2475
    %3980 = vmatpush.bf16.msra.mxu0 %v2463
    %3981 = vmatpush.bf16.msra.mxu0 %v2451
    %3982 = vmatpush.bf16.msra.mxu0 %v2439
    %3983 = vmatmul.bf16.gmra.mxu0 %v980
    %v3984 = vpop.f32.mrf.mxu0
    %v3985 = vadd.f32 %v957, %v3984
    %v3986 = vpop.f32.mrf.mxu0
    %3987 = vdwg.mxu0
    %3988 = vmatpush.bf16.msra.mxu0 %v2619
    %3989 = vmatpush.bf16.msra.mxu0 %v2607
    %3990 = vmatpush.bf16.msra.mxu0 %v2595
    %3991 = vmatpush.bf16.msra.mxu0 %v2583
    %3992 = vmatpush.bf16.msra.mxu0 %v2571
    %3993 = vmatpush.bf16.msra.mxu0 %v2559
    %3994 = vmatpush.bf16.msra.mxu0 %v2547
    %3995 = vmatpush.bf16.msra.mxu0 %v2535
    %3996 = vmatmul.bf16.gmra.mxu0 %v981
    %v3997 = vpop.f32.mrf.mxu0
    %v3998 = vadd.f32 %v3985, %v3997
    %v3999 = vpop.f32.mrf.mxu0
    %4000 = vdwg.mxu0
    %4001 = vmatpush.bf16.msra.mxu0 %v2715
    %4002 = vmatpush.bf16.msra.mxu0 %v2703
    %4003 = vmatpush.bf16.msra.mxu0 %v2691
    %4004 = vmatpush.bf16.msra.mxu0 %v2679
    %4005 = vmatpush.bf16.msra.mxu0 %v2667
    %4006 = vmatpush.bf16.msra.mxu0 %v2655
    %4007 = vmatpush.bf16.msra.mxu0 %v2643
    %4008 = vmatpush.bf16.msra.mxu0 %v2631
    %4009 = vmatmul.bf16.gmra.mxu0 %v982
    %v4010 = vpop.f32.mrf.mxu0
    %v4011 = vadd.f32 %v3998, %v4010
    %v4012 = vpop.f32.mrf.mxu0
    %4013 = vdwg.mxu0
    %4014 = vmatpush.bf16.msra.mxu0 %v2811
    %4015 = vmatpush.bf16.msra.mxu0 %v2799
    %4016 = vmatpush.bf16.msra.mxu0 %v2787
    %4017 = vmatpush.bf16.msra.mxu0 %v2775
    %4018 = vmatpush.bf16.msra.mxu0 %v2763
    %4019 = vmatpush.bf16.msra.mxu0 %v2751
    %4020 = vmatpush.bf16.msra.mxu0 %v2739
    %4021 = vmatpush.bf16.msra.mxu0 %v2727
    %4022 = vmatmul.bf16.gmra.mxu0 %v983
    %v4023 = vpop.f32.mrf.mxu0
    %v4024 = vadd.f32 %v4011, %v4023
    %v4025 = vpop.f32.mrf.mxu0
    %4026 = vdwg.mxu0
    %4027 = vmatpush.bf16.msra.mxu0 %v2907
    %4028 = vmatpush.bf16.msra.mxu0 %v2895
    %4029 = vmatpush.bf16.msra.mxu0 %v2883
    %4030 = vmatpush.bf16.msra.mxu0 %v2871
    %4031 = vmatpush.bf16.msra.mxu0 %v2859
    %4032 = vmatpush.bf16.msra.mxu0 %v2847
    %4033 = vmatpush.bf16.msra.mxu0 %v2835
    %4034 = vmatpush.bf16.msra.mxu0 %v2823
    %4035 = vmatmul.bf16.gmra.mxu0 %v984
    %v4036 = vpop.f32.mrf.mxu0
    %v4037 = vadd.f32 %v4024, %v4036
    %v4038 = vpop.f32.mrf.mxu0
    %4039 = vdwg.mxu0
    %4040 = vmatpush.bf16.msra.mxu0 %v2524
    %4041 = vmatpush.bf16.msra.mxu0 %v2512
    %4042 = vmatpush.bf16.msra.mxu0 %v2500
    %4043 = vmatpush.bf16.msra.mxu0 %v2488
    %4044 = vmatpush.bf16.msra.mxu0 %v2476
    %4045 = vmatpush.bf16.msra.mxu0 %v2464
    %4046 = vmatpush.bf16.msra.mxu0 %v2452
    %4047 = vmatpush.bf16.msra.mxu0 %v2440
    %4048 = vmatmul.bf16.gmra.mxu0 %v980
    %v4049 = vpop.f32.mrf.mxu0
    %v4050 = vadd.f32 %v958, %v4049
    %v4051 = vpop.f32.mrf.mxu0
    %4052 = vdwg.mxu0
    %4053 = vmatpush.bf16.msra.mxu0 %v2620
    %4054 = vmatpush.bf16.msra.mxu0 %v2608
    %4055 = vmatpush.bf16.msra.mxu0 %v2596
    %4056 = vmatpush.bf16.msra.mxu0 %v2584
    %4057 = vmatpush.bf16.msra.mxu0 %v2572
    %4058 = vmatpush.bf16.msra.mxu0 %v2560
    %4059 = vmatpush.bf16.msra.mxu0 %v2548
    %4060 = vmatpush.bf16.msra.mxu0 %v2536
    %4061 = vmatmul.bf16.gmra.mxu0 %v981
    %v4062 = vpop.f32.mrf.mxu0
    %v4063 = vadd.f32 %v4050, %v4062
    %v4064 = vpop.f32.mrf.mxu0
    %4065 = vdwg.mxu0
    %4066 = vmatpush.bf16.msra.mxu0 %v2716
    %4067 = vmatpush.bf16.msra.mxu0 %v2704
    %4068 = vmatpush.bf16.msra.mxu0 %v2692
    %4069 = vmatpush.bf16.msra.mxu0 %v2680
    %4070 = vmatpush.bf16.msra.mxu0 %v2668
    %4071 = vmatpush.bf16.msra.mxu0 %v2656
    %4072 = vmatpush.bf16.msra.mxu0 %v2644
    %4073 = vmatpush.bf16.msra.mxu0 %v2632
    %4074 = vmatmul.bf16.gmra.mxu0 %v982
    %v4075 = vpop.f32.mrf.mxu0
    %v4076 = vadd.f32 %v4063, %v4075
    %v4077 = vpop.f32.mrf.mxu0
    %4078 = vdwg.mxu0
    %4079 = vmatpush.bf16.msra.mxu0 %v2812
    %4080 = vmatpush.bf16.msra.mxu0 %v2800
    %4081 = vmatpush.bf16.msra.mxu0 %v2788
    %4082 = vmatpush.bf16.msra.mxu0 %v2776
    %4083 = vmatpush.bf16.msra.mxu0 %v2764
    %4084 = vmatpush.bf16.msra.mxu0 %v2752
    %4085 = vmatpush.bf16.msra.mxu0 %v2740
    %4086 = vmatpush.bf16.msra.mxu0 %v2728
    %4087 = vmatmul.bf16.gmra.mxu0 %v983
    %v4088 = vpop.f32.mrf.mxu0
    %v4089 = vadd.f32 %v4076, %v4088
    %v4090 = vpop.f32.mrf.mxu0
    %4091 = vdwg.mxu0
    %4092 = vmatpush.bf16.msra.mxu0 %v2908
    %4093 = vmatpush.bf16.msra.mxu0 %v2896
    %4094 = vmatpush.bf16.msra.mxu0 %v2884
    %4095 = vmatpush.bf16.msra.mxu0 %v2872
    %4096 = vmatpush.bf16.msra.mxu0 %v2860
    %4097 = vmatpush.bf16.msra.mxu0 %v2848
    %4098 = vmatpush.bf16.msra.mxu0 %v2836
    %4099 = vmatpush.bf16.msra.mxu0 %v2824
    %4100 = vmatmul.bf16.gmra.mxu0 %v984
    %v4101 = vpop.f32.mrf.mxu0
    %v4102 = vadd.f32 %v4089, %v4101
    %v4103 = vpop.f32.mrf.mxu0
    %4104 = vdwg.mxu0
    %4105 = vmatpush.bf16.msra.mxu0 %v2525
    %4106 = vmatpush.bf16.msra.mxu0 %v2513
    %4107 = vmatpush.bf16.msra.mxu0 %v2501
    %4108 = vmatpush.bf16.msra.mxu0 %v2489
    %4109 = vmatpush.bf16.msra.mxu0 %v2477
    %4110 = vmatpush.bf16.msra.mxu0 %v2465
    %4111 = vmatpush.bf16.msra.mxu0 %v2453
    %4112 = vmatpush.bf16.msra.mxu0 %v2441
    %4113 = vmatmul.bf16.gmra.mxu0 %v980
    %v4114 = vpop.f32.mrf.mxu0
    %v4115 = vadd.f32 %v959, %v4114
    %v4116 = vpop.f32.mrf.mxu0
    %4117 = vdwg.mxu0
    %4118 = vmatpush.bf16.msra.mxu0 %v2621
    %4119 = vmatpush.bf16.msra.mxu0 %v2609
    %4120 = vmatpush.bf16.msra.mxu0 %v2597
    %4121 = vmatpush.bf16.msra.mxu0 %v2585
    %4122 = vmatpush.bf16.msra.mxu0 %v2573
    %4123 = vmatpush.bf16.msra.mxu0 %v2561
    %4124 = vmatpush.bf16.msra.mxu0 %v2549
    %4125 = vmatpush.bf16.msra.mxu0 %v2537
    %4126 = vmatmul.bf16.gmra.mxu0 %v981
    %v4127 = vpop.f32.mrf.mxu0
    %v4128 = vadd.f32 %v4115, %v4127
    %v4129 = vpop.f32.mrf.mxu0
    %4130 = vdwg.mxu0
    %4131 = vmatpush.bf16.msra.mxu0 %v2717
    %4132 = vmatpush.bf16.msra.mxu0 %v2705
    %4133 = vmatpush.bf16.msra.mxu0 %v2693
    %4134 = vmatpush.bf16.msra.mxu0 %v2681
    %4135 = vmatpush.bf16.msra.mxu0 %v2669
    %4136 = vmatpush.bf16.msra.mxu0 %v2657
    %4137 = vmatpush.bf16.msra.mxu0 %v2645
    %4138 = vmatpush.bf16.msra.mxu0 %v2633
    %4139 = vmatmul.bf16.gmra.mxu0 %v982
    %v4140 = vpop.f32.mrf.mxu0
    %v4141 = vadd.f32 %v4128, %v4140
    %v4142 = vpop.f32.mrf.mxu0
    %4143 = vdwg.mxu0
    %4144 = vmatpush.bf16.msra.mxu0 %v2813
    %4145 = vmatpush.bf16.msra.mxu0 %v2801
    %4146 = vmatpush.bf16.msra.mxu0 %v2789
    %4147 = vmatpush.bf16.msra.mxu0 %v2777
    %4148 = vmatpush.bf16.msra.mxu0 %v2765
    %4149 = vmatpush.bf16.msra.mxu0 %v2753
    %4150 = vmatpush.bf16.msra.mxu0 %v2741
    %4151 = vmatpush.bf16.msra.mxu0 %v2729
    %4152 = vmatmul.bf16.gmra.mxu0 %v983
    %v4153 = vpop.f32.mrf.mxu0
    %v4154 = vadd.f32 %v4141, %v4153
    %v4155 = vpop.f32.mrf.mxu0
    %4156 = vdwg.mxu0
    %4157 = vmatpush.bf16.msra.mxu0 %v2909
    %4158 = vmatpush.bf16.msra.mxu0 %v2897
    %4159 = vmatpush.bf16.msra.mxu0 %v2885
    %4160 = vmatpush.bf16.msra.mxu0 %v2873
    %4161 = vmatpush.bf16.msra.mxu0 %v2861
    %4162 = vmatpush.bf16.msra.mxu0 %v2849
    %4163 = vmatpush.bf16.msra.mxu0 %v2837
    %4164 = vmatpush.bf16.msra.mxu0 %v2825
    %4165 = vmatmul.bf16.gmra.mxu0 %v984
    %v4166 = vpop.f32.mrf.mxu0
    %v4167 = vadd.f32 %v4154, %v4166
    %v4168 = vpop.f32.mrf.mxu0
    %4169 = vdwg.mxu0
    %4170 = vst [vmem:[#allocation21] sm:$0xff] %v3452
    %4171 = vst [vmem:[#allocation21 + $0x8] sm:$0xff] %v3517
    %4172 = vst [vmem:[#allocation21 + $0x10] sm:$0xff] %v3582
    %4173 = vst [vmem:[#allocation21 + $0x18] sm:$0xff] %v3647
    %4174 = vst [vmem:[#allocation21 + $0x20] sm:$0xff] %v3712
    %4175 = vst [vmem:[#allocation21 + $0x28] sm:$0xff] %v3777
    %4176 = vst [vmem:[#allocation21 + $0x30] sm:$0xff] %v3842
    %4177 = vst [vmem:[#allocation21 + $0x38] sm:$0xff] %v3907
    %4178 = vst [vmem:[#allocation21 + $0x40] sm:$0xff] %v3972
    %4179 = vst [vmem:[#allocation21 + $0x48] sm:$0xff] %v4037
    %4180 = vst [vmem:[#allocation21 + $0x50] sm:$0xff] %v4102
    %4181 = vst [vmem:[#allocation21 + $0x58] sm:$0xff] %v4167
    // Predicated region
    $region94: #{tpu_custom_call.1} parent=1 // pred_check
      _
    $region95: #{tpu_custom_call.1} parent=1 // pred_check_branch
      %4183 = sbr.rel (0) target = $region97
    $region96: #{tpu_custom_call.1} parent=1 // pred_region
      %4185 = vsyncadd [#allocation5], 0
      %s4187 = sshll.u32 [#allocation21], 4
      %s4188 = int_to_ptr.vmem [resolvable:$true] %s4187
      %s4189 = sshll.u32 %s12, 4
      %s4190 = int_to_ptr.hbm [resolvable:$true] %s4189
      %4192 = dma.vmem_to_hbm [thread:$0]  %s4188, 1536, %s4190, [#allocation5]
    $region97: #{tpu_custom_call.1} parent=1 // pred_fallthru
      _
    // Predicated region
    $region98: #{tpu_custom_call.1} parent=1 // pred_check
      _
    $region99: #{tpu_custom_call.1} parent=1 // pred_check_branch
      %4194 = sbr.rel (0) target = $region101
    $region100: #{tpu_custom_call.1} parent=1 // pred_region
      %4196 = dma.done [#allocation5], 1536
    $region101: #{tpu_custom_call.1} parent=1 // pred_fallthru
      _
    %4197 = vsyncpa [#allocation4], 1
    %4198 = vsyncpa [#allocation7], 1
    %4199 = vsyncpa [#allocation10], 1
    %4200 = vsyncpa [#allocation13], 1
    %4201 = vsyncpa [#allocation16], 1
    %4202 = vsyncpa [#allocation19], 1
    %4203 = vsyncpa [#allocation5], 1

</llo_original>
